<compile_context>
chip_gen: v7x
topology: tpu7x:2x2x1
jax: 0.10.0
libtpu: 0.0.40
codegen_flags: <defaults>
</compile_context>

<pallas_src>
import numpy as np
import jax
import jax.numpy as jnp
from jax import lax
from jax.experimental import pallas as pl
from jax.experimental.pallas import tpu as pltpu

NUM_GROUPS = 8
EPS = 1e-5  # PyTorch GroupNorm default

# dot_general dims: contract the LAST dim of both operands -> A(m,k) x B(n,k) = (m,n)
_NT = (((1,), (1,)), ((), ()))


# ----------------------------- fused Pallas kernel ------------------------------

def _make_downblock_kernel(Bt, HO, WO, C0, CH, C_OUT):
    HW = HO * WO
    PAD = WO + 1                   # leading halo rows (== separator width between images)
    SEG = HW + PAD                 # flat-row stride between stacked images
    OUTLEN = (Bt - 1) * SEG + HW   # rows covered by one conv matmul (incl. separators)
    CTOT = C0 + 2 * CH             # scratch lanes: [x0 | h1 | h2]

    def _elu(y):
        return jnp.where(y > 0, y, jnp.exp(jnp.minimum(y, 0.0)) - 1.0)

    def kernel(x_ref, em_ref, mix_ref,
               w1_ref, b1_ref, g1_ref, be1_ref,
               w3_ref, b3_ref, g3_ref, be3_ref,
               w2_ref, b2_ref,
               o_ref, xp_ref):
        em = em_ref[...]
        lmask = em[:, 0:1]          # 0 where j == 0      (left wrap)
        rmask = em[:, 1:2]          # 0 where j == WO - 1 (right wrap)
        mix = mix_ref[...]

        # Zero only the halo / separator bands; interiors are fully overwritten below.
        # Done every grid step (NOT behind pl.when): with dimension_semantics=("parallel",)
        # each TensorCore owns its own scratch and may never execute program 0.
        zband = jnp.zeros((PAD, CTOT), jnp.float32)
        for b in range(Bt + 1):
            xp_ref[pl.ds(b * SEG, PAD), :] = zband

        # Stage pooled inputs into the x0 lanes of each image's interior rows
        # (one contiguous store per image).
        for b in range(Bt):
            xp_ref[pl.ds(b * SEG + PAD, HW), 0:C0] = x_ref[b]

        def conv3x3(n_in, w_ref):
            # 9 shifted-view matmuls over lanes [0:n_in] of the padded flat buffer.
            # Vertical halo comes from the zero bands; horizontal wrap columns are masked.
            # 3 partial accumulators (one per kernel row) keep the MXU pushes pipelined.
            accs = [jnp.zeros((OUTLEN, CH), jnp.float32) for _ in range(3)]
            for t in range(9):
                kh, kw = divmod(t, 3)
                tap = xp_ref[pl.ds(kh * WO + kw, OUTLEN), 0:n_in]
                if kw == 0:
                    tap = tap * lmask
                elif kw == 2:
                    tap = tap * rmask
                accs[kh] = accs[kh] + jnp.dot(tap.astype(jnp.bfloat16), w_ref[t],
                                              preferred_element_type=jnp.float32)
            return (accs[0] + accs[1]) + accs[2]

        def elu_gn_store(acc, bias_ref, gamma_ref, beta_ref, lane_lo):
            # Bias + ELU, then GroupNorm with PER-IMAGE statistics; the normalized result is
            # written into lanes [lane_lo, lane_lo + CH) of that image's interior rows.
            bias = bias_ref[...]
            ys, sums = [], []
            for b in range(Bt):
                y = _elu(acc[b * SEG:b * SEG + HW] + bias)
                ys.append(y)
                sums.append(jnp.sum(y, axis=0, keepdims=True))
                sums.append(jnp.sum(y * y, axis=0, keepdims=True))
            # One tiny group-mix matmul for all images' mean / E[x^2] (kept f32 for stability).
            mm = jnp.dot(jnp.concatenate(sums, axis=0), mix,
                         preferred_element_type=jnp.float32)        # (2*Bt, CH)
            gamma = gamma_ref[...]
            beta = beta_ref[...]
            for b in range(Bt):
                mean = mm[2 * b:2 * b + 1]
                ex2 = mm[2 * b + 1:2 * b + 2]
                # One-pass variance E[x^2] - mean^2 (clamped); fine at these magnitudes.
                var = jnp.maximum(ex2 - mean * mean, 0.0)
                h = (ys[b] - mean) * lax.rsqrt(var + EPS) * gamma + beta
                xp_ref[pl.ds(b * SEG + PAD, HW), lane_lo:lane_lo + CH] = h

        # conv_1: 3x3 over x0 lanes -> h1 lanes
        elu_gn_store(conv3x3(C0, w1_ref), b1_ref, g1_ref, be1_ref, C0)
        # conv_3: 3x3 over [x0 | h1] lanes with the merged weight -> h2 lanes
        elu_gn_store(conv3x3(C0 + CH, w3_ref), b3_ref, g3_ref, be3_ref, C0 + CH)

        # conv_2: 1x1 over [x0 | h1 | h2]; computed transposed so the stored last dim is HW
        # (already NCHW-ordered) and the concat is a single K = CTOT dot per image.
        w2 = w2_ref[...]
        b2 = b2_ref[...]
        for b in range(Bt):
            xi = xp_ref[pl.ds(b * SEG + PAD, HW), :].astype(jnp.bfloat16)
            o_ref[b] = lax.dot_general(w2, xi, _NT,
                                       preferred_element_type=jnp.float32) + b2

    return kernel


# ----------------------------- wrapper ------------------------------

def down_block_forward(x_nchw, params, do_pool=True, batch_tile=None):
    x = jnp.transpose(x_nchw, (0, 2, 3, 1)).astype(jnp.float32)   # NCHW -> NHWC
    B, H, W, C0 = x.shape
    CH = params["w1"].shape[0]
    C_OUT = params["w2"].shape[0]
    CG = CH // NUM_GROUPS

    if do_pool:
        HO, WO = H // 2, W // 2
        # 2x2 avg-pool on a few KB in the wrapper keeps the kernel input a flat, contiguous
        # (Bt, HW, C0) block (lane-dense DMA, no in-kernel relayout).
        x = lax.reduce_window(x, 0.0, lax.add, (1, 2, 2, 1), (1, 2, 2, 1), "VALID") * 0.25
    else:
        HO, WO = H, W
    HW = HO * WO
    x_flat = x.reshape(B, HW, C0)

    # Batch folding: Bt images per grid step grows matmul M and amortizes per-step overhead;
    # default keeps >= 2 grid steps so v7x's two TensorCores both get work ("parallel" axis).
    if batch_tile is None:
        batch_tile = 2 if (B % 2 == 0 and B >= 4) else 1
    Bt = batch_tile
    assert B % Bt == 0, (B, Bt)

    PAD = WO + 1
    SEG = HW + PAD
    OUTLEN = (Bt - 1) * SEG + HW
    TOT = OUTLEN + 2 * PAD
    CTOT = C0 + 2 * CH

    # Horizontal-wrap masks for the shifted-view 3x3 conv, over the stacked output region
    # (separator rows are don't-care). Built with numpy -> constant under jit.
    em = np.ones((OUTLEN, 2), np.float32)
    for b in range(Bt):
        for i in range(HO):
            r = b * SEG + i * WO
            em[r, 0] = 0.0            # j == 0      : left tap wraps
            em[r + WO - 1, 1] = 0.0   # j == WO - 1 : right tap wraps
    edge = jnp.asarray(em)

    # GroupNorm "same group / n" mixing matrix (shared by both GN layers).
    gid = np.arange(CH) // CG
    gn_mix = jnp.asarray((gid[:, None] == gid[None, :]).astype(np.float32) / float(HW * CG))

    # Repack weights (tiny): tap-major 3x3 weights; conv_3 / conv_2 weights stay UN-split
    # because the scratch lanes are laid out [x0 | h1 | h2] = the PyTorch concat order.
    # Matmul operands are bf16 (f32 accumulation inside the kernel).
    w1 = jnp.transpose(params["w1"], (2, 3, 1, 0)).reshape(9, C0, CH).astype(jnp.bfloat16)
    w3 = jnp.transpose(params["w3"], (2, 3, 1, 0)).reshape(9, C0 + CH, CH).astype(jnp.bfloat16)
    w2 = params["w2"].reshape(C_OUT, CTOT).astype(jnp.bfloat16)
    b1, g1, be1 = (params[k].reshape(1, CH) for k in ("b1", "g1", "be1"))
    b3, g3, be3 = (params[k].reshape(1, CH) for k in ("b3", "g3", "be3"))
    b2 = params["b2"].reshape(C_OUT, 1)

    kernel = _make_downblock_kernel(Bt, HO, WO, C0, CH, C_OUT)

    def _full(shape):
        n = len(shape)
        return pl.BlockSpec(shape, lambda g, _n=n: (0,) * _n)

    # TODO(synk): for production HW*CH sizes add an HO-row tile axis to the grid (re-reading a
    # 1-row halo) and set vmem_limit_bytes from the computed footprint; at these shapes the
    # whole padded scratch is < 100 KiB so no spatial tiling is needed.
    out = pl.pallas_call(
        kernel,
        out_shape=jax.ShapeDtypeStruct((B, C_OUT, HW), jnp.float32),
        grid=(B // Bt,),
        in_specs=[
            pl.BlockSpec((Bt, HW, C0), lambda g: (g, 0, 0)),      # pooled input
            _full((OUTLEN, 2)),                                   # edge masks
            _full((CH, CH)),                                      # GN mixing matrix
            _full((9, C0, CH)),                                   # w1
            _full((1, CH)), _full((1, CH)), _full((1, CH)),       # b1, g1, be1
            _full((9, C0 + CH, CH)),                              # w3 (merged, un-split)
            _full((1, CH)), _full((1, CH)), _full((1, CH)),       # b3, g3, be3
            _full((C_OUT, CTOT)),                                 # w2 (merged, un-split)
            _full((C_OUT, 1)),                                    # b2
        ],
        out_specs=pl.BlockSpec((Bt, C_OUT, HW), lambda g: (g, 0, 0)),
        scratch_shapes=[pltpu.VMEM((TOT, CTOT), jnp.float32)],    # merged padded [x0|h1|h2]
        compiler_params=pltpu.CompilerParams(
            dimension_semantics=("parallel",)),                   # batch axis -> both TCs
    )(x_flat, edge, gn_mix, w1, b1, g1, be1, w3, b3, g3, be3, w2, b2)

    return out.reshape(B, C_OUT, HO, WO)   # (B, C_OUT, HW) is already NCHW-ordered: free reshape


# ----------------------------- pure-JAX reference ------------------------------

def _ref_conv3x3_elu_gn(x, w, b, g, be):
    wh = jnp.transpose(w, (2, 3, 1, 0))                           # OIHW -> HWIO
    y = lax.conv_general_dilated(x, wh, (1, 1), "SAME",
                                 dimension_numbers=("NHWC", "HWIO", "NHWC")) + b
    y = jnp.where(y > 0, y, jnp.exp(jnp.minimum(y, 0.0)) - 1.0)
    B, H, W, C = y.shape
    yg = y.reshape(B, H, W, NUM_GROUPS, C // NUM_GROUPS)
    m = yg.mean(axis=(1, 2, 4), keepdims=True)
    v = ((yg - m) ** 2).mean(axis=(1, 2, 4), keepdims=True)
    yg = (yg - m) / jnp.sqrt(v + EPS)
    return yg.reshape(B, H, W, C) * g + be


def ref_forward(x_nchw, params, do_pool=True):
    x = jnp.transpose(x_nchw, (0, 2, 3, 1)).astype(jnp.float32)
    if do_pool:
        x = lax.reduce_window(x, 0.0, lax.add, (1, 2, 2, 1), (1, 2, 2, 1), "VALID") / 4.0
    xl = [x]
    x = _ref_conv3x3_elu_gn(x, params["w1"], params["b1"], params["g1"], params["be1"])
    xl.append(x)
    x = jnp.concatenate(xl, axis=-1)
    x = _ref_conv3x3_elu_gn(x, params["w3"], params["b3"], params["g3"], params["be3"])
    xl.append(x)
    x = jnp.concatenate(xl, axis=-1)
    wm = params["w2"].reshape(params["w2"].shape[0], -1).T
    x = jnp.einsum("bhwc,co->bhwo", x, wm) + params["b2"]
    return jnp.transpose(x, (0, 3, 1, 2))


# ----------------------------- main ------------------------------

if __name__ == "__main__":
    # Shapes consistent with the module: in_size=4, h_size=16 (divisible by num_groups=8),
    # out_size=8, batch=2, spatial 16x16 (pooled to 8x8).
    B, C_IN, H, W = 2, 4, 16, 16
    H_SIZE, OUT_SIZE = 16, 8

    key = jax.random.PRNGKey(0)
    ks = jax.random.split(key, 12)
    params = {
        "w1": 0.1 * jax.random.normal(ks[0], (H_SIZE, C_IN, 3, 3), jnp.float32),
        "b1": 0.1 * jax.random.normal(ks[1], (H_SIZE,), jnp.float32),
        "g1": 1.0 + 0.05 * jax.random.normal(ks[2], (H_SIZE,), jnp.float32),
        "be1": 0.05 * jax.random.normal(ks[3], (H_SIZE,), jnp.float32),
        "w3": 0.1 * jax.random.normal(ks[4], (H_SIZE, C_IN + H_SIZE, 3, 3), jnp.float32),
        "b3": 0.1 * jax.random.normal(ks[5], (H_SIZE,), jnp.float32),
        "g3": 1.0 + 0.05 * jax.random.normal(ks[6], (H_SIZE,), jnp.float32),
        "be3": 0.05 * jax.random.normal(ks[7], (H_SIZE,), jnp.float32),
        "w2": 0.1 * jax.random.normal(ks[8], (OUT_SIZE, C_IN + 2 * H_SIZE, 1, 1), jnp.float32),
        "b2": 0.1 * jax.random.normal(ks[9], (OUT_SIZE,), jnp.float32),
    }
    x = jax.random.normal(ks[10], (B, C_IN, H, W), jnp.float32)

    # Primary case (B=2): Bt=1, grid=(2,) -> both v7x TensorCores busy.
    out = jax.block_until_ready(
        jax.jit(lambda a: down_block_forward(a, params, do_pool=True))(x))
    with jax.default_matmul_precision("float32"):
        ref = jax.block_until_ready(
            jax.jit(lambda a: ref_forward(a, params, do_pool=True))(x))
    assert out.shape == (B, OUT_SIZE, H // 2, W // 2), out.shape
    err = float(jnp.max(jnp.abs(out - ref)))
    # bf16 MXU operands with f32 accumulation -> ~1e-2-level agreement with the f32 reference.
    assert err < 5e-2, f"max abs err {err}"

    # Exercise the batch-folded path (Bt=2 images stacked per grid step, grid=(2,)).
    x4 = jax.random.normal(ks[11], (4, C_IN, H, W), jnp.float32)
    out4 = jax.block_until_ready(
        jax.jit(lambda a: down_block_forward(a, params, do_pool=True, batch_tile=2))(x4))
    with jax.default_matmul_precision("float32"):
        ref4 = jax.block_until_ready(
            jax.jit(lambda a: ref_forward(a, params, do_pool=True))(x4))
    err4 = float(jnp.max(jnp.abs(out4 - ref4)))
    assert err4 < 5e-2, f"max abs err (batch-folded) {err4}"

    print("KERNEL_OK")
</pallas_src>

<mosaic_0001>
module attributes {stable_mosaic.version = 11 : i64} {
  func.func @kernel(%arg0: i32, %arg1: memref<1x64x4xf32, #tpu.memory_space<vmem>>, %arg2: memref<64x2xf32, #tpu.memory_space<vmem>>, %arg3: memref<16x16xf32, #tpu.memory_space<vmem>>, %arg4: memref<9x4x16xbf16, #tpu.memory_space<vmem>>, %arg5: memref<1x16xf32, #tpu.memory_space<vmem>>, %arg6: memref<1x16xf32, #tpu.memory_space<vmem>>, %arg7: memref<1x16xf32, #tpu.memory_space<vmem>>, %arg8: memref<9x20x16xbf16, #tpu.memory_space<vmem>>, %arg9: memref<1x16xf32, #tpu.memory_space<vmem>>, %arg10: memref<1x16xf32, #tpu.memory_space<vmem>>, %arg11: memref<1x16xf32, #tpu.memory_space<vmem>>, %arg12: memref<8x36xbf16, #tpu.memory_space<vmem>>, %arg13: memref<8x1xf32, #tpu.memory_space<vmem>>, %arg14: memref<1x8x64xf32, #tpu.memory_space<vmem>>, %arg15: memref<82x36xf32, #tpu.memory_space<vmem>>) attributes {dimension_semantics = [#tpu.dimension_semantics<parallel>], iteration_bounds = array<i64: 2>, scalar_prefetch = 0 : i64, scratch_operands = 1 : i64, tpu.core_type = #tpu.core_type<tc>, window_params = [{transform_indices = @transform_0, window_bounds = array<i64: 1, 64, 4>}, {pipeline_mode = #tpu.pipeline_mode<synchronous>, transform_indices = @transform_1, window_bounds = array<i64: 64, 2>}, {pipeline_mode = #tpu.pipeline_mode<synchronous>, transform_indices = @transform_2, window_bounds = array<i64: 16, 16>}, {pipeline_mode = #tpu.pipeline_mode<synchronous>, transform_indices = @transform_3, window_bounds = array<i64: 9, 4, 16>}, {pipeline_mode = #tpu.pipeline_mode<synchronous>, transform_indices = @transform_4, window_bounds = array<i64: 1, 16>}, {pipeline_mode = #tpu.pipeline_mode<synchronous>, transform_indices = @transform_5, window_bounds = array<i64: 1, 16>}, {pipeline_mode = #tpu.pipeline_mode<synchronous>, transform_indices = @transform_6, window_bounds = array<i64: 1, 16>}, {pipeline_mode = #tpu.pipeline_mode<synchronous>, transform_indices = @transform_7, window_bounds = array<i64: 9, 20, 16>}, {pipeline_mode = #tpu.pipeline_mode<synchronous>, transform_indices = @transform_8, window_bounds = array<i64: 1, 16>}, {pipeline_mode = #tpu.pipeline_mode<synchronous>, transform_indices = @transform_9, window_bounds = array<i64: 1, 16>}, {pipeline_mode = #tpu.pipeline_mode<synchronous>, transform_indices = @transform_10, window_bounds = array<i64: 1, 16>}, {pipeline_mode = #tpu.pipeline_mode<synchronous>, transform_indices = @transform_11, window_bounds = array<i64: 8, 36>}, {pipeline_mode = #tpu.pipeline_mode<synchronous>, transform_indices = @transform_12, window_bounds = array<i64: 8, 1>}, {transform_indices = @transform_13, window_bounds = array<i64: 1, 8, 64>}]} {
    %c0 = arith.constant 0 : index
    %c0_0 = arith.constant 0 : index
    %0 = vector.load %arg2[%c0, %c0_0] : memref<64x2xf32, #tpu.memory_space<vmem>>, vector<64x2xf32>
    %1 = vector.extract_strided_slice %0 {offsets = [0, 0], sizes = [64, 1], strides = [1, 1]} : vector<64x2xf32> to vector<64x1xf32>
    %2 = vector.extract_strided_slice %0 {offsets = [0, 1], sizes = [64, 1], strides = [1, 1]} : vector<64x2xf32> to vector<64x1xf32>
    %c0_1 = arith.constant 0 : index
    %c0_2 = arith.constant 0 : index
    %3 = vector.load %arg3[%c0_1, %c0_2] : memref<16x16xf32, #tpu.memory_space<vmem>>, vector<16x16xf32>
    %cst = arith.constant 0.000000e+00 : f32
    %4 = vector.broadcast %cst : f32 to vector<9x36xf32>
    %c0_3 = arith.constant 0 : index
    %c0_4 = arith.constant 0 : index
    %5 = vector.load %arg15[%c0_3, %c0_4] : memref<82x36xf32, #tpu.memory_space<vmem>>, vector<9x36xf32>
    tpu.vector_store %arg15[%c0_3, %c0_4], %4 {strides = array<i32>} : memref<82x36xf32, #tpu.memory_space<vmem>>, vector<9x36xf32>,
    %c73 = arith.constant 73 : index
    %c0_5 = arith.constant 0 : index
    %6 = vector.load %arg15[%c73, %c0_5] : memref<82x36xf32, #tpu.memory_space<vmem>>, vector<9x36xf32>
    tpu.vector_store %arg15[%c73, %c0_5], %4 {strides = array<i32>} : memref<82x36xf32, #tpu.memory_space<vmem>>, vector<9x36xf32>,
    %c0_6 = arith.constant 0 : index
    %c0_7 = arith.constant 0 : index
    %c0_8 = arith.constant 0 : index
    %7 = vector.load %arg1[%c0_6, %c0_7, %c0_8] : memref<1x64x4xf32, #tpu.memory_space<vmem>>, vector<1x64x4xf32>
    %8 = vector.shape_cast %7 : vector<1x64x4xf32> to vector<64x4xf32>
    %c9 = arith.constant 9 : index
    %c0_9 = arith.constant 0 : index
    %9 = vector.load %arg15[%c9, %c0_9] : memref<82x36xf32, #tpu.memory_space<vmem>>, vector<64x4xf32>
    tpu.vector_store %arg15[%c9, %c0_9], %8 {strides = array<i32>} : memref<82x36xf32, #tpu.memory_space<vmem>>, vector<64x4xf32>,
    %cst_10 = arith.constant 0.000000e+00 : f32
    %10 = vector.broadcast %cst_10 : f32 to vector<64x16xf32>
    %cst_11 = arith.constant 0.000000e+00 : f32
    %11 = vector.broadcast %cst_11 : f32 to vector<64x16xf32>
    %cst_12 = arith.constant 0.000000e+00 : f32
    %12 = vector.broadcast %cst_12 : f32 to vector<64x16xf32>
    %c0_13 = arith.constant 0 : index
    %c0_14 = arith.constant 0 : index
    %13 = vector.load %arg15[%c0_13, %c0_14] : memref<82x36xf32, #tpu.memory_space<vmem>>, vector<64x4xf32>
    %14 = vector.broadcast %1 : vector<64x1xf32> to vector<64x4xf32>
    %15 = arith.mulf %13, %14 : vector<64x4xf32>
    %16 = arith.truncf %15 : vector<64x4xf32> to vector<64x4xbf16>
    %c0_15 = arith.constant 0 : index
    %c0_16 = arith.constant 0 : index
    %c0_17 = arith.constant 0 : index
    %17 = vector.load %arg4[%c0_15, %c0_16, %c0_17] : memref<9x4x16xbf16, #tpu.memory_space<vmem>>, vector<1x4x16xbf16>
    %18 = vector.shape_cast %17 : vector<1x4x16xbf16> to vector<4x16xbf16>
    %cst_18 = arith.constant dense<0.000000e+00> : vector<64x16xf32>
    %19 = tpu.matmul %16, %18, %cst_18 {dimension_numbers = #tpu.dot_dimension_numbers<[1], [0], [0], [1], [0, 0, 1, 1], [], []>} : vector<64x4xbf16>, vector<4x16xbf16>, vector<64x16xf32> -> vector<64x16xf32>
    %20 = arith.addf %10, %19 : vector<64x16xf32>
    %c1 = arith.constant 1 : index
    %c0_19 = arith.constant 0 : index
    %21 = vector.load %arg15[%c1, %c0_19] : memref<82x36xf32, #tpu.memory_space<vmem>>, vector<64x4xf32>
    %22 = arith.truncf %21 : vector<64x4xf32> to vector<64x4xbf16>
    %c1_20 = arith.constant 1 : index
    %c0_21 = arith.constant 0 : index
    %c0_22 = arith.constant 0 : index
    %23 = vector.load %arg4[%c1_20, %c0_21, %c0_22] : memref<9x4x16xbf16, #tpu.memory_space<vmem>>, vector<1x4x16xbf16>
    %24 = vector.shape_cast %23 : vector<1x4x16xbf16> to vector<4x16xbf16>
    %cst_23 = arith.constant dense<0.000000e+00> : vector<64x16xf32>
    %25 = tpu.matmul %22, %24, %cst_23 {dimension_numbers = #tpu.dot_dimension_numbers<[1], [0], [0], [1], [0, 0, 1, 1], [], []>} : vector<64x4xbf16>, vector<4x16xbf16>, vector<64x16xf32> -> vector<64x16xf32>
    %26 = arith.addf %20, %25 : vector<64x16xf32>
    %c2 = arith.constant 2 : index
    %c0_24 = arith.constant 0 : index
    %27 = vector.load %arg15[%c2, %c0_24] : memref<82x36xf32, #tpu.memory_space<vmem>>, vector<64x4xf32>
    %28 = vector.broadcast %2 : vector<64x1xf32> to vector<64x4xf32>
    %29 = arith.mulf %27, %28 : vector<64x4xf32>
    %30 = arith.truncf %29 : vector<64x4xf32> to vector<64x4xbf16>
    %c2_25 = arith.constant 2 : index
    %c0_26 = arith.constant 0 : index
    %c0_27 = arith.constant 0 : index
    %31 = vector.load %arg4[%c2_25, %c0_26, %c0_27] : memref<9x4x16xbf16, #tpu.memory_space<vmem>>, vector<1x4x16xbf16>
    %32 = vector.shape_cast %31 : vector<1x4x16xbf16> to vector<4x16xbf16>
    %cst_28 = arith.constant dense<0.000000e+00> : vector<64x16xf32>
    %33 = tpu.matmul %30, %32, %cst_28 {dimension_numbers = #tpu.dot_dimension_numbers<[1], [0], [0], [1], [0, 0, 1, 1], [], []>} : vector<64x4xbf16>, vector<4x16xbf16>, vector<64x16xf32> -> vector<64x16xf32>
    %34 = arith.addf %26, %33 : vector<64x16xf32>
    %c8 = arith.constant 8 : index
    %c0_29 = arith.constant 0 : index
    %35 = vector.load %arg15[%c8, %c0_29] : memref<82x36xf32, #tpu.memory_space<vmem>>, vector<64x4xf32>
    %36 = vector.broadcast %1 : vector<64x1xf32> to vector<64x4xf32>
    %37 = arith.mulf %35, %36 : vector<64x4xf32>
    %38 = arith.truncf %37 : vector<64x4xf32> to vector<64x4xbf16>
    %c3 = arith.constant 3 : index
    %c0_30 = arith.constant 0 : index
    %c0_31 = arith.constant 0 : index
    %39 = vector.load %arg4[%c3, %c0_30, %c0_31] : memref<9x4x16xbf16, #tpu.memory_space<vmem>>, vector<1x4x16xbf16>
    %40 = vector.shape_cast %39 : vector<1x4x16xbf16> to vector<4x16xbf16>
    %cst_32 = arith.constant dense<0.000000e+00> : vector<64x16xf32>
    %41 = tpu.matmul %38, %40, %cst_32 {dimension_numbers = #tpu.dot_dimension_numbers<[1], [0], [0], [1], [0, 0, 1, 1], [], []>} : vector<64x4xbf16>, vector<4x16xbf16>, vector<64x16xf32> -> vector<64x16xf32>
    %42 = arith.addf %11, %41 : vector<64x16xf32>
    %c9_33 = arith.constant 9 : index
    %c0_34 = arith.constant 0 : index
    %43 = vector.load %arg15[%c9_33, %c0_34] : memref<82x36xf32, #tpu.memory_space<vmem>>, vector<64x4xf32>
    %44 = arith.truncf %43 : vector<64x4xf32> to vector<64x4xbf16>
    %c4 = arith.constant 4 : index
    %c0_35 = arith.constant 0 : index
    %c0_36 = arith.constant 0 : index
    %45 = vector.load %arg4[%c4, %c0_35, %c0_36] : memref<9x4x16xbf16, #tpu.memory_space<vmem>>, vector<1x4x16xbf16>
    %46 = vector.shape_cast %45 : vector<1x4x16xbf16> to vector<4x16xbf16>
    %cst_37 = arith.constant dense<0.000000e+00> : vector<64x16xf32>
    %47 = tpu.matmul %44, %46, %cst_37 {dimension_numbers = #tpu.dot_dimension_numbers<[1], [0], [0], [1], [0, 0, 1, 1], [], []>} : vector<64x4xbf16>, vector<4x16xbf16>, vector<64x16xf32> -> vector<64x16xf32>
    %48 = arith.addf %42, %47 : vector<64x16xf32>
    %c10 = arith.constant 10 : index
    %c0_38 = arith.constant 0 : index
    %49 = vector.load %arg15[%c10, %c0_38] : memref<82x36xf32, #tpu.memory_space<vmem>>, vector<64x4xf32>
    %50 = vector.broadcast %2 : vector<64x1xf32> to vector<64x4xf32>
    %51 = arith.mulf %49, %50 : vector<64x4xf32>
    %52 = arith.truncf %51 : vector<64x4xf32> to vector<64x4xbf16>
    %c5 = arith.constant 5 : index
    %c0_39 = arith.constant 0 : index
    %c0_40 = arith.constant 0 : index
    %53 = vector.load %arg4[%c5, %c0_39, %c0_40] : memref<9x4x16xbf16, #tpu.memory_space<vmem>>, vector<1x4x16xbf16>
    %54 = vector.shape_cast %53 : vector<1x4x16xbf16> to vector<4x16xbf16>
    %cst_41 = arith.constant dense<0.000000e+00> : vector<64x16xf32>
    %55 = tpu.matmul %52, %54, %cst_41 {dimension_numbers = #tpu.dot_dimension_numbers<[1], [0], [0], [1], [0, 0, 1, 1], [], []>} : vector<64x4xbf16>, vector<4x16xbf16>, vector<64x16xf32> -> vector<64x16xf32>
    %56 = arith.addf %48, %55 : vector<64x16xf32>
    %c16 = arith.constant 16 : index
    %c0_42 = arith.constant 0 : index
    %57 = vector.load %arg15[%c16, %c0_42] : memref<82x36xf32, #tpu.memory_space<vmem>>, vector<64x4xf32>
    %58 = vector.broadcast %1 : vector<64x1xf32> to vector<64x4xf32>
    %59 = arith.mulf %57, %58 : vector<64x4xf32>
    %60 = arith.truncf %59 : vector<64x4xf32> to vector<64x4xbf16>
    %c6 = arith.constant 6 : index
    %c0_43 = arith.constant 0 : index
    %c0_44 = arith.constant 0 : index
    %61 = vector.load %arg4[%c6, %c0_43, %c0_44] : memref<9x4x16xbf16, #tpu.memory_space<vmem>>, vector<1x4x16xbf16>
    %62 = vector.shape_cast %61 : vector<1x4x16xbf16> to vector<4x16xbf16>
    %cst_45 = arith.constant dense<0.000000e+00> : vector<64x16xf32>
    %63 = tpu.matmul %60, %62, %cst_45 {dimension_numbers = #tpu.dot_dimension_numbers<[1], [0], [0], [1], [0, 0, 1, 1], [], []>} : vector<64x4xbf16>, vector<4x16xbf16>, vector<64x16xf32> -> vector<64x16xf32>
    %64 = arith.addf %12, %63 : vector<64x16xf32>
    %c17 = arith.constant 17 : index
    %c0_46 = arith.constant 0 : index
    %65 = vector.load %arg15[%c17, %c0_46] : memref<82x36xf32, #tpu.memory_space<vmem>>, vector<64x4xf32>
    %66 = arith.truncf %65 : vector<64x4xf32> to vector<64x4xbf16>
    %c7 = arith.constant 7 : index
    %c0_47 = arith.constant 0 : index
    %c0_48 = arith.constant 0 : index
    %67 = vector.load %arg4[%c7, %c0_47, %c0_48] : memref<9x4x16xbf16, #tpu.memory_space<vmem>>, vector<1x4x16xbf16>
    %68 = vector.shape_cast %67 : vector<1x4x16xbf16> to vector<4x16xbf16>
    %cst_49 = arith.constant dense<0.000000e+00> : vector<64x16xf32>
    %69 = tpu.matmul %66, %68, %cst_49 {dimension_numbers = #tpu.dot_dimension_numbers<[1], [0], [0], [1], [0, 0, 1, 1], [], []>} : vector<64x4xbf16>, vector<4x16xbf16>, vector<64x16xf32> -> vector<64x16xf32>
    %70 = arith.addf %64, %69 : vector<64x16xf32>
    %c18 = arith.constant 18 : index
    %c0_50 = arith.constant 0 : index
    %71 = vector.load %arg15[%c18, %c0_50] : memref<82x36xf32, #tpu.memory_space<vmem>>, vector<64x4xf32>
    %72 = vector.broadcast %2 : vector<64x1xf32> to vector<64x4xf32>
    %73 = arith.mulf %71, %72 : vector<64x4xf32>
    %74 = arith.truncf %73 : vector<64x4xf32> to vector<64x4xbf16>
    %c8_51 = arith.constant 8 : index
    %c0_52 = arith.constant 0 : index
    %c0_53 = arith.constant 0 : index
    %75 = vector.load %arg4[%c8_51, %c0_52, %c0_53] : memref<9x4x16xbf16, #tpu.memory_space<vmem>>, vector<1x4x16xbf16>
    %76 = vector.shape_cast %75 : vector<1x4x16xbf16> to vector<4x16xbf16>
    %cst_54 = arith.constant dense<0.000000e+00> : vector<64x16xf32>
    %77 = tpu.matmul %74, %76, %cst_54 {dimension_numbers = #tpu.dot_dimension_numbers<[1], [0], [0], [1], [0, 0, 1, 1], [], []>} : vector<64x4xbf16>, vector<4x16xbf16>, vector<64x16xf32> -> vector<64x16xf32>
    %78 = arith.addf %70, %77 : vector<64x16xf32>
    %79 = arith.addf %34, %56 : vector<64x16xf32>
    %80 = arith.addf %79, %78 : vector<64x16xf32>
    %c0_55 = arith.constant 0 : index
    %c0_56 = arith.constant 0 : index
    %81 = vector.load %arg5[%c0_55, %c0_56] : memref<1x16xf32, #tpu.memory_space<vmem>>, vector<1x16xf32>
    %82 = vector.broadcast %81 : vector<1x16xf32> to vector<64x16xf32>
    %83 = arith.addf %80, %82 : vector<64x16xf32>
    %cst_57 = arith.constant 0.000000e+00 : f32
    %84 = vector.broadcast %cst_57 : f32 to vector<64x16xf32>
    %85 = arith.cmpf ogt, %83, %84 : vector<64x16xf32>
    %cst_58 = arith.constant 0.000000e+00 : f32
    %86 = vector.broadcast %cst_58 : f32 to vector<64x16xf32>
    %87 = arith.minimumf %83, %86 : vector<64x16xf32>
    %88 = math.exp %87 : vector<64x16xf32>
    %cst_59 = arith.constant 1.000000e+00 : f32
    %89 = vector.broadcast %cst_59 : f32 to vector<64x16xf32>
    %90 = arith.subf %88, %89 : vector<64x16xf32>
    %91 = arith.select %85, %83, %90 : vector<64x16xi1>, vector<64x16xf32>
    %cst_60 = arith.constant dense<0.000000e+00> : vector<16xf32>
    %92 = vector.multi_reduction <add>, %91, %cst_60 [0] : vector<64x16xf32> to vector<16xf32>
    %93 = vector.shape_cast %92 : vector<16xf32> to vector<1x16xf32>
    %94 = arith.mulf %91, %91 : vector<64x16xf32>
    %cst_61 = arith.constant dense<0.000000e+00> : vector<16xf32>
    %95 = vector.multi_reduction <add>, %94, %cst_61 [0] : vector<64x16xf32> to vector<16xf32>
    %96 = vector.shape_cast %95 : vector<16xf32> to vector<1x16xf32>
    %97 = tpu.concatenate %93, %96 in 0 : vector<1x16xf32>, vector<1x16xf32> -> vector<2x16xf32>
    %cst_62 = arith.constant dense<0.000000e+00> : vector<2x16xf32>
    %98 = tpu.matmul %97, %3, %cst_62 {dimension_numbers = #tpu.dot_dimension_numbers<[1], [0], [0], [1], [0, 0, 1, 1], [], []>} : vector<2x16xf32>, vector<16x16xf32>, vector<2x16xf32> -> vector<2x16xf32>
    %c0_63 = arith.constant 0 : index
    %c0_64 = arith.constant 0 : index
    %99 = vector.load %arg6[%c0_63, %c0_64] : memref<1x16xf32, #tpu.memory_space<vmem>>, vector<1x16xf32>
    %c0_65 = arith.constant 0 : index
    %c0_66 = arith.constant 0 : index
    %100 = vector.load %arg7[%c0_65, %c0_66] : memref<1x16xf32, #tpu.memory_space<vmem>>, vector<1x16xf32>
    %101 = vector.extract_strided_slice %98 {offsets = [0, 0], sizes = [1, 16], strides = [1, 1]} : vector<2x16xf32> to vector<1x16xf32>
    %102 = vector.extract_strided_slice %98 {offsets = [1, 0], sizes = [1, 16], strides = [1, 1]} : vector<2x16xf32> to vector<1x16xf32>
    %103 = arith.mulf %101, %101 : vector<1x16xf32>
    %104 = arith.subf %102, %103 : vector<1x16xf32>
    %cst_67 = arith.constant 0.000000e+00 : f32
    %105 = vector.broadcast %cst_67 : f32 to vector<1x16xf32>
    %106 = arith.maximumf %104, %105 : vector<1x16xf32>
    %107 = vector.broadcast %101 : vector<1x16xf32> to vector<64x16xf32>
    %108 = arith.subf %91, %107 : vector<64x16xf32>
    %cst_68 = arith.constant 9.99999974E-6 : f32
    %109 = vector.broadcast %cst_68 : f32 to vector<1x16xf32>
    %110 = arith.addf %106, %109 : vector<1x16xf32>
    %111 = math.rsqrt %110 : vector<1x16xf32>
    %112 = vector.broadcast %111 : vector<1x16xf32> to vector<64x16xf32>
    %113 = arith.mulf %108, %112 : vector<64x16xf32>
    %114 = vector.broadcast %99 : vector<1x16xf32> to vector<64x16xf32>
    %115 = arith.mulf %113, %114 : vector<64x16xf32>
    %116 = vector.broadcast %100 : vector<1x16xf32> to vector<64x16xf32>
    %117 = arith.addf %115, %116 : vector<64x16xf32>
    %c9_69 = arith.constant 9 : index
    %c4_70 = arith.constant 4 : index
    %118 = vector.load %arg15[%c9_69, %c4_70] : memref<82x36xf32, #tpu.memory_space<vmem>>, vector<64x16xf32>
    tpu.vector_store %arg15[%c9_69, %c4_70], %117 {strides = array<i32>} : memref<82x36xf32, #tpu.memory_space<vmem>>, vector<64x16xf32>,
    %cst_71 = arith.constant 0.000000e+00 : f32
    %119 = vector.broadcast %cst_71 : f32 to vector<64x16xf32>
    %cst_72 = arith.constant 0.000000e+00 : f32
    %120 = vector.broadcast %cst_72 : f32 to vector<64x16xf32>
    %cst_73 = arith.constant 0.000000e+00 : f32
    %121 = vector.broadcast %cst_73 : f32 to vector<64x16xf32>
    %c0_74 = arith.constant 0 : index
    %c0_75 = arith.constant 0 : index
    %122 = vector.load %arg15[%c0_74, %c0_75] : memref<82x36xf32, #tpu.memory_space<vmem>>, vector<64x20xf32>
    %123 = vector.broadcast %1 : vector<64x1xf32> to vector<64x20xf32>
    %124 = arith.mulf %122, %123 : vector<64x20xf32>
    %125 = arith.truncf %124 : vector<64x20xf32> to vector<64x20xbf16>
    %c0_76 = arith.constant 0 : index
    %c0_77 = arith.constant 0 : index
    %c0_78 = arith.constant 0 : index
    %126 = vector.load %arg8[%c0_76, %c0_77, %c0_78] : memref<9x20x16xbf16, #tpu.memory_space<vmem>>, vector<1x20x16xbf16>
    %127 = vector.shape_cast %126 : vector<1x20x16xbf16> to vector<20x16xbf16>
    %cst_79 = arith.constant dense<0.000000e+00> : vector<64x16xf32>
    %128 = tpu.matmul %125, %127, %cst_79 {dimension_numbers = #tpu.dot_dimension_numbers<[1], [0], [0], [1], [0, 0, 1, 1], [], []>} : vector<64x20xbf16>, vector<20x16xbf16>, vector<64x16xf32> -> vector<64x16xf32>
    %129 = arith.addf %119, %128 : vector<64x16xf32>
    %c1_80 = arith.constant 1 : index
    %c0_81 = arith.constant 0 : index
    %130 = vector.load %arg15[%c1_80, %c0_81] : memref<82x36xf32, #tpu.memory_space<vmem>>, vector<64x20xf32>
    %131 = arith.truncf %130 : vector<64x20xf32> to vector<64x20xbf16>
    %c1_82 = arith.constant 1 : index
    %c0_83 = arith.constant 0 : index
    %c0_84 = arith.constant 0 : index
    %132 = vector.load %arg8[%c1_82, %c0_83, %c0_84] : memref<9x20x16xbf16, #tpu.memory_space<vmem>>, vector<1x20x16xbf16>
    %133 = vector.shape_cast %132 : vector<1x20x16xbf16> to vector<20x16xbf16>
    %cst_85 = arith.constant dense<0.000000e+00> : vector<64x16xf32>
    %134 = tpu.matmul %131, %133, %cst_85 {dimension_numbers = #tpu.dot_dimension_numbers<[1], [0], [0], [1], [0, 0, 1, 1], [], []>} : vector<64x20xbf16>, vector<20x16xbf16>, vector<64x16xf32> -> vector<64x16xf32>
    %135 = arith.addf %129, %134 : vector<64x16xf32>
    %c2_86 = arith.constant 2 : index
    %c0_87 = arith.constant 0 : index
    %136 = vector.load %arg15[%c2_86, %c0_87] : memref<82x36xf32, #tpu.memory_space<vmem>>, vector<64x20xf32>
    %137 = vector.broadcast %2 : vector<64x1xf32> to vector<64x20xf32>
    %138 = arith.mulf %136, %137 : vector<64x20xf32>
    %139 = arith.truncf %138 : vector<64x20xf32> to vector<64x20xbf16>
    %c2_88 = arith.constant 2 : index
    %c0_89 = arith.constant 0 : index
    %c0_90 = arith.constant 0 : index
    %140 = vector.load %arg8[%c2_88, %c0_89, %c0_90] : memref<9x20x16xbf16, #tpu.memory_space<vmem>>, vector<1x20x16xbf16>
    %141 = vector.shape_cast %140 : vector<1x20x16xbf16> to vector<20x16xbf16>
    %cst_91 = arith.constant dense<0.000000e+00> : vector<64x16xf32>
    %142 = tpu.matmul %139, %141, %cst_91 {dimension_numbers = #tpu.dot_dimension_numbers<[1], [0], [0], [1], [0, 0, 1, 1], [], []>} : vector<64x20xbf16>, vector<20x16xbf16>, vector<64x16xf32> -> vector<64x16xf32>
    %143 = arith.addf %135, %142 : vector<64x16xf32>
    %c8_92 = arith.constant 8 : index
    %c0_93 = arith.constant 0 : index
    %144 = vector.load %arg15[%c8_92, %c0_93] : memref<82x36xf32, #tpu.memory_space<vmem>>, vector<64x20xf32>
    %145 = vector.broadcast %1 : vector<64x1xf32> to vector<64x20xf32>
    %146 = arith.mulf %144, %145 : vector<64x20xf32>
    %147 = arith.truncf %146 : vector<64x20xf32> to vector<64x20xbf16>
    %c3_94 = arith.constant 3 : index
    %c0_95 = arith.constant 0 : index
    %c0_96 = arith.constant 0 : index
    %148 = vector.load %arg8[%c3_94, %c0_95, %c0_96] : memref<9x20x16xbf16, #tpu.memory_space<vmem>>, vector<1x20x16xbf16>
    %149 = vector.shape_cast %148 : vector<1x20x16xbf16> to vector<20x16xbf16>
    %cst_97 = arith.constant dense<0.000000e+00> : vector<64x16xf32>
    %150 = tpu.matmul %147, %149, %cst_97 {dimension_numbers = #tpu.dot_dimension_numbers<[1], [0], [0], [1], [0, 0, 1, 1], [], []>} : vector<64x20xbf16>, vector<20x16xbf16>, vector<64x16xf32> -> vector<64x16xf32>
    %151 = arith.addf %120, %150 : vector<64x16xf32>
    %c9_98 = arith.constant 9 : index
    %c0_99 = arith.constant 0 : index
    %152 = vector.load %arg15[%c9_98, %c0_99] : memref<82x36xf32, #tpu.memory_space<vmem>>, vector<64x20xf32>
    %153 = arith.truncf %152 : vector<64x20xf32> to vector<64x20xbf16>
    %c4_100 = arith.constant 4 : index
    %c0_101 = arith.constant 0 : index
    %c0_102 = arith.constant 0 : index
    %154 = vector.load %arg8[%c4_100, %c0_101, %c0_102] : memref<9x20x16xbf16, #tpu.memory_space<vmem>>, vector<1x20x16xbf16>
    %155 = vector.shape_cast %154 : vector<1x20x16xbf16> to vector<20x16xbf16>
    %cst_103 = arith.constant dense<0.000000e+00> : vector<64x16xf32>
    %156 = tpu.matmul %153, %155, %cst_103 {dimension_numbers = #tpu.dot_dimension_numbers<[1], [0], [0], [1], [0, 0, 1, 1], [], []>} : vector<64x20xbf16>, vector<20x16xbf16>, vector<64x16xf32> -> vector<64x16xf32>
    %157 = arith.addf %151, %156 : vector<64x16xf32>
    %c10_104 = arith.constant 10 : index
    %c0_105 = arith.constant 0 : index
    %158 = vector.load %arg15[%c10_104, %c0_105] : memref<82x36xf32, #tpu.memory_space<vmem>>, vector<64x20xf32>
    %159 = vector.broadcast %2 : vector<64x1xf32> to vector<64x20xf32>
    %160 = arith.mulf %158, %159 : vector<64x20xf32>
    %161 = arith.truncf %160 : vector<64x20xf32> to vector<64x20xbf16>
    %c5_106 = arith.constant 5 : index
    %c0_107 = arith.constant 0 : index
    %c0_108 = arith.constant 0 : index
    %162 = vector.load %arg8[%c5_106, %c0_107, %c0_108] : memref<9x20x16xbf16, #tpu.memory_space<vmem>>, vector<1x20x16xbf16>
    %163 = vector.shape_cast %162 : vector<1x20x16xbf16> to vector<20x16xbf16>
    %cst_109 = arith.constant dense<0.000000e+00> : vector<64x16xf32>
    %164 = tpu.matmul %161, %163, %cst_109 {dimension_numbers = #tpu.dot_dimension_numbers<[1], [0], [0], [1], [0, 0, 1, 1], [], []>} : vector<64x20xbf16>, vector<20x16xbf16>, vector<64x16xf32> -> vector<64x16xf32>
    %165 = arith.addf %157, %164 : vector<64x16xf32>
    %c16_110 = arith.constant 16 : index
    %c0_111 = arith.constant 0 : index
    %166 = vector.load %arg15[%c16_110, %c0_111] : memref<82x36xf32, #tpu.memory_space<vmem>>, vector<64x20xf32>
    %167 = vector.broadcast %1 : vector<64x1xf32> to vector<64x20xf32>
    %168 = arith.mulf %166, %167 : vector<64x20xf32>
    %169 = arith.truncf %168 : vector<64x20xf32> to vector<64x20xbf16>
    %c6_112 = arith.constant 6 : index
    %c0_113 = arith.constant 0 : index
    %c0_114 = arith.constant 0 : index
    %170 = vector.load %arg8[%c6_112, %c0_113, %c0_114] : memref<9x20x16xbf16, #tpu.memory_space<vmem>>, vector<1x20x16xbf16>
    %171 = vector.shape_cast %170 : vector<1x20x16xbf16> to vector<20x16xbf16>
    %cst_115 = arith.constant dense<0.000000e+00> : vector<64x16xf32>
    %172 = tpu.matmul %169, %171, %cst_115 {dimension_numbers = #tpu.dot_dimension_numbers<[1], [0], [0], [1], [0, 0, 1, 1], [], []>} : vector<64x20xbf16>, vector<20x16xbf16>, vector<64x16xf32> -> vector<64x16xf32>
    %173 = arith.addf %121, %172 : vector<64x16xf32>
    %c17_116 = arith.constant 17 : index
    %c0_117 = arith.constant 0 : index
    %174 = vector.load %arg15[%c17_116, %c0_117] : memref<82x36xf32, #tpu.memory_space<vmem>>, vector<64x20xf32>
    %175 = arith.truncf %174 : vector<64x20xf32> to vector<64x20xbf16>
    %c7_118 = arith.constant 7 : index
    %c0_119 = arith.constant 0 : index
    %c0_120 = arith.constant 0 : index
    %176 = vector.load %arg8[%c7_118, %c0_119, %c0_120] : memref<9x20x16xbf16, #tpu.memory_space<vmem>>, vector<1x20x16xbf16>
    %177 = vector.shape_cast %176 : vector<1x20x16xbf16> to vector<20x16xbf16>
    %cst_121 = arith.constant dense<0.000000e+00> : vector<64x16xf32>
    %178 = tpu.matmul %175, %177, %cst_121 {dimension_numbers = #tpu.dot_dimension_numbers<[1], [0], [0], [1], [0, 0, 1, 1], [], []>} : vector<64x20xbf16>, vector<20x16xbf16>, vector<64x16xf32> -> vector<64x16xf32>
    %179 = arith.addf %173, %178 : vector<64x16xf32>
    %c18_122 = arith.constant 18 : index
    %c0_123 = arith.constant 0 : index
    %180 = vector.load %arg15[%c18_122, %c0_123] : memref<82x36xf32, #tpu.memory_space<vmem>>, vector<64x20xf32>
    %181 = vector.broadcast %2 : vector<64x1xf32> to vector<64x20xf32>
    %182 = arith.mulf %180, %181 : vector<64x20xf32>
    %183 = arith.truncf %182 : vector<64x20xf32> to vector<64x20xbf16>
    %c8_124 = arith.constant 8 : index
    %c0_125 = arith.constant 0 : index
    %c0_126 = arith.constant 0 : index
    %184 = vector.load %arg8[%c8_124, %c0_125, %c0_126] : memref<9x20x16xbf16, #tpu.memory_space<vmem>>, vector<1x20x16xbf16>
    %185 = vector.shape_cast %184 : vector<1x20x16xbf16> to vector<20x16xbf16>
    %cst_127 = arith.constant dense<0.000000e+00> : vector<64x16xf32>
    %186 = tpu.matmul %183, %185, %cst_127 {dimension_numbers = #tpu.dot_dimension_numbers<[1], [0], [0], [1], [0, 0, 1, 1], [], []>} : vector<64x20xbf16>, vector<20x16xbf16>, vector<64x16xf32> -> vector<64x16xf32>
    %187 = arith.addf %179, %186 : vector<64x16xf32>
    %188 = arith.addf %143, %165 : vector<64x16xf32>
    %189 = arith.addf %188, %187 : vector<64x16xf32>
    %c0_128 = arith.constant 0 : index
    %c0_129 = arith.constant 0 : index
    %190 = vector.load %arg9[%c0_128, %c0_129] : memref<1x16xf32, #tpu.memory_space<vmem>>, vector<1x16xf32>
    %191 = vector.broadcast %190 : vector<1x16xf32> to vector<64x16xf32>
    %192 = arith.addf %189, %191 : vector<64x16xf32>
    %cst_130 = arith.constant 0.000000e+00 : f32
    %193 = vector.broadcast %cst_130 : f32 to vector<64x16xf32>
    %194 = arith.cmpf ogt, %192, %193 : vector<64x16xf32>
    %cst_131 = arith.constant 0.000000e+00 : f32
    %195 = vector.broadcast %cst_131 : f32 to vector<64x16xf32>
    %196 = arith.minimumf %192, %195 : vector<64x16xf32>
    %197 = math.exp %196 : vector<64x16xf32>
    %cst_132 = arith.constant 1.000000e+00 : f32
    %198 = vector.broadcast %cst_132 : f32 to vector<64x16xf32>
    %199 = arith.subf %197, %198 : vector<64x16xf32>
    %200 = arith.select %194, %192, %199 : vector<64x16xi1>, vector<64x16xf32>
    %cst_133 = arith.constant dense<0.000000e+00> : vector<16xf32>
    %201 = vector.multi_reduction <add>, %200, %cst_133 [0] : vector<64x16xf32> to vector<16xf32>
    %202 = vector.shape_cast %201 : vector<16xf32> to vector<1x16xf32>
    %203 = arith.mulf %200, %200 : vector<64x16xf32>
    %cst_134 = arith.constant dense<0.000000e+00> : vector<16xf32>
    %204 = vector.multi_reduction <add>, %203, %cst_134 [0] : vector<64x16xf32> to vector<16xf32>
    %205 = vector.shape_cast %204 : vector<16xf32> to vector<1x16xf32>
    %206 = tpu.concatenate %202, %205 in 0 : vector<1x16xf32>, vector<1x16xf32> -> vector<2x16xf32>
    %cst_135 = arith.constant dense<0.000000e+00> : vector<2x16xf32>
    %207 = tpu.matmul %206, %3, %cst_135 {dimension_numbers = #tpu.dot_dimension_numbers<[1], [0], [0], [1], [0, 0, 1, 1], [], []>} : vector<2x16xf32>, vector<16x16xf32>, vector<2x16xf32> -> vector<2x16xf32>
    %c0_136 = arith.constant 0 : index
    %c0_137 = arith.constant 0 : index
    %208 = vector.load %arg10[%c0_136, %c0_137] : memref<1x16xf32, #tpu.memory_space<vmem>>, vector<1x16xf32>
    %c0_138 = arith.constant 0 : index
    %c0_139 = arith.constant 0 : index
    %209 = vector.load %arg11[%c0_138, %c0_139] : memref<1x16xf32, #tpu.memory_space<vmem>>, vector<1x16xf32>
    %210 = vector.extract_strided_slice %207 {offsets = [0, 0], sizes = [1, 16], strides = [1, 1]} : vector<2x16xf32> to vector<1x16xf32>
    %211 = vector.extract_strided_slice %207 {offsets = [1, 0], sizes = [1, 16], strides = [1, 1]} : vector<2x16xf32> to vector<1x16xf32>
    %212 = arith.mulf %210, %210 : vector<1x16xf32>
    %213 = arith.subf %211, %212 : vector<1x16xf32>
    %cst_140 = arith.constant 0.000000e+00 : f32
    %214 = vector.broadcast %cst_140 : f32 to vector<1x16xf32>
    %215 = arith.maximumf %213, %214 : vector<1x16xf32>
    %216 = vector.broadcast %210 : vector<1x16xf32> to vector<64x16xf32>
    %217 = arith.subf %200, %216 : vector<64x16xf32>
    %cst_141 = arith.constant 9.99999974E-6 : f32
    %218 = vector.broadcast %cst_141 : f32 to vector<1x16xf32>
    %219 = arith.addf %215, %218 : vector<1x16xf32>
    %220 = math.rsqrt %219 : vector<1x16xf32>
    %221 = vector.broadcast %220 : vector<1x16xf32> to vector<64x16xf32>
    %222 = arith.mulf %217, %221 : vector<64x16xf32>
    %223 = vector.broadcast %208 : vector<1x16xf32> to vector<64x16xf32>
    %224 = arith.mulf %222, %223 : vector<64x16xf32>
    %225 = vector.broadcast %209 : vector<1x16xf32> to vector<64x16xf32>
    %226 = arith.addf %224, %225 : vector<64x16xf32>
    %c9_142 = arith.constant 9 : index
    %c20 = arith.constant 20 : index
    %227 = vector.load %arg15[%c9_142, %c20] : memref<82x36xf32, #tpu.memory_space<vmem>>, vector<64x16xf32>
    tpu.vector_store %arg15[%c9_142, %c20], %226 {strides = array<i32>} : memref<82x36xf32, #tpu.memory_space<vmem>>, vector<64x16xf32>,
    %c0_143 = arith.constant 0 : index
    %c0_144 = arith.constant 0 : index
    %228 = vector.load %arg12[%c0_143, %c0_144] : memref<8x36xbf16, #tpu.memory_space<vmem>>, vector<8x36xbf16>
    %c0_145 = arith.constant 0 : index
    %c0_146 = arith.constant 0 : index
    %229 = vector.load %arg13[%c0_145, %c0_146] : memref<8x1xf32, #tpu.memory_space<vmem>>, vector<8x1xf32>
    %c9_147 = arith.constant 9 : index
    %c0_148 = arith.constant 0 : index
    %230 = vector.load %arg15[%c9_147, %c0_148] : memref<82x36xf32, #tpu.memory_space<vmem>>, vector<64x36xf32>
    %231 = arith.truncf %230 : vector<64x36xf32> to vector<64x36xbf16>
    %cst_149 = arith.constant dense<0.000000e+00> : vector<8x64xf32>
    %232 = tpu.matmul %228, %231, %cst_149 {dimension_numbers = #tpu.dot_dimension_numbers<[1], [1], [0], [0], [0, 0, 1, 0], [], []>} : vector<8x36xbf16>, vector<64x36xbf16>, vector<8x64xf32> -> vector<8x64xf32>
    %233 = vector.broadcast %229 : vector<8x1xf32> to vector<8x64xf32>
    %234 = arith.addf %232, %233 : vector<8x64xf32>
    %c0_150 = arith.constant 0 : index
    %c0_151 = arith.constant 0 : index
    %c0_152 = arith.constant 0 : index
    %235 = vector.load %arg14[%c0_150, %c0_151, %c0_152] : memref<1x8x64xf32, #tpu.memory_space<vmem>>, vector<1x8x64xf32>
    %236 = vector.shape_cast %235 : vector<1x8x64xf32> to vector<8x64xf32>
    %237 = vector.shape_cast %234 : vector<8x64xf32> to vector<1x8x64xf32>
    tpu.vector_store %arg14[%c0_150, %c0_151, %c0_152], %237 {strides = array<i32>} : memref<1x8x64xf32, #tpu.memory_space<vmem>>, vector<1x8x64xf32>,
    return
  }
  func.func @transform_0(%arg0: i32) -> (i32, i32, i32) {
    %c0_i32 = arith.constant 0 : i32
    %c0_i32_0 = arith.constant 0 : i32
    %c0_i32_1 = arith.constant 0 : i32
    return %arg0, %c0_i32, %c0_i32_0 : i32, i32, i32
  }
  func.func @transform_1(%arg0: i32) -> (i32, i32) {
    %c0_i32 = arith.constant 0 : i32
    %c0_i32_0 = arith.constant 0 : i32
    %c0_i32_1 = arith.constant 0 : i32
    return %c0_i32, %c0_i32_0 : i32, i32
  }
  func.func @transform_2(%arg0: i32) -> (i32, i32) {
    %c0_i32 = arith.constant 0 : i32
    %c0_i32_0 = arith.constant 0 : i32
    %c0_i32_1 = arith.constant 0 : i32
    return %c0_i32, %c0_i32_0 : i32, i32
  }
  func.func @transform_3(%arg0: i32) -> (i32, i32, i32) {
    %c0_i32 = arith.constant 0 : i32
    %c0_i32_0 = arith.constant 0 : i32
    %c0_i32_1 = arith.constant 0 : i32
    %c0_i32_2 = arith.constant 0 : i32
    return %c0_i32, %c0_i32_0, %c0_i32_1 : i32, i32, i32
  }
  func.func @transform_4(%arg0: i32) -> (i32, i32) {
    %c0_i32 = arith.constant 0 : i32
    %c0_i32_0 = arith.constant 0 : i32
    %c0_i32_1 = arith.constant 0 : i32
    return %c0_i32, %c0_i32_0 : i32, i32
  }
  func.func @transform_5(%arg0: i32) -> (i32, i32) {
    %c0_i32 = arith.constant 0 : i32
    %c0_i32_0 = arith.constant 0 : i32
    %c0_i32_1 = arith.constant 0 : i32
    return %c0_i32, %c0_i32_0 : i32, i32
  }
  func.func @transform_6(%arg0: i32) -> (i32, i32) {
    %c0_i32 = arith.constant 0 : i32
    %c0_i32_0 = arith.constant 0 : i32
    %c0_i32_1 = arith.constant 0 : i32
    return %c0_i32, %c0_i32_0 : i32, i32
  }
  func.func @transform_7(%arg0: i32) -> (i32, i32, i32) {
    %c0_i32 = arith.constant 0 : i32
    %c0_i32_0 = arith.constant 0 : i32
    %c0_i32_1 = arith.constant 0 : i32
    %c0_i32_2 = arith.constant 0 : i32
    return %c0_i32, %c0_i32_0, %c0_i32_1 : i32, i32, i32
  }
  func.func @transform_8(%arg0: i32) -> (i32, i32) {
    %c0_i32 = arith.constant 0 : i32
    %c0_i32_0 = arith.constant 0 : i32
    %c0_i32_1 = arith.constant 0 : i32
    return %c0_i32, %c0_i32_0 : i32, i32
  }
  func.func @transform_9(%arg0: i32) -> (i32, i32) {
    %c0_i32 = arith.constant 0 : i32
    %c0_i32_0 = arith.constant 0 : i32
    %c0_i32_1 = arith.constant 0 : i32
    return %c0_i32, %c0_i32_0 : i32, i32
  }
  func.func @transform_10(%arg0: i32) -> (i32, i32) {
    %c0_i32 = arith.constant 0 : i32
    %c0_i32_0 = arith.constant 0 : i32
    %c0_i32_1 = arith.constant 0 : i32
    return %c0_i32, %c0_i32_0 : i32, i32
  }
  func.func @transform_11(%arg0: i32) -> (i32, i32) {
    %c0_i32 = arith.constant 0 : i32
    %c0_i32_0 = arith.constant 0 : i32
    %c0_i32_1 = arith.constant 0 : i32
    return %c0_i32, %c0_i32_0 : i32, i32
  }
  func.func @transform_12(%arg0: i32) -> (i32, i32) {
    %c0_i32 = arith.constant 0 : i32
    %c0_i32_0 = arith.constant 0 : i32
    %c0_i32_1 = arith.constant 0 : i32
    return %c0_i32, %c0_i32_0 : i32, i32
  }
  func.func @transform_13(%arg0: i32) -> (i32, i32, i32) {
    %c0_i32 = arith.constant 0 : i32
    %c0_i32_0 = arith.constant 0 : i32
    %c0_i32_1 = arith.constant 0 : i32
    return %arg0, %c0_i32, %c0_i32_0 : i32, i32, i32
  }
}

</mosaic_0001>

<llo_original>
// kernel: _lambda_.1
$region0: #{_lambda_.1}
  #allocation0 [shape = 'u32[]', space=smem, size = 0x4, offset = 0x4, fixed_abs, tag = 'smem constant byte address 0x4 - core index']
  #allocation1 [shape = 'u32[144,128]{1,0:T(1,128)}', space=vmem, size = 0x12000, scoped, tag = 'internal scratch']
  #allocation2 [shape = 'f32[82,36]{1,0:T(8,128)}', space=vmem, size = 0xb000, scoped, tag = 'scratch operand']
  %s0 = inlined_call_operand.vmem [shape: f32[2,64,4], index: 0, kind: input, shape index: {}]
  %s1 = inlined_call_operand.vmem [shape: f32[64,2], index: 1, kind: input, shape index: {}]
  %s2 = inlined_call_operand.vmem [shape: f32[16,16], index: 2, kind: input, shape index: {}]
  %s3 = inlined_call_operand.vmem [shape: bf16[9,4,16], index: 3, kind: input, shape index: {}]
  %s4 = inlined_call_operand.vmem [shape: f32[1,16], index: 4, kind: input, shape index: {}]
  %s5 = inlined_call_operand.vmem [shape: f32[1,16], index: 5, kind: input, shape index: {}]
  %s6 = inlined_call_operand.vmem [shape: f32[1,16], index: 6, kind: input, shape index: {}]
  %s7 = inlined_call_operand.vmem [shape: bf16[9,20,16], index: 7, kind: input, shape index: {}]
  %s8 = inlined_call_operand.vmem [shape: f32[1,16], index: 8, kind: input, shape index: {}]
  %s9 = inlined_call_operand.vmem [shape: f32[1,16], index: 9, kind: input, shape index: {}]
  %s10 = inlined_call_operand.vmem [shape: f32[1,16], index: 10, kind: input, shape index: {}]
  %s11 = inlined_call_operand.vmem [shape: bf16[8,36], index: 11, kind: input, shape index: {}]
  %s12 = inlined_call_operand.vmem [shape: f32[8,1], index: 12, kind: input, shape index: {}]
  %s13 = inlined_call_operand.vmem [shape: f32[2,8,64], index: 13, kind: output, shape index: {}]
  %s14 = sld [smem:[#allocation0]]
  $region85: #{_lambda_.1} parent=0
    _
  %s16 = ssub.s32 1, %s14
  %s17 = scalar_select 0, %s16, %s14
  loop: start=0, step=1, limit=4
  $region2: #{_lambda_.1} parent=0 // loop_pre_header
    _
  $region3: #{_lambda_.1} parent=0 // loop_header
    %s19 = sphi 0, %s23
    %p20 = scmp.ge.s32.totalorder %s19, 4
    %s29 = sphi 0, %s31
    %s32 = sphi 0, %s29
    %s33 = sphi 0, %s32
    %s49 = sphi 0, %s33
    %s53 = sphi 0, %s53
    %s55 = sphi 0, %s53
    %s56 = sphi 0, %s55
    %s70 = sphi 0, %s56
    %s74 = sphi 0, %s74
    %s76 = sphi 0, %s74
    %s77 = sphi 0, %s76
    %s91 = sphi 0, %s77
    %s95 = sphi 0, %s95
    %s97 = sphi 0, %s95
    %s98 = sphi 0, %s97
    %s112 = sphi 0, %s98
    %s116 = sphi 0, %s116
    %s118 = sphi 0, %s116
    %s119 = sphi 0, %s118
    %s133 = sphi 0, %s119
    %s137 = sphi 0, %s137
    %s139 = sphi 0, %s137
    %s140 = sphi 0, %s139
    %s154 = sphi 0, %s140
    %s158 = sphi 0, %s158
    %s160 = sphi 0, %s158
    %s161 = sphi 0, %s160
    %s175 = sphi 0, %s161
    %s179 = sphi 0, %s179
    %s181 = sphi 0, %s179
    %s182 = sphi 0, %s181
    %s196 = sphi 0, %s182
    %s200 = sphi 0, %s200
    %s202 = sphi 0, %s200
    %s203 = sphi 0, %s202
    %s217 = sphi 0, %s203
    %s221 = sphi 0, %s221
    %s223 = sphi 0, %s221
    %s224 = sphi 0, %s223
    %s238 = sphi 0, %s224
    %s242 = sphi 0, %s242
    %s244 = sphi 0, %s242
    %s245 = sphi 0, %s244
    %s259 = sphi 0, %s245
    %s263 = sphi 0, %s263
    %s265 = sphi 0, %s263
    %s266 = sphi 0, %s265
    %s280 = sphi 0, %s266
    %s284 = sphi 0, %s284
    %s286 = sphi 0, %s284
    %s287 = sphi 0, %s286
    %s301 = sphi 0, %s287
    %s307 = sphi 0, %s309
    %s310 = sphi 0, %s307
    %s311 = sphi 0, %s310
    %s327 = sphi 0, %s311
  $region4: #{_lambda_.1} parent=0 // loop_header_branch
    %22 = sbr.rel (%p20) target = $region8
  $region5: #{_lambda_.1} parent=0 // loop_body
    %s24 = ssub.s32 %s19, 1
    %s25 = ssub.s32 %s19, 2
    %s26 = sadd.s32 %s19, 1
    %s27 = ssub.s32 %s19, %s26
    %p28 = scmp.eq.s32.totalorder %s27, 0
    %s30 = sadd.s32 %s29, 1
    %s31 = scalar_select %p28, %s29, %s30
    %p34 = pneg %p28
    %p35 = scmp.eq.s32.totalorder %s19, 1
    %p36 = por %p34, %p35
    %p37 = scmp.ne.s32.totalorder %s29, %s32
    %p38 = scmp.eq.s32.totalorder %s19, 0
    %p39 = por %p37, %p38
    %p40 = scmp.ne.s32.totalorder %s29, %s32
    %p41 = scmp.eq.s32.totalorder %s24, 1
    %p42 = por %p40, %p41
    %p43 = scmp.ne.s32.totalorder %s32, %s33
    %p44 = scmp.eq.s32.totalorder %s24, 0
    %p45 = por %p43, %p44
    %p46 = scmp.ne.s32.totalorder %s32, %s33
    %p47 = scmp.eq.s32.totalorder %s25, 1
    %p48 = por %p46, %p47
    %p50 = scmp.ne.s32.totalorder %s33, %s49
    %p51 = scmp.eq.s32.totalorder %s25, 0
    %p52 = por %p50, %p51
    %s54 = sadd.s32 %s53, 1
    %p57 = scmp.eq.s32.totalorder %s19, 1
    %p58 = scmp.ne.s32.totalorder %s53, %s55
    %p59 = scmp.eq.s32.totalorder %s19, 0
    %p60 = por %p58, %p59
    %p61 = scmp.ne.s32.totalorder %s53, %s55
    %p62 = scmp.eq.s32.totalorder %s24, 1
    %p63 = por %p61, %p62
    %p64 = scmp.ne.s32.totalorder %s55, %s56
    %p65 = scmp.eq.s32.totalorder %s24, 0
    %p66 = por %p64, %p65
    %p67 = scmp.ne.s32.totalorder %s55, %s56
    %p68 = scmp.eq.s32.totalorder %s25, 1
    %p69 = por %p67, %p68
    %p71 = scmp.ne.s32.totalorder %s56, %s70
    %p72 = scmp.eq.s32.totalorder %s25, 0
    %p73 = por %p71, %p72
    %s75 = sadd.s32 %s74, 1
    %p78 = scmp.eq.s32.totalorder %s19, 1
    %p79 = scmp.ne.s32.totalorder %s74, %s76
    %p80 = scmp.eq.s32.totalorder %s19, 0
    %p81 = por %p79, %p80
    %p82 = scmp.ne.s32.totalorder %s74, %s76
    %p83 = scmp.eq.s32.totalorder %s24, 1
    %p84 = por %p82, %p83
    %p85 = scmp.ne.s32.totalorder %s76, %s77
    %p86 = scmp.eq.s32.totalorder %s24, 0
    %p87 = por %p85, %p86
    %p88 = scmp.ne.s32.totalorder %s76, %s77
    %p89 = scmp.eq.s32.totalorder %s25, 1
    %p90 = por %p88, %p89
    %p92 = scmp.ne.s32.totalorder %s77, %s91
    %p93 = scmp.eq.s32.totalorder %s25, 0
    %p94 = por %p92, %p93
    %s96 = sadd.s32 %s95, 1
    %p99 = scmp.eq.s32.totalorder %s19, 1
    %p100 = scmp.ne.s32.totalorder %s95, %s97
    %p101 = scmp.eq.s32.totalorder %s19, 0
    %p102 = por %p100, %p101
    %p103 = scmp.ne.s32.totalorder %s95, %s97
    %p104 = scmp.eq.s32.totalorder %s24, 1
    %p105 = por %p103, %p104
    %p106 = scmp.ne.s32.totalorder %s97, %s98
    %p107 = scmp.eq.s32.totalorder %s24, 0
    %p108 = por %p106, %p107
    %p109 = scmp.ne.s32.totalorder %s97, %s98
    %p110 = scmp.eq.s32.totalorder %s25, 1
    %p111 = por %p109, %p110
    %p113 = scmp.ne.s32.totalorder %s98, %s112
    %p114 = scmp.eq.s32.totalorder %s25, 0
    %p115 = por %p113, %p114
    %s117 = sadd.s32 %s116, 1
    %p120 = scmp.eq.s32.totalorder %s19, 1
    %p121 = scmp.ne.s32.totalorder %s116, %s118
    %p122 = scmp.eq.s32.totalorder %s19, 0
    %p123 = por %p121, %p122
    %p124 = scmp.ne.s32.totalorder %s116, %s118
    %p125 = scmp.eq.s32.totalorder %s24, 1
    %p126 = por %p124, %p125
    %p127 = scmp.ne.s32.totalorder %s118, %s119
    %p128 = scmp.eq.s32.totalorder %s24, 0
    %p129 = por %p127, %p128
    %p130 = scmp.ne.s32.totalorder %s118, %s119
    %p131 = scmp.eq.s32.totalorder %s25, 1
    %p132 = por %p130, %p131
    %p134 = scmp.ne.s32.totalorder %s119, %s133
    %p135 = scmp.eq.s32.totalorder %s25, 0
    %p136 = por %p134, %p135
    %s138 = sadd.s32 %s137, 1
    %p141 = scmp.eq.s32.totalorder %s19, 1
    %p142 = scmp.ne.s32.totalorder %s137, %s139
    %p143 = scmp.eq.s32.totalorder %s19, 0
    %p144 = por %p142, %p143
    %p145 = scmp.ne.s32.totalorder %s137, %s139
    %p146 = scmp.eq.s32.totalorder %s24, 1
    %p147 = por %p145, %p146
    %p148 = scmp.ne.s32.totalorder %s139, %s140
    %p149 = scmp.eq.s32.totalorder %s24, 0
    %p150 = por %p148, %p149
    %p151 = scmp.ne.s32.totalorder %s139, %s140
    %p152 = scmp.eq.s32.totalorder %s25, 1
    %p153 = por %p151, %p152
    %p155 = scmp.ne.s32.totalorder %s140, %s154
    %p156 = scmp.eq.s32.totalorder %s25, 0
    %p157 = por %p155, %p156
    %s159 = sadd.s32 %s158, 1
    %p162 = scmp.eq.s32.totalorder %s19, 1
    %p163 = scmp.ne.s32.totalorder %s158, %s160
    %p164 = scmp.eq.s32.totalorder %s19, 0
    %p165 = por %p163, %p164
    %p166 = scmp.ne.s32.totalorder %s158, %s160
    %p167 = scmp.eq.s32.totalorder %s24, 1
    %p168 = por %p166, %p167
    %p169 = scmp.ne.s32.totalorder %s160, %s161
    %p170 = scmp.eq.s32.totalorder %s24, 0
    %p171 = por %p169, %p170
    %p172 = scmp.ne.s32.totalorder %s160, %s161
    %p173 = scmp.eq.s32.totalorder %s25, 1
    %p174 = por %p172, %p173
    %p176 = scmp.ne.s32.totalorder %s161, %s175
    %p177 = scmp.eq.s32.totalorder %s25, 0
    %p178 = por %p176, %p177
    %s180 = sadd.s32 %s179, 1
    %p183 = scmp.eq.s32.totalorder %s19, 1
    %p184 = scmp.ne.s32.totalorder %s179, %s181
    %p185 = scmp.eq.s32.totalorder %s19, 0
    %p186 = por %p184, %p185
    %p187 = scmp.ne.s32.totalorder %s179, %s181
    %p188 = scmp.eq.s32.totalorder %s24, 1
    %p189 = por %p187, %p188
    %p190 = scmp.ne.s32.totalorder %s181, %s182
    %p191 = scmp.eq.s32.totalorder %s24, 0
    %p192 = por %p190, %p191
    %p193 = scmp.ne.s32.totalorder %s181, %s182
    %p194 = scmp.eq.s32.totalorder %s25, 1
    %p195 = por %p193, %p194
    %p197 = scmp.ne.s32.totalorder %s182, %s196
    %p198 = scmp.eq.s32.totalorder %s25, 0
    %p199 = por %p197, %p198
    %s201 = sadd.s32 %s200, 1
    %p204 = scmp.eq.s32.totalorder %s19, 1
    %p205 = scmp.ne.s32.totalorder %s200, %s202
    %p206 = scmp.eq.s32.totalorder %s19, 0
    %p207 = por %p205, %p206
    %p208 = scmp.ne.s32.totalorder %s200, %s202
    %p209 = scmp.eq.s32.totalorder %s24, 1
    %p210 = por %p208, %p209
    %p211 = scmp.ne.s32.totalorder %s202, %s203
    %p212 = scmp.eq.s32.totalorder %s24, 0
    %p213 = por %p211, %p212
    %p214 = scmp.ne.s32.totalorder %s202, %s203
    %p215 = scmp.eq.s32.totalorder %s25, 1
    %p216 = por %p214, %p215
    %p218 = scmp.ne.s32.totalorder %s203, %s217
    %p219 = scmp.eq.s32.totalorder %s25, 0
    %p220 = por %p218, %p219
    %s222 = sadd.s32 %s221, 1
    %p225 = scmp.eq.s32.totalorder %s19, 1
    %p226 = scmp.ne.s32.totalorder %s221, %s223
    %p227 = scmp.eq.s32.totalorder %s19, 0
    %p228 = por %p226, %p227
    %p229 = scmp.ne.s32.totalorder %s221, %s223
    %p230 = scmp.eq.s32.totalorder %s24, 1
    %p231 = por %p229, %p230
    %p232 = scmp.ne.s32.totalorder %s223, %s224
    %p233 = scmp.eq.s32.totalorder %s24, 0
    %p234 = por %p232, %p233
    %p235 = scmp.ne.s32.totalorder %s223, %s224
    %p236 = scmp.eq.s32.totalorder %s25, 1
    %p237 = por %p235, %p236
    %p239 = scmp.ne.s32.totalorder %s224, %s238
    %p240 = scmp.eq.s32.totalorder %s25, 0
    %p241 = por %p239, %p240
    %s243 = sadd.s32 %s242, 1
    %p246 = scmp.eq.s32.totalorder %s19, 1
    %p247 = scmp.ne.s32.totalorder %s242, %s244
    %p248 = scmp.eq.s32.totalorder %s19, 0
    %p249 = por %p247, %p248
    %p250 = scmp.ne.s32.totalorder %s242, %s244
    %p251 = scmp.eq.s32.totalorder %s24, 1
    %p252 = por %p250, %p251
    %p253 = scmp.ne.s32.totalorder %s244, %s245
    %p254 = scmp.eq.s32.totalorder %s24, 0
    %p255 = por %p253, %p254
    %p256 = scmp.ne.s32.totalorder %s244, %s245
    %p257 = scmp.eq.s32.totalorder %s25, 1
    %p258 = por %p256, %p257
    %p260 = scmp.ne.s32.totalorder %s245, %s259
    %p261 = scmp.eq.s32.totalorder %s25, 0
    %p262 = por %p260, %p261
    %s264 = sadd.s32 %s263, 1
    %p267 = scmp.eq.s32.totalorder %s19, 1
    %p268 = scmp.ne.s32.totalorder %s263, %s265
    %p269 = scmp.eq.s32.totalorder %s19, 0
    %p270 = por %p268, %p269
    %p271 = scmp.ne.s32.totalorder %s263, %s265
    %p272 = scmp.eq.s32.totalorder %s24, 1
    %p273 = por %p271, %p272
    %p274 = scmp.ne.s32.totalorder %s265, %s266
    %p275 = scmp.eq.s32.totalorder %s24, 0
    %p276 = por %p274, %p275
    %p277 = scmp.ne.s32.totalorder %s265, %s266
    %p278 = scmp.eq.s32.totalorder %s25, 1
    %p279 = por %p277, %p278
    %p281 = scmp.ne.s32.totalorder %s266, %s280
    %p282 = scmp.eq.s32.totalorder %s25, 0
    %p283 = por %p281, %p282
    %s285 = sadd.s32 %s284, 1
    %p288 = scmp.eq.s32.totalorder %s19, 1
    %p289 = scmp.ne.s32.totalorder %s284, %s286
    %p290 = scmp.eq.s32.totalorder %s19, 0
    %p291 = por %p289, %p290
    %p292 = scmp.ne.s32.totalorder %s284, %s286
    %p293 = scmp.eq.s32.totalorder %s24, 1
    %p294 = por %p292, %p293
    %p295 = scmp.ne.s32.totalorder %s286, %s287
    %p296 = scmp.eq.s32.totalorder %s24, 0
    %p297 = por %p295, %p296
    %p298 = scmp.ne.s32.totalorder %s286, %s287
    %p299 = scmp.eq.s32.totalorder %s25, 1
    %p300 = por %p298, %p299
    %p302 = scmp.ne.s32.totalorder %s287, %s301
    %p303 = scmp.eq.s32.totalorder %s25, 0
    %p304 = por %p302, %p303
    %s305 = ssub.s32 %s19, %s26
    %p306 = scmp.eq.s32.totalorder %s305, 0
    %s308 = sadd.s32 %s307, 1
    %s309 = scalar_select %p306, %s307, %s308
    %p312 = pneg %p306
    %p313 = scmp.eq.s32.totalorder %s19, 1
    %p314 = por %p312, %p313
    %p315 = scmp.ne.s32.totalorder %s307, %s310
    %p316 = scmp.eq.s32.totalorder %s19, 0
    %p317 = por %p315, %p316
    %p318 = scmp.ne.s32.totalorder %s307, %s310
    %p319 = scmp.eq.s32.totalorder %s24, 1
    %p320 = por %p318, %p319
    %p321 = scmp.ne.s32.totalorder %s310, %s311
    %p322 = scmp.eq.s32.totalorder %s24, 0
    %p323 = por %p321, %p322
    %p324 = scmp.ne.s32.totalorder %s310, %s311
    %p325 = scmp.eq.s32.totalorder %s25, 1
    %p326 = por %p324, %p325
    %p328 = scmp.ne.s32.totalorder %s311, %s327
    %p329 = scmp.eq.s32.totalorder %s25, 0
    %p330 = por %p328, %p329
    %p331 = scmp.le.s32.totalorder 1, %s19
    %p332 = scmp.lt.s32.totalorder %s19, 3
    %p333 = pnand %p331, %p332
    %p334 = pneg %p333
    // Predicated region
    $region9: #{_lambda_.1} parent=5 // pred_check
      _
    $region10: #{_lambda_.1} parent=5 // pred_check_branch
      %336 = sbr.rel (%p333) target = $region12
    $region11: #{_lambda_.1} parent=5 // pred_region
      %s337 = ssub.s32 %s19, 1
      // Predicated region
      $region13: #{_lambda_.1} parent=11 // pred_check
        %p338 = pneg %p66
      $region14: #{_lambda_.1} parent=11 // pred_check_branch
        %340 = sbr.rel (%p338) target = $region16
      $region15: #{_lambda_.1} parent=11 // pred_region
        _
      $region16: #{_lambda_.1} parent=11 // pred_fallthru
        _
      // Predicated region
      $region17: #{_lambda_.1} parent=11 // pred_check
        %p341 = pneg %p87
      $region18: #{_lambda_.1} parent=11 // pred_check_branch
        %343 = sbr.rel (%p341) target = $region20
      $region19: #{_lambda_.1} parent=11 // pred_region
        _
      $region20: #{_lambda_.1} parent=11 // pred_fallthru
        _
      // Predicated region
      $region21: #{_lambda_.1} parent=11 // pred_check
        %p344 = pneg %p108
      $region22: #{_lambda_.1} parent=11 // pred_check_branch
        %346 = sbr.rel (%p344) target = $region24
      $region23: #{_lambda_.1} parent=11 // pred_region
        _
      $region24: #{_lambda_.1} parent=11 // pred_fallthru
        _
      // Predicated region
      $region25: #{_lambda_.1} parent=11 // pred_check
        %p347 = pneg %p129
      $region26: #{_lambda_.1} parent=11 // pred_check_branch
        %349 = sbr.rel (%p347) target = $region28
      $region27: #{_lambda_.1} parent=11 // pred_region
        _
      $region28: #{_lambda_.1} parent=11 // pred_fallthru
        _
      // Predicated region
      $region29: #{_lambda_.1} parent=11 // pred_check
        %p350 = pneg %p150
      $region30: #{_lambda_.1} parent=11 // pred_check_branch
        %352 = sbr.rel (%p350) target = $region32
      $region31: #{_lambda_.1} parent=11 // pred_region
        _
      $region32: #{_lambda_.1} parent=11 // pred_fallthru
        _
      // Predicated region
      $region33: #{_lambda_.1} parent=11 // pred_check
        %p353 = pneg %p171
      $region34: #{_lambda_.1} parent=11 // pred_check_branch
        %355 = sbr.rel (%p353) target = $region36
      $region35: #{_lambda_.1} parent=11 // pred_region
        _
      $region36: #{_lambda_.1} parent=11 // pred_fallthru
        _
      // Predicated region
      $region37: #{_lambda_.1} parent=11 // pred_check
        %p356 = pneg %p192
      $region38: #{_lambda_.1} parent=11 // pred_check_branch
        %358 = sbr.rel (%p356) target = $region40
      $region39: #{_lambda_.1} parent=11 // pred_region
        _
      $region40: #{_lambda_.1} parent=11 // pred_fallthru
        _
      // Predicated region
      $region41: #{_lambda_.1} parent=11 // pred_check
        %p359 = pneg %p213
      $region42: #{_lambda_.1} parent=11 // pred_check_branch
        %361 = sbr.rel (%p359) target = $region44
      $region43: #{_lambda_.1} parent=11 // pred_region
        _
      $region44: #{_lambda_.1} parent=11 // pred_fallthru
        _
      // Predicated region
      $region45: #{_lambda_.1} parent=11 // pred_check
        %p362 = pneg %p234
      $region46: #{_lambda_.1} parent=11 // pred_check_branch
        %364 = sbr.rel (%p362) target = $region48
      $region47: #{_lambda_.1} parent=11 // pred_region
        _
      $region48: #{_lambda_.1} parent=11 // pred_fallthru
        _
      // Predicated region
      $region49: #{_lambda_.1} parent=11 // pred_check
        %p365 = pneg %p255
      $region50: #{_lambda_.1} parent=11 // pred_check_branch
        %367 = sbr.rel (%p365) target = $region52
      $region51: #{_lambda_.1} parent=11 // pred_region
        _
      $region52: #{_lambda_.1} parent=11 // pred_fallthru
        _
      // Predicated region
      $region53: #{_lambda_.1} parent=11 // pred_check
        %p368 = pneg %p276
      $region54: #{_lambda_.1} parent=11 // pred_check_branch
        %370 = sbr.rel (%p368) target = $region56
      $region55: #{_lambda_.1} parent=11 // pred_region
        _
      $region56: #{_lambda_.1} parent=11 // pred_fallthru
        _
      // Predicated region
      $region57: #{_lambda_.1} parent=11 // pred_check
        %p371 = pneg %p297
      $region58: #{_lambda_.1} parent=11 // pred_check_branch
        %373 = sbr.rel (%p371) target = $region60
      $region59: #{_lambda_.1} parent=11 // pred_region
        _
      $region60: #{_lambda_.1} parent=11 // pred_fallthru
        _
    $region12: #{_lambda_.1} parent=5 // pred_fallthru
      _
    %p374 = scmp.lt.s32.totalorder %s19, 2
    // Predicated region
    $region61: #{_lambda_.1} parent=5 // pred_check
      %p375 = pneg %p374
    $region62: #{_lambda_.1} parent=5 // pred_check_branch
      %377 = sbr.rel (%p375) target = $region64
    $region63: #{_lambda_.1} parent=5 // pred_region
      // Predicated region
      $region65: #{_lambda_.1} parent=63 // pred_check
        %p378 = pneg %p39
      $region66: #{_lambda_.1} parent=63 // pred_check_branch
        %380 = sbr.rel (%p378) target = $region68
      $region67: #{_lambda_.1} parent=63 // pred_region
        %p381 = scmp.lt.s32.totalorder %s19, 1
        %s382 = scalar_select %p381, %s19, 1
        %s383 = smul.addr %s382, 8
        %s384 = smul.addr %s383, 8
        %s385 = scalar_lea.vmem %s0, %s384
      $region68: #{_lambda_.1} parent=63 // pred_fallthru
        _
    $region64: #{_lambda_.1} parent=5 // pred_fallthru
      _
    %p386 = scmp.le.s32.totalorder 1, %s19
    %p387 = scmp.lt.s32.totalorder %s19, 3
    %p388 = pnand %p386, %p387
    %p389 = pneg %p388
    // Predicated region
    $region69: #{_lambda_.1} parent=5 // pred_check
      _
    $region70: #{_lambda_.1} parent=5 // pred_check_branch
      %391 = sbr.rel (%p388) target = $region72
    $region71: #{_lambda_.1} parent=5 // pred_region
      %s392 = ssub.s32 %s19, 1
      %p393 = scmp.lt.s32.totalorder %s24, 1
      %s394 = scalar_select %p393, %s24, 1
      %s395 = smul.addr %s394, 8
      %s396 = smul.addr %s395, 8
      %s397 = scalar_lea.vmem %s0, %s396
      %p398 = pneg %p45
      %p399 = pneg %p42
      %p400 = pneg %p66
      %p401 = pneg %p63
      %p402 = pneg %p87
      %p403 = pneg %p84
      %p404 = pneg %p108
      %p405 = pneg %p105
      %p406 = pneg %p129
      %p407 = pneg %p126
      %p408 = pneg %p150
      %p409 = pneg %p147
      %p410 = pneg %p171
      %p411 = pneg %p168
      %p412 = pneg %p192
      %p413 = pneg %p189
      %p414 = pneg %p213
      %p415 = pneg %p210
      %p416 = pneg %p234
      %p417 = pneg %p231
      %p418 = pneg %p255
      %p419 = pneg %p252
      %p420 = pneg %p276
      %p421 = pneg %p273
      %p422 = pneg %p297
      %p423 = pneg %p294
      %p424 = pneg %p323
      %p425 = pneg %p320
      %p426 = scmp.lt.s32.totalorder %s24, 1
      %s427 = scalar_select %p426, %s24, 1
      %s428 = smul.addr %s427, 8
      %s429 = scalar_lea.vmem %s13, %s428
      %p430 = scmp.lt.s32.totalorder %s24, 1
      %s431 = scalar_select %p430, %s24, 1
      %s432 = smul.addr %s431, 8
      %s433 = smul.addr %s432, 8
      %s434 = scalar_lea.vmem %s0, %s433
      %p435 = scmp.lt.s32.totalorder %s24, 1
      %s436 = scalar_select %p435, %s24, 1
      %s437 = smul.addr %s436, 8
      %s438 = scalar_lea.vmem %s13, %s437
      %v440 = vld [vmem:[%s1] sm:$0xff]
      %v441 = vld [vmem:[%s1 + $0x8] sm:$0xff]
      %v442 = vld [vmem:[%s1 + $0x10] sm:$0xff]
      %v443 = vld [vmem:[%s1 + $0x18] sm:$0xff]
      %v444 = vld [vmem:[%s1 + $0x20] sm:$0xff]
      %v445 = vld [vmem:[%s1 + $0x28] sm:$0xff]
      %v446 = vld [vmem:[%s1 + $0x30] sm:$0xff]
      %v447 = vld [vmem:[%s1 + $0x38] sm:$0xff]
      %v448 = vld [vmem:[%s2] sm:$0xff]
      %v449 = vld [vmem:[%s2 + $0x8] sm:$0xff]
      %vm450 = vcmask 293888
      %451 = vst.msk [vmem:[#allocation2] sm:$0xff] %vm450, 0.0
      %vm452 = vcmask 286720
      %453 = vst.msk [vmem:[#allocation2 + $0x8] sm:$0x1] %vm452, 0.0
      %454 = vst.msk [vmem:[#allocation2 + $0x49] sm:$0xff] %vm450, 0.0
      %455 = vst.msk [vmem:[#allocation2 + $0x51] sm:$0x1] %vm452, 0.0
      %v456 = vld [vmem:[%s434] sm:$0xff]
      %v457 = vld [vmem:[%s434 + $0x8] sm:$0xff]
      %v458 = vld [vmem:[%s434 + $0x10] sm:$0xff]
      %v459 = vld [vmem:[%s434 + $0x18] sm:$0xff]
      %v460 = vld [vmem:[%s434 + $0x20] sm:$0xff]
      %v461 = vld [vmem:[%s434 + $0x28] sm:$0xff]
      %v462 = vld [vmem:[%s434 + $0x30] sm:$0xff]
      %v463 = vld [vmem:[%s434 + $0x38] sm:$0xff]
      %vm464 = vcmask 31744
      %465 = vst.msk [vmem:[#allocation2 + $0x9] sm:$0xff] %vm464, %v456
      %466 = vst.msk [vmem:[#allocation2 + $0x11] sm:$0xff] %vm464, %v457
      %467 = vst.msk [vmem:[#allocation2 + $0x19] sm:$0xff] %vm464, %v458
      %468 = vst.msk [vmem:[#allocation2 + $0x21] sm:$0xff] %vm464, %v459
      %469 = vst.msk [vmem:[#allocation2 + $0x29] sm:$0xff] %vm464, %v460
      %470 = vst.msk [vmem:[#allocation2 + $0x31] sm:$0xff] %vm464, %v461
      %471 = vst.msk [vmem:[#allocation2 + $0x39] sm:$0xff] %vm464, %v462
      %472 = vst.msk [vmem:[#allocation2 + $0x41] sm:$0xff] %vm464, %v463
      %v473 = vld [vmem:[#allocation2] sm:$0xff]
      %v474 = vld [vmem:[#allocation2 + $0x8] sm:$0xff]
      %v475 = vld [vmem:[#allocation2 + $0x10] sm:$0xff]
      %v476 = vld [vmem:[#allocation2 + $0x18] sm:$0xff]
      %v477 = vld [vmem:[#allocation2 + $0x20] sm:$0xff]
      %v478 = vld [vmem:[#allocation2 + $0x28] sm:$0xff]
      %v479 = vld [vmem:[#allocation2 + $0x30] sm:$0xff]
      %v480 = vld [vmem:[#allocation2 + $0x38] sm:$0xff]
      %482 = vset.pattern.permute.xlu0 0
      %483 = vperm.xlu0 %482, %v440
      %v484 = vpop.permute.xlu0 %483
      %487 = vset.pattern.permute.xlu0 0
      %488 = vperm.xlu0 %487, %v441
      %v489 = vpop.permute.xlu0 %488
      %492 = vset.pattern.permute.xlu0 0
      %493 = vperm.xlu0 %492, %v442
      %v494 = vpop.permute.xlu0 %493
      %497 = vset.pattern.permute.xlu0 0
      %498 = vperm.xlu0 %497, %v443
      %v499 = vpop.permute.xlu0 %498
      %502 = vset.pattern.permute.xlu0 0
      %503 = vperm.xlu0 %502, %v444
      %v504 = vpop.permute.xlu0 %503
      %507 = vset.pattern.permute.xlu0 0
      %508 = vperm.xlu0 %507, %v445
      %v509 = vpop.permute.xlu0 %508
      %512 = vset.pattern.permute.xlu0 0
      %513 = vperm.xlu0 %512, %v446
      %v514 = vpop.permute.xlu0 %513
      %517 = vset.pattern.permute.xlu0 0
      %518 = vperm.xlu0 %517, %v447
      %v519 = vpop.permute.xlu0 %518
      %v521 = vmul.f32 %v473, %v484
      %v522 = vmul.f32 %v474, %v489
      %v523 = vmul.f32 %v475, %v494
      %v524 = vmul.f32 %v476, %v499
      %v525 = vmul.f32 %v477, %v504
      %v526 = vmul.f32 %v478, %v509
      %v527 = vmul.f32 %v479, %v514
      %v528 = vmul.f32 %v480, %v519
      %v529 = vpack.c.bf16 %v522, %v521
      %v530 = vpack.c.bf16 %v524, %v523
      %v531 = vpack.c.bf16 %v526, %v525
      %v532 = vpack.c.bf16 %v528, %v527
      %v533 = vld [vmem:[%s3] sm:$0x3]
      %v534 = vld [vmem:[#allocation2 + $0x1] sm:$0xff]
      %v535 = vld [vmem:[#allocation2 + $0x9] sm:$0xff]
      %v536 = vld [vmem:[#allocation2 + $0x11] sm:$0xff]
      %v537 = vld [vmem:[#allocation2 + $0x19] sm:$0xff]
      %v538 = vld [vmem:[#allocation2 + $0x21] sm:$0xff]
      %v539 = vld [vmem:[#allocation2 + $0x29] sm:$0xff]
      %v540 = vld [vmem:[#allocation2 + $0x31] sm:$0xff]
      %v541 = vld [vmem:[#allocation2 + $0x39] sm:$0xff]
      %v542 = vpack.c.bf16 %v535, %v534
      %v543 = vpack.c.bf16 %v537, %v536
      %v544 = vpack.c.bf16 %v539, %v538
      %v545 = vpack.c.bf16 %v541, %v540
      %s546 = scalar_lea.vmem %s3, 2
      %v547 = vld [vmem:[%s546] sm:$0x3]
      %v549 = vsel %vm464, %v542, 0
      %v552 = vsel %vm464, %v543, 0
      %v555 = vsel %vm464, %v544, 0
      %v558 = vsel %vm464, %v545, 0
      %vm560 = vcmask 1041408
      %v562 = vsel %vm560, %v547, 0
      %564 = vmatprep.subr.bf16.mxu0 0
      %565 = vmatpush1.bf16.msra.mxu0 %v562
      %566 = vmatprep.subr.bf16.mxu0 0
      %567 = vmatpush1.bf16.msra.mxu0 0
      %568 = vmatprep.subr.bf16.mxu0 0
      %569 = vmatpush1.bf16.msra.mxu0 0
      %570 = vmatprep.subr.bf16.mxu0 0
      %571 = vmatpush1.bf16.msra.mxu0 0
      %572 = vmatprep.subr.bf16.mxu0 0
      %573 = vmatpush1.bf16.msra.mxu0 0
      %574 = vmatprep.subr.bf16.mxu0 0
      %575 = vmatpush1.bf16.msra.mxu0 0
      %576 = vmatprep.subr.bf16.mxu0 0
      %577 = vmatpush1.bf16.msra.mxu0 0
      %578 = vmatprep.subr.bf16.mxu0 0
      %579 = vmatpush1.bf16.msra.mxu0 0
      %580 = vmatprep.subr.bf16.mxu0 0
      %581 = vmatpush1.bf16.msra.mxu0 0
      %582 = vmatprep.subr.bf16.mxu0 0
      %583 = vmatpush1.bf16.msra.mxu0 0
      %584 = vmatprep.subr.bf16.mxu0 0
      %585 = vmatpush1.bf16.msra.mxu0 0
      %586 = vmatprep.subr.bf16.mxu0 0
      %587 = vmatpush1.bf16.msra.mxu0 0
      %588 = vmatprep.subr.bf16.mxu0 0
      %589 = vmatpush1.bf16.msra.mxu0 0
      %590 = vmatprep.subr.bf16.mxu0 0
      %591 = vmatpush1.bf16.msra.mxu0 0
      %592 = vmatprep.subr.bf16.mxu0 0
      %593 = vmatpush1.bf16.msra.mxu0 0
      %594 = vmatprep.subr.bf16.mxu0 0
      %595 = vmatpush1.bf16.msra.mxu0 0
      %596 = vmatprep.mubr.bf16.mxu0 0
      %597 = vmatmul.mubr.bf16.gmra.mrb[0].mxu0 %v549
      %v598 = vpop.f32.mrb[0].mxu0
      %v599 = vadd.f32 0.0, %v598
      %v600 = vpop.f32.mrb[0].mxu0
      %v601 = vpop.f32.mrb[0].mxu0
      %v602 = vadd.f32 0.0, %v601
      %v603 = vpop.f32.mrb[0].mxu0
      %604 = vmatprep.mubr.bf16.mxu0 0
      %605 = vmatmul.mubr.bf16.gmra.mrb[0].mxu0 %v552
      %v606 = vpop.f32.mrb[0].mxu0
      %v607 = vadd.f32 0.0, %v606
      %v608 = vpop.f32.mrb[0].mxu0
      %v609 = vpop.f32.mrb[0].mxu0
      %v610 = vadd.f32 0.0, %v609
      %v611 = vpop.f32.mrb[0].mxu0
      %612 = vmatprep.mubr.bf16.mxu0 0
      %613 = vmatmul.mubr.bf16.gmra.mrb[0].mxu0 %v555
      %v614 = vpop.f32.mrb[0].mxu0
      %v615 = vadd.f32 0.0, %v614
      %v616 = vpop.f32.mrb[0].mxu0
      %v617 = vpop.f32.mrb[0].mxu0
      %v618 = vadd.f32 0.0, %v617
      %v619 = vpop.f32.mrb[0].mxu0
      %620 = vmatprep.mubr.bf16.mxu0 0
      %621 = vmatmul.mubr.bf16.gmra.mrb[0].mxu0 %v558
      %v622 = vpop.f32.mrb[0].mxu0
      %v623 = vadd.f32 0.0, %v622
      %v624 = vpop.f32.mrb[0].mxu0
      %v625 = vpop.f32.mrb[0].mxu0
      %v626 = vadd.f32 0.0, %v625
      %v627 = vpop.f32.mrb[0].mxu0
      %628 = vdwg.mxu0
      %v630 = vsel %vm464, %v529, 0
      %v633 = vsel %vm464, %v530, 0
      %v636 = vsel %vm464, %v531, 0
      %v639 = vsel %vm464, %v532, 0
      %v642 = vsel %vm560, %v533, 0
      %644 = vmatprep.subr.bf16.mxu0 0
      %645 = vmatpush1.bf16.msra.mxu0 %v642
      %646 = vmatprep.subr.bf16.mxu0 0
      %647 = vmatpush1.bf16.msra.mxu0 0
      %648 = vmatprep.subr.bf16.mxu0 0
      %649 = vmatpush1.bf16.msra.mxu0 0
      %650 = vmatprep.subr.bf16.mxu0 0
      %651 = vmatpush1.bf16.msra.mxu0 0
      %652 = vmatprep.subr.bf16.mxu0 0
      %653 = vmatpush1.bf16.msra.mxu0 0
      %654 = vmatprep.subr.bf16.mxu0 0
      %655 = vmatpush1.bf16.msra.mxu0 0
      %656 = vmatprep.subr.bf16.mxu0 0
      %657 = vmatpush1.bf16.msra.mxu0 0
      %658 = vmatprep.subr.bf16.mxu0 0
      %659 = vmatpush1.bf16.msra.mxu0 0
      %660 = vmatprep.subr.bf16.mxu0 0
      %661 = vmatpush1.bf16.msra.mxu0 0
      %662 = vmatprep.subr.bf16.mxu0 0
      %663 = vmatpush1.bf16.msra.mxu0 0
      %664 = vmatprep.subr.bf16.mxu0 0
      %665 = vmatpush1.bf16.msra.mxu0 0
      %666 = vmatprep.subr.bf16.mxu0 0
      %667 = vmatpush1.bf16.msra.mxu0 0
      %668 = vmatprep.subr.bf16.mxu0 0
      %669 = vmatpush1.bf16.msra.mxu0 0
      %670 = vmatprep.subr.bf16.mxu0 0
      %671 = vmatpush1.bf16.msra.mxu0 0
      %672 = vmatprep.subr.bf16.mxu0 0
      %673 = vmatpush1.bf16.msra.mxu0 0
      %674 = vmatprep.subr.bf16.mxu0 0
      %675 = vmatpush1.bf16.msra.mxu0 0
      %676 = vmatprep.mubr.bf16.mxu0 0
      %677 = vmatmul.mubr.bf16.gmra.mrb[0].mxu0 %v630
      %v678 = vpop.f32.mrb[0].mxu0
      %v679 = vadd.f32 %v599, %v678
      %v680 = vpop.f32.mrb[0].mxu0
      %v681 = vpop.f32.mrb[0].mxu0
      %v682 = vadd.f32 %v602, %v681
      %v683 = vpop.f32.mrb[0].mxu0
      %684 = vmatprep.mubr.bf16.mxu0 0
      %685 = vmatmul.mubr.bf16.gmra.mrb[0].mxu0 %v633
      %v686 = vpop.f32.mrb[0].mxu0
      %v687 = vadd.f32 %v607, %v686
      %v688 = vpop.f32.mrb[0].mxu0
      %v689 = vpop.f32.mrb[0].mxu0
      %v690 = vadd.f32 %v610, %v689
      %v691 = vpop.f32.mrb[0].mxu0
      %692 = vmatprep.mubr.bf16.mxu0 0
      %693 = vmatmul.mubr.bf16.gmra.mrb[0].mxu0 %v636
      %v694 = vpop.f32.mrb[0].mxu0
      %v695 = vadd.f32 %v615, %v694
      %v696 = vpop.f32.mrb[0].mxu0
      %v697 = vpop.f32.mrb[0].mxu0
      %v698 = vadd.f32 %v618, %v697
      %v699 = vpop.f32.mrb[0].mxu0
      %700 = vmatprep.mubr.bf16.mxu0 0
      %701 = vmatmul.mubr.bf16.gmra.mrb[0].mxu0 %v639
      %v702 = vpop.f32.mrb[0].mxu0
      %v703 = vadd.f32 %v623, %v702
      %v704 = vpop.f32.mrb[0].mxu0
      %v705 = vpop.f32.mrb[0].mxu0
      %v706 = vadd.f32 %v626, %v705
      %v707 = vpop.f32.mrb[0].mxu0
      %708 = vdwg.mxu0
      %v709 = vld [vmem:[#allocation2 + $0x2] sm:$0xff]
      %v710 = vld [vmem:[#allocation2 + $0xa] sm:$0xff]
      %v711 = vld [vmem:[#allocation2 + $0x12] sm:$0xff]
      %v712 = vld [vmem:[#allocation2 + $0x1a] sm:$0xff]
      %v713 = vld [vmem:[#allocation2 + $0x22] sm:$0xff]
      %v714 = vld [vmem:[#allocation2 + $0x2a] sm:$0xff]
      %v715 = vld [vmem:[#allocation2 + $0x32] sm:$0xff]
      %v716 = vld [vmem:[#allocation2 + $0x3a] sm:$0xff]
      %717 = vset.pattern.permute.xlu0 1
      %718 = vperm.xlu0 %717, %v440
      %v719 = vpop.permute.xlu0 %718
      %721 = vset.pattern.permute.xlu0 1
      %722 = vperm.xlu0 %721, %v441
      %v723 = vpop.permute.xlu0 %722
      %725 = vset.pattern.permute.xlu0 1
      %726 = vperm.xlu0 %725, %v442
      %v727 = vpop.permute.xlu0 %726
      %729 = vset.pattern.permute.xlu0 1
      %730 = vperm.xlu0 %729, %v443
      %v731 = vpop.permute.xlu0 %730
      %733 = vset.pattern.permute.xlu0 1
      %734 = vperm.xlu0 %733, %v444
      %v735 = vpop.permute.xlu0 %734
      %737 = vset.pattern.permute.xlu0 1
      %738 = vperm.xlu0 %737, %v445
      %v739 = vpop.permute.xlu0 %738
      %741 = vset.pattern.permute.xlu0 1
      %742 = vperm.xlu0 %741, %v446
      %v743 = vpop.permute.xlu0 %742
      %745 = vset.pattern.permute.xlu0 1
      %746 = vperm.xlu0 %745, %v447
      %v747 = vpop.permute.xlu0 %746
      %v749 = vmul.f32 %v709, %v719
      %v750 = vmul.f32 %v710, %v723
      %v751 = vmul.f32 %v711, %v727
      %v752 = vmul.f32 %v712, %v731
      %v753 = vmul.f32 %v713, %v735
      %v754 = vmul.f32 %v714, %v739
      %v755 = vmul.f32 %v715, %v743
      %v756 = vmul.f32 %v716, %v747
      %v757 = vpack.c.bf16 %v750, %v749
      %v758 = vpack.c.bf16 %v752, %v751
      %v759 = vpack.c.bf16 %v754, %v753
      %v760 = vpack.c.bf16 %v756, %v755
      %s761 = scalar_lea.vmem %s3, 4
      %v762 = vld [vmem:[%s761] sm:$0x3]
      %v764 = vsel %vm464, %v757, 0
      %v767 = vsel %vm464, %v758, 0
      %v770 = vsel %vm464, %v759, 0
      %v773 = vsel %vm464, %v760, 0
      %v776 = vsel %vm560, %v762, 0
      %778 = vmatprep.subr.bf16.mxu0 0
      %779 = vmatpush1.bf16.msra.mxu0 %v776
      %780 = vmatprep.subr.bf16.mxu0 0
      %781 = vmatpush1.bf16.msra.mxu0 0
      %782 = vmatprep.subr.bf16.mxu0 0
      %783 = vmatpush1.bf16.msra.mxu0 0
      %784 = vmatprep.subr.bf16.mxu0 0
      %785 = vmatpush1.bf16.msra.mxu0 0
      %786 = vmatprep.subr.bf16.mxu0 0
      %787 = vmatpush1.bf16.msra.mxu0 0
      %788 = vmatprep.subr.bf16.mxu0 0
      %789 = vmatpush1.bf16.msra.mxu0 0
      %790 = vmatprep.subr.bf16.mxu0 0
      %791 = vmatpush1.bf16.msra.mxu0 0
      %792 = vmatprep.subr.bf16.mxu0 0
      %793 = vmatpush1.bf16.msra.mxu0 0
      %794 = vmatprep.subr.bf16.mxu0 0
      %795 = vmatpush1.bf16.msra.mxu0 0
      %796 = vmatprep.subr.bf16.mxu0 0
      %797 = vmatpush1.bf16.msra.mxu0 0
      %798 = vmatprep.subr.bf16.mxu0 0
      %799 = vmatpush1.bf16.msra.mxu0 0
      %800 = vmatprep.subr.bf16.mxu0 0
      %801 = vmatpush1.bf16.msra.mxu0 0
      %802 = vmatprep.subr.bf16.mxu0 0
      %803 = vmatpush1.bf16.msra.mxu0 0
      %804 = vmatprep.subr.bf16.mxu0 0
      %805 = vmatpush1.bf16.msra.mxu0 0
      %806 = vmatprep.subr.bf16.mxu0 0
      %807 = vmatpush1.bf16.msra.mxu0 0
      %808 = vmatprep.subr.bf16.mxu0 0
      %809 = vmatpush1.bf16.msra.mxu0 0
      %810 = vmatprep.mubr.bf16.mxu0 0
      %811 = vmatmul.mubr.bf16.gmra.mrb[0].mxu0 %v764
      %v812 = vpop.f32.mrb[0].mxu0
      %v813 = vadd.f32 0.0, %v812
      %v814 = vpop.f32.mrb[0].mxu0
      %v815 = vpop.f32.mrb[0].mxu0
      %v816 = vadd.f32 0.0, %v815
      %v817 = vpop.f32.mrb[0].mxu0
      %818 = vmatprep.mubr.bf16.mxu0 0
      %819 = vmatmul.mubr.bf16.gmra.mrb[0].mxu0 %v767
      %v820 = vpop.f32.mrb[0].mxu0
      %v821 = vadd.f32 0.0, %v820
      %v822 = vpop.f32.mrb[0].mxu0
      %v823 = vpop.f32.mrb[0].mxu0
      %v824 = vadd.f32 0.0, %v823
      %v825 = vpop.f32.mrb[0].mxu0
      %826 = vmatprep.mubr.bf16.mxu0 0
      %827 = vmatmul.mubr.bf16.gmra.mrb[0].mxu0 %v770
      %v828 = vpop.f32.mrb[0].mxu0
      %v829 = vadd.f32 0.0, %v828
      %v830 = vpop.f32.mrb[0].mxu0
      %v831 = vpop.f32.mrb[0].mxu0
      %v832 = vadd.f32 0.0, %v831
      %v833 = vpop.f32.mrb[0].mxu0
      %834 = vmatprep.mubr.bf16.mxu0 0
      %835 = vmatmul.mubr.bf16.gmra.mrb[0].mxu0 %v773
      %v836 = vpop.f32.mrb[0].mxu0
      %v837 = vadd.f32 0.0, %v836
      %v838 = vpop.f32.mrb[0].mxu0
      %v839 = vpop.f32.mrb[0].mxu0
      %v840 = vadd.f32 0.0, %v839
      %v841 = vpop.f32.mrb[0].mxu0
      %842 = vdwg.mxu0
      %v843 = vadd.f32 %v679, %v813
      %v844 = vadd.f32 %v682, %v816
      %v845 = vadd.f32 %v687, %v821
      %v846 = vadd.f32 %v690, %v824
      %v847 = vadd.f32 %v695, %v829
      %v848 = vadd.f32 %v698, %v832
      %v849 = vadd.f32 %v703, %v837
      %v850 = vadd.f32 %v706, %v840
      %v851 = vld [vmem:[#allocation2 + $0x8] sm:$0xff]
      %v852 = vld [vmem:[#allocation2 + $0x10] sm:$0xff]
      %v853 = vld [vmem:[#allocation2 + $0x18] sm:$0xff]
      %v854 = vld [vmem:[#allocation2 + $0x20] sm:$0xff]
      %v855 = vld [vmem:[#allocation2 + $0x28] sm:$0xff]
      %v856 = vld [vmem:[#allocation2 + $0x30] sm:$0xff]
      %v857 = vld [vmem:[#allocation2 + $0x38] sm:$0xff]
      %v858 = vld [vmem:[#allocation2 + $0x40] sm:$0xff]
      %v859 = vmul.f32 %v851, %v484
      %v860 = vmul.f32 %v852, %v489
      %v861 = vmul.f32 %v853, %v494
      %v862 = vmul.f32 %v854, %v499
      %v863 = vmul.f32 %v855, %v504
      %v864 = vmul.f32 %v856, %v509
      %v865 = vmul.f32 %v857, %v514
      %v866 = vmul.f32 %v858, %v519
      %v867 = vpack.c.bf16 %v860, %v859
      %v868 = vpack.c.bf16 %v862, %v861
      %v869 = vpack.c.bf16 %v864, %v863
      %v870 = vpack.c.bf16 %v866, %v865
      %s871 = scalar_lea.vmem %s3, 6
      %v872 = vld [vmem:[%s871] sm:$0x3]
      %v873 = vld [vmem:[#allocation2 + $0x9] sm:$0xff]
      %v874 = vld [vmem:[#allocation2 + $0x11] sm:$0xff]
      %v875 = vld [vmem:[#allocation2 + $0x19] sm:$0xff]
      %v876 = vld [vmem:[#allocation2 + $0x21] sm:$0xff]
      %v877 = vld [vmem:[#allocation2 + $0x29] sm:$0xff]
      %v878 = vld [vmem:[#allocation2 + $0x31] sm:$0xff]
      %v879 = vld [vmem:[#allocation2 + $0x39] sm:$0xff]
      %v880 = vld [vmem:[#allocation2 + $0x41] sm:$0xff]
      %v881 = vpack.c.bf16 %v874, %v873
      %v882 = vpack.c.bf16 %v876, %v875
      %v883 = vpack.c.bf16 %v878, %v877
      %v884 = vpack.c.bf16 %v880, %v879
      %s885 = scalar_lea.vmem %s3, 8
      %v886 = vld [vmem:[%s885] sm:$0x3]
      %v888 = vsel %vm464, %v881, 0
      %v891 = vsel %vm464, %v882, 0
      %v894 = vsel %vm464, %v883, 0
      %v897 = vsel %vm464, %v884, 0
      %v900 = vsel %vm560, %v886, 0
      %902 = vmatprep.subr.bf16.mxu0 0
      %903 = vmatpush1.bf16.msra.mxu0 %v900
      %904 = vmatprep.subr.bf16.mxu0 0
      %905 = vmatpush1.bf16.msra.mxu0 0
      %906 = vmatprep.subr.bf16.mxu0 0
      %907 = vmatpush1.bf16.msra.mxu0 0
      %908 = vmatprep.subr.bf16.mxu0 0
      %909 = vmatpush1.bf16.msra.mxu0 0
      %910 = vmatprep.subr.bf16.mxu0 0
      %911 = vmatpush1.bf16.msra.mxu0 0
      %912 = vmatprep.subr.bf16.mxu0 0
      %913 = vmatpush1.bf16.msra.mxu0 0
      %914 = vmatprep.subr.bf16.mxu0 0
      %915 = vmatpush1.bf16.msra.mxu0 0
      %916 = vmatprep.subr.bf16.mxu0 0
      %917 = vmatpush1.bf16.msra.mxu0 0
      %918 = vmatprep.subr.bf16.mxu0 0
      %919 = vmatpush1.bf16.msra.mxu0 0
      %920 = vmatprep.subr.bf16.mxu0 0
      %921 = vmatpush1.bf16.msra.mxu0 0
      %922 = vmatprep.subr.bf16.mxu0 0
      %923 = vmatpush1.bf16.msra.mxu0 0
      %924 = vmatprep.subr.bf16.mxu0 0
      %925 = vmatpush1.bf16.msra.mxu0 0
      %926 = vmatprep.subr.bf16.mxu0 0
      %927 = vmatpush1.bf16.msra.mxu0 0
      %928 = vmatprep.subr.bf16.mxu0 0
      %929 = vmatpush1.bf16.msra.mxu0 0
      %930 = vmatprep.subr.bf16.mxu0 0
      %931 = vmatpush1.bf16.msra.mxu0 0
      %932 = vmatprep.subr.bf16.mxu0 0
      %933 = vmatpush1.bf16.msra.mxu0 0
      %934 = vmatprep.mubr.bf16.mxu0 0
      %935 = vmatmul.mubr.bf16.gmra.mrb[0].mxu0 %v888
      %v936 = vpop.f32.mrb[0].mxu0
      %v937 = vadd.f32 0.0, %v936
      %v938 = vpop.f32.mrb[0].mxu0
      %v939 = vpop.f32.mrb[0].mxu0
      %v940 = vadd.f32 0.0, %v939
      %v941 = vpop.f32.mrb[0].mxu0
      %942 = vmatprep.mubr.bf16.mxu0 0
      %943 = vmatmul.mubr.bf16.gmra.mrb[0].mxu0 %v891
      %v944 = vpop.f32.mrb[0].mxu0
      %v945 = vadd.f32 0.0, %v944
      %v946 = vpop.f32.mrb[0].mxu0
      %v947 = vpop.f32.mrb[0].mxu0
      %v948 = vadd.f32 0.0, %v947
      %v949 = vpop.f32.mrb[0].mxu0
      %950 = vmatprep.mubr.bf16.mxu0 0
      %951 = vmatmul.mubr.bf16.gmra.mrb[0].mxu0 %v894
      %v952 = vpop.f32.mrb[0].mxu0
      %v953 = vadd.f32 0.0, %v952
      %v954 = vpop.f32.mrb[0].mxu0
      %v955 = vpop.f32.mrb[0].mxu0
      %v956 = vadd.f32 0.0, %v955
      %v957 = vpop.f32.mrb[0].mxu0
      %958 = vmatprep.mubr.bf16.mxu0 0
      %959 = vmatmul.mubr.bf16.gmra.mrb[0].mxu0 %v897
      %v960 = vpop.f32.mrb[0].mxu0
      %v961 = vadd.f32 0.0, %v960
      %v962 = vpop.f32.mrb[0].mxu0
      %v963 = vpop.f32.mrb[0].mxu0
      %v964 = vadd.f32 0.0, %v963
      %v965 = vpop.f32.mrb[0].mxu0
      %966 = vdwg.mxu0
      %v968 = vsel %vm464, %v867, 0
      %v971 = vsel %vm464, %v868, 0
      %v974 = vsel %vm464, %v869, 0
      %v977 = vsel %vm464, %v870, 0
      %v980 = vsel %vm560, %v872, 0
      %982 = vmatprep.subr.bf16.mxu0 0
      %983 = vmatpush1.bf16.msra.mxu0 %v980
      %984 = vmatprep.subr.bf16.mxu0 0
      %985 = vmatpush1.bf16.msra.mxu0 0
      %986 = vmatprep.subr.bf16.mxu0 0
      %987 = vmatpush1.bf16.msra.mxu0 0
      %988 = vmatprep.subr.bf16.mxu0 0
      %989 = vmatpush1.bf16.msra.mxu0 0
      %990 = vmatprep.subr.bf16.mxu0 0
      %991 = vmatpush1.bf16.msra.mxu0 0
      %992 = vmatprep.subr.bf16.mxu0 0
      %993 = vmatpush1.bf16.msra.mxu0 0
      %994 = vmatprep.subr.bf16.mxu0 0
      %995 = vmatpush1.bf16.msra.mxu0 0
      %996 = vmatprep.subr.bf16.mxu0 0
      %997 = vmatpush1.bf16.msra.mxu0 0
      %998 = vmatprep.subr.bf16.mxu0 0
      %999 = vmatpush1.bf16.msra.mxu0 0
      %1000 = vmatprep.subr.bf16.mxu0 0
      %1001 = vmatpush1.bf16.msra.mxu0 0
      %1002 = vmatprep.subr.bf16.mxu0 0
      %1003 = vmatpush1.bf16.msra.mxu0 0
      %1004 = vmatprep.subr.bf16.mxu0 0
      %1005 = vmatpush1.bf16.msra.mxu0 0
      %1006 = vmatprep.subr.bf16.mxu0 0
      %1007 = vmatpush1.bf16.msra.mxu0 0
      %1008 = vmatprep.subr.bf16.mxu0 0
      %1009 = vmatpush1.bf16.msra.mxu0 0
      %1010 = vmatprep.subr.bf16.mxu0 0
      %1011 = vmatpush1.bf16.msra.mxu0 0
      %1012 = vmatprep.subr.bf16.mxu0 0
      %1013 = vmatpush1.bf16.msra.mxu0 0
      %1014 = vmatprep.mubr.bf16.mxu0 0
      %1015 = vmatmul.mubr.bf16.gmra.mrb[0].mxu0 %v968
      %v1016 = vpop.f32.mrb[0].mxu0
      %v1017 = vadd.f32 %v937, %v1016
      %v1018 = vpop.f32.mrb[0].mxu0
      %v1019 = vpop.f32.mrb[0].mxu0
      %v1020 = vadd.f32 %v940, %v1019
      %v1021 = vpop.f32.mrb[0].mxu0
      %1022 = vmatprep.mubr.bf16.mxu0 0
      %1023 = vmatmul.mubr.bf16.gmra.mrb[0].mxu0 %v971
      %v1024 = vpop.f32.mrb[0].mxu0
      %v1025 = vadd.f32 %v945, %v1024
      %v1026 = vpop.f32.mrb[0].mxu0
      %v1027 = vpop.f32.mrb[0].mxu0
      %v1028 = vadd.f32 %v948, %v1027
      %v1029 = vpop.f32.mrb[0].mxu0
      %1030 = vmatprep.mubr.bf16.mxu0 0
      %1031 = vmatmul.mubr.bf16.gmra.mrb[0].mxu0 %v974
      %v1032 = vpop.f32.mrb[0].mxu0
      %v1033 = vadd.f32 %v953, %v1032
      %v1034 = vpop.f32.mrb[0].mxu0
      %v1035 = vpop.f32.mrb[0].mxu0
      %v1036 = vadd.f32 %v956, %v1035
      %v1037 = vpop.f32.mrb[0].mxu0
      %1038 = vmatprep.mubr.bf16.mxu0 0
      %1039 = vmatmul.mubr.bf16.gmra.mrb[0].mxu0 %v977
      %v1040 = vpop.f32.mrb[0].mxu0
      %v1041 = vadd.f32 %v961, %v1040
      %v1042 = vpop.f32.mrb[0].mxu0
      %v1043 = vpop.f32.mrb[0].mxu0
      %v1044 = vadd.f32 %v964, %v1043
      %v1045 = vpop.f32.mrb[0].mxu0
      %1046 = vdwg.mxu0
      %v1047 = vld [vmem:[#allocation2 + $0xa] sm:$0xff]
      %v1048 = vld [vmem:[#allocation2 + $0x12] sm:$0xff]
      %v1049 = vld [vmem:[#allocation2 + $0x1a] sm:$0xff]
      %v1050 = vld [vmem:[#allocation2 + $0x22] sm:$0xff]
      %v1051 = vld [vmem:[#allocation2 + $0x2a] sm:$0xff]
      %v1052 = vld [vmem:[#allocation2 + $0x32] sm:$0xff]
      %v1053 = vld [vmem:[#allocation2 + $0x3a] sm:$0xff]
      %v1054 = vld [vmem:[#allocation2 + $0x42] sm:$0xff]
      %v1055 = vmul.f32 %v1047, %v719
      %v1056 = vmul.f32 %v1048, %v723
      %v1057 = vmul.f32 %v1049, %v727
      %v1058 = vmul.f32 %v1050, %v731
      %v1059 = vmul.f32 %v1051, %v735
      %v1060 = vmul.f32 %v1052, %v739
      %v1061 = vmul.f32 %v1053, %v743
      %v1062 = vmul.f32 %v1054, %v747
      %v1063 = vpack.c.bf16 %v1056, %v1055
      %v1064 = vpack.c.bf16 %v1058, %v1057
      %v1065 = vpack.c.bf16 %v1060, %v1059
      %v1066 = vpack.c.bf16 %v1062, %v1061
      %s1067 = scalar_lea.vmem %s3, 10
      %v1068 = vld [vmem:[%s1067] sm:$0x3]
      %v1070 = vsel %vm464, %v1063, 0
      %v1073 = vsel %vm464, %v1064, 0
      %v1076 = vsel %vm464, %v1065, 0
      %v1079 = vsel %vm464, %v1066, 0
      %v1082 = vsel %vm560, %v1068, 0
      %1084 = vmatprep.subr.bf16.mxu0 0
      %1085 = vmatpush1.bf16.msra.mxu0 %v1082
      %1086 = vmatprep.subr.bf16.mxu0 0
      %1087 = vmatpush1.bf16.msra.mxu0 0
      %1088 = vmatprep.subr.bf16.mxu0 0
      %1089 = vmatpush1.bf16.msra.mxu0 0
      %1090 = vmatprep.subr.bf16.mxu0 0
      %1091 = vmatpush1.bf16.msra.mxu0 0
      %1092 = vmatprep.subr.bf16.mxu0 0
      %1093 = vmatpush1.bf16.msra.mxu0 0
      %1094 = vmatprep.subr.bf16.mxu0 0
      %1095 = vmatpush1.bf16.msra.mxu0 0
      %1096 = vmatprep.subr.bf16.mxu0 0
      %1097 = vmatpush1.bf16.msra.mxu0 0
      %1098 = vmatprep.subr.bf16.mxu0 0
      %1099 = vmatpush1.bf16.msra.mxu0 0
      %1100 = vmatprep.subr.bf16.mxu0 0
      %1101 = vmatpush1.bf16.msra.mxu0 0
      %1102 = vmatprep.subr.bf16.mxu0 0
      %1103 = vmatpush1.bf16.msra.mxu0 0
      %1104 = vmatprep.subr.bf16.mxu0 0
      %1105 = vmatpush1.bf16.msra.mxu0 0
      %1106 = vmatprep.subr.bf16.mxu0 0
      %1107 = vmatpush1.bf16.msra.mxu0 0
      %1108 = vmatprep.subr.bf16.mxu0 0
      %1109 = vmatpush1.bf16.msra.mxu0 0
      %1110 = vmatprep.subr.bf16.mxu0 0
      %1111 = vmatpush1.bf16.msra.mxu0 0
      %1112 = vmatprep.subr.bf16.mxu0 0
      %1113 = vmatpush1.bf16.msra.mxu0 0
      %1114 = vmatprep.subr.bf16.mxu0 0
      %1115 = vmatpush1.bf16.msra.mxu0 0
      %1116 = vmatprep.mubr.bf16.mxu0 0
      %1117 = vmatmul.mubr.bf16.gmra.mrb[0].mxu0 %v1070
      %v1118 = vpop.f32.mrb[0].mxu0
      %v1119 = vadd.f32 0.0, %v1118
      %v1120 = vpop.f32.mrb[0].mxu0
      %v1121 = vpop.f32.mrb[0].mxu0
      %v1122 = vadd.f32 0.0, %v1121
      %v1123 = vpop.f32.mrb[0].mxu0
      %1124 = vmatprep.mubr.bf16.mxu0 0
      %1125 = vmatmul.mubr.bf16.gmra.mrb[0].mxu0 %v1073
      %v1126 = vpop.f32.mrb[0].mxu0
      %v1127 = vadd.f32 0.0, %v1126
      %v1128 = vpop.f32.mrb[0].mxu0
      %v1129 = vpop.f32.mrb[0].mxu0
      %v1130 = vadd.f32 0.0, %v1129
      %v1131 = vpop.f32.mrb[0].mxu0
      %1132 = vmatprep.mubr.bf16.mxu0 0
      %1133 = vmatmul.mubr.bf16.gmra.mrb[0].mxu0 %v1076
      %v1134 = vpop.f32.mrb[0].mxu0
      %v1135 = vadd.f32 0.0, %v1134
      %v1136 = vpop.f32.mrb[0].mxu0
      %v1137 = vpop.f32.mrb[0].mxu0
      %v1138 = vadd.f32 0.0, %v1137
      %v1139 = vpop.f32.mrb[0].mxu0
      %1140 = vmatprep.mubr.bf16.mxu0 0
      %1141 = vmatmul.mubr.bf16.gmra.mrb[0].mxu0 %v1079
      %v1142 = vpop.f32.mrb[0].mxu0
      %v1143 = vadd.f32 0.0, %v1142
      %v1144 = vpop.f32.mrb[0].mxu0
      %v1145 = vpop.f32.mrb[0].mxu0
      %v1146 = vadd.f32 0.0, %v1145
      %v1147 = vpop.f32.mrb[0].mxu0
      %1148 = vdwg.mxu0
      %v1149 = vadd.f32 %v1017, %v1119
      %v1150 = vadd.f32 %v1020, %v1122
      %v1151 = vadd.f32 %v1025, %v1127
      %v1152 = vadd.f32 %v1028, %v1130
      %v1153 = vadd.f32 %v1033, %v1135
      %v1154 = vadd.f32 %v1036, %v1138
      %v1155 = vadd.f32 %v1041, %v1143
      %v1156 = vadd.f32 %v1044, %v1146
      %v1157 = vld [vmem:[#allocation2 + $0x10] sm:$0xff]
      %v1158 = vld [vmem:[#allocation2 + $0x18] sm:$0xff]
      %v1159 = vld [vmem:[#allocation2 + $0x20] sm:$0xff]
      %v1160 = vld [vmem:[#allocation2 + $0x28] sm:$0xff]
      %v1161 = vld [vmem:[#allocation2 + $0x30] sm:$0xff]
      %v1162 = vld [vmem:[#allocation2 + $0x38] sm:$0xff]
      %v1163 = vld [vmem:[#allocation2 + $0x40] sm:$0xff]
      %v1164 = vld [vmem:[#allocation2 + $0x48] sm:$0xff]
      %v1165 = vmul.f32 %v1157, %v484
      %v1166 = vmul.f32 %v1158, %v489
      %v1167 = vmul.f32 %v1159, %v494
      %v1168 = vmul.f32 %v1160, %v499
      %v1169 = vmul.f32 %v1161, %v504
      %v1170 = vmul.f32 %v1162, %v509
      %v1171 = vmul.f32 %v1163, %v514
      %v1172 = vmul.f32 %v1164, %v519
      %v1173 = vpack.c.bf16 %v1166, %v1165
      %v1174 = vpack.c.bf16 %v1168, %v1167
      %v1175 = vpack.c.bf16 %v1170, %v1169
      %v1176 = vpack.c.bf16 %v1172, %v1171
      %s1177 = scalar_lea.vmem %s3, 12
      %v1178 = vld [vmem:[%s1177] sm:$0x3]
      %v1179 = vld [vmem:[#allocation2 + $0x11] sm:$0xff]
      %v1180 = vld [vmem:[#allocation2 + $0x19] sm:$0xff]
      %v1181 = vld [vmem:[#allocation2 + $0x21] sm:$0xff]
      %v1182 = vld [vmem:[#allocation2 + $0x29] sm:$0xff]
      %v1183 = vld [vmem:[#allocation2 + $0x31] sm:$0xff]
      %v1184 = vld [vmem:[#allocation2 + $0x39] sm:$0xff]
      %v1185 = vld [vmem:[#allocation2 + $0x41] sm:$0xff]
      %v1186 = vld [vmem:[#allocation2 + $0x49] sm:$0xff]
      %v1187 = vpack.c.bf16 %v1180, %v1179
      %v1188 = vpack.c.bf16 %v1182, %v1181
      %v1189 = vpack.c.bf16 %v1184, %v1183
      %v1190 = vpack.c.bf16 %v1186, %v1185
      %s1191 = scalar_lea.vmem %s3, 14
      %v1192 = vld [vmem:[%s1191] sm:$0x3]
      %v1194 = vsel %vm464, %v1187, 0
      %v1197 = vsel %vm464, %v1188, 0
      %v1200 = vsel %vm464, %v1189, 0
      %v1203 = vsel %vm464, %v1190, 0
      %v1206 = vsel %vm560, %v1192, 0
      %1208 = vmatprep.subr.bf16.mxu0 0
      %1209 = vmatpush1.bf16.msra.mxu0 %v1206
      %1210 = vmatprep.subr.bf16.mxu0 0
      %1211 = vmatpush1.bf16.msra.mxu0 0
      %1212 = vmatprep.subr.bf16.mxu0 0
      %1213 = vmatpush1.bf16.msra.mxu0 0
      %1214 = vmatprep.subr.bf16.mxu0 0
      %1215 = vmatpush1.bf16.msra.mxu0 0
      %1216 = vmatprep.subr.bf16.mxu0 0
      %1217 = vmatpush1.bf16.msra.mxu0 0
      %1218 = vmatprep.subr.bf16.mxu0 0
      %1219 = vmatpush1.bf16.msra.mxu0 0
      %1220 = vmatprep.subr.bf16.mxu0 0
      %1221 = vmatpush1.bf16.msra.mxu0 0
      %1222 = vmatprep.subr.bf16.mxu0 0
      %1223 = vmatpush1.bf16.msra.mxu0 0
      %1224 = vmatprep.subr.bf16.mxu0 0
      %1225 = vmatpush1.bf16.msra.mxu0 0
      %1226 = vmatprep.subr.bf16.mxu0 0
      %1227 = vmatpush1.bf16.msra.mxu0 0
      %1228 = vmatprep.subr.bf16.mxu0 0
      %1229 = vmatpush1.bf16.msra.mxu0 0
      %1230 = vmatprep.subr.bf16.mxu0 0
      %1231 = vmatpush1.bf16.msra.mxu0 0
      %1232 = vmatprep.subr.bf16.mxu0 0
      %1233 = vmatpush1.bf16.msra.mxu0 0
      %1234 = vmatprep.subr.bf16.mxu0 0
      %1235 = vmatpush1.bf16.msra.mxu0 0
      %1236 = vmatprep.subr.bf16.mxu0 0
      %1237 = vmatpush1.bf16.msra.mxu0 0
      %1238 = vmatprep.subr.bf16.mxu0 0
      %1239 = vmatpush1.bf16.msra.mxu0 0
      %1240 = vmatprep.mubr.bf16.mxu0 0
      %1241 = vmatmul.mubr.bf16.gmra.mrb[0].mxu0 %v1194
      %v1242 = vpop.f32.mrb[0].mxu0
      %v1243 = vadd.f32 0.0, %v1242
      %v1244 = vpop.f32.mrb[0].mxu0
      %v1245 = vpop.f32.mrb[0].mxu0
      %v1246 = vadd.f32 0.0, %v1245
      %v1247 = vpop.f32.mrb[0].mxu0
      %1248 = vmatprep.mubr.bf16.mxu0 0
      %1249 = vmatmul.mubr.bf16.gmra.mrb[0].mxu0 %v1197
      %v1250 = vpop.f32.mrb[0].mxu0
      %v1251 = vadd.f32 0.0, %v1250
      %v1252 = vpop.f32.mrb[0].mxu0
      %v1253 = vpop.f32.mrb[0].mxu0
      %v1254 = vadd.f32 0.0, %v1253
      %v1255 = vpop.f32.mrb[0].mxu0
      %1256 = vmatprep.mubr.bf16.mxu0 0
      %1257 = vmatmul.mubr.bf16.gmra.mrb[0].mxu0 %v1200
      %v1258 = vpop.f32.mrb[0].mxu0
      %v1259 = vadd.f32 0.0, %v1258
      %v1260 = vpop.f32.mrb[0].mxu0
      %v1261 = vpop.f32.mrb[0].mxu0
      %v1262 = vadd.f32 0.0, %v1261
      %v1263 = vpop.f32.mrb[0].mxu0
      %1264 = vmatprep.mubr.bf16.mxu0 0
      %1265 = vmatmul.mubr.bf16.gmra.mrb[0].mxu0 %v1203
      %v1266 = vpop.f32.mrb[0].mxu0
      %v1267 = vadd.f32 0.0, %v1266
      %v1268 = vpop.f32.mrb[0].mxu0
      %v1269 = vpop.f32.mrb[0].mxu0
      %v1270 = vadd.f32 0.0, %v1269
      %v1271 = vpop.f32.mrb[0].mxu0
      %1272 = vdwg.mxu0
      %v1274 = vsel %vm464, %v1173, 0
      %v1277 = vsel %vm464, %v1174, 0
      %v1280 = vsel %vm464, %v1175, 0
      %v1283 = vsel %vm464, %v1176, 0
      %v1286 = vsel %vm560, %v1178, 0
      %1288 = vmatprep.subr.bf16.mxu0 0
      %1289 = vmatpush1.bf16.msra.mxu0 %v1286
      %1290 = vmatprep.subr.bf16.mxu0 0
      %1291 = vmatpush1.bf16.msra.mxu0 0
      %1292 = vmatprep.subr.bf16.mxu0 0
      %1293 = vmatpush1.bf16.msra.mxu0 0
      %1294 = vmatprep.subr.bf16.mxu0 0
      %1295 = vmatpush1.bf16.msra.mxu0 0
      %1296 = vmatprep.subr.bf16.mxu0 0
      %1297 = vmatpush1.bf16.msra.mxu0 0
      %1298 = vmatprep.subr.bf16.mxu0 0
      %1299 = vmatpush1.bf16.msra.mxu0 0
      %1300 = vmatprep.subr.bf16.mxu0 0
      %1301 = vmatpush1.bf16.msra.mxu0 0
      %1302 = vmatprep.subr.bf16.mxu0 0
      %1303 = vmatpush1.bf16.msra.mxu0 0
      %1304 = vmatprep.subr.bf16.mxu0 0
      %1305 = vmatpush1.bf16.msra.mxu0 0
      %1306 = vmatprep.subr.bf16.mxu0 0
      %1307 = vmatpush1.bf16.msra.mxu0 0
      %1308 = vmatprep.subr.bf16.mxu0 0
      %1309 = vmatpush1.bf16.msra.mxu0 0
      %1310 = vmatprep.subr.bf16.mxu0 0
      %1311 = vmatpush1.bf16.msra.mxu0 0
      %1312 = vmatprep.subr.bf16.mxu0 0
      %1313 = vmatpush1.bf16.msra.mxu0 0
      %1314 = vmatprep.subr.bf16.mxu0 0
      %1315 = vmatpush1.bf16.msra.mxu0 0
      %1316 = vmatprep.subr.bf16.mxu0 0
      %1317 = vmatpush1.bf16.msra.mxu0 0
      %1318 = vmatprep.subr.bf16.mxu0 0
      %1319 = vmatpush1.bf16.msra.mxu0 0
      %1320 = vmatprep.mubr.bf16.mxu0 0
      %1321 = vmatmul.mubr.bf16.gmra.mrb[0].mxu0 %v1274
      %v1322 = vpop.f32.mrb[0].mxu0
      %v1323 = vadd.f32 %v1243, %v1322
      %v1324 = vpop.f32.mrb[0].mxu0
      %v1325 = vpop.f32.mrb[0].mxu0
      %v1326 = vadd.f32 %v1246, %v1325
      %v1327 = vpop.f32.mrb[0].mxu0
      %1328 = vmatprep.mubr.bf16.mxu0 0
      %1329 = vmatmul.mubr.bf16.gmra.mrb[0].mxu0 %v1277
      %v1330 = vpop.f32.mrb[0].mxu0
      %v1331 = vadd.f32 %v1251, %v1330
      %v1332 = vpop.f32.mrb[0].mxu0
      %v1333 = vpop.f32.mrb[0].mxu0
      %v1334 = vadd.f32 %v1254, %v1333
      %v1335 = vpop.f32.mrb[0].mxu0
      %1336 = vmatprep.mubr.bf16.mxu0 0
      %1337 = vmatmul.mubr.bf16.gmra.mrb[0].mxu0 %v1280
      %v1338 = vpop.f32.mrb[0].mxu0
      %v1339 = vadd.f32 %v1259, %v1338
      %v1340 = vpop.f32.mrb[0].mxu0
      %v1341 = vpop.f32.mrb[0].mxu0
      %v1342 = vadd.f32 %v1262, %v1341
      %v1343 = vpop.f32.mrb[0].mxu0
      %1344 = vmatprep.mubr.bf16.mxu0 0
      %1345 = vmatmul.mubr.bf16.gmra.mrb[0].mxu0 %v1283
      %v1346 = vpop.f32.mrb[0].mxu0
      %v1347 = vadd.f32 %v1267, %v1346
      %v1348 = vpop.f32.mrb[0].mxu0
      %v1349 = vpop.f32.mrb[0].mxu0
      %v1350 = vadd.f32 %v1270, %v1349
      %v1351 = vpop.f32.mrb[0].mxu0
      %1352 = vdwg.mxu0
      %v1353 = vld [vmem:[#allocation2 + $0x12] sm:$0xff]
      %v1354 = vld [vmem:[#allocation2 + $0x1a] sm:$0xff]
      %v1355 = vld [vmem:[#allocation2 + $0x22] sm:$0xff]
      %v1356 = vld [vmem:[#allocation2 + $0x2a] sm:$0xff]
      %v1357 = vld [vmem:[#allocation2 + $0x32] sm:$0xff]
      %v1358 = vld [vmem:[#allocation2 + $0x3a] sm:$0xff]
      %v1359 = vld [vmem:[#allocation2 + $0x42] sm:$0xff]
      %v1360 = vld [vmem:[#allocation2 + $0x4a] sm:$0xff]
      %v1361 = vmul.f32 %v1353, %v719
      %v1362 = vmul.f32 %v1354, %v723
      %v1363 = vmul.f32 %v1355, %v727
      %v1364 = vmul.f32 %v1356, %v731
      %v1365 = vmul.f32 %v1357, %v735
      %v1366 = vmul.f32 %v1358, %v739
      %v1367 = vmul.f32 %v1359, %v743
      %v1368 = vmul.f32 %v1360, %v747
      %v1369 = vpack.c.bf16 %v1362, %v1361
      %v1370 = vpack.c.bf16 %v1364, %v1363
      %v1371 = vpack.c.bf16 %v1366, %v1365
      %v1372 = vpack.c.bf16 %v1368, %v1367
      %s1373 = scalar_lea.vmem %s3, 16
      %v1374 = vld [vmem:[%s1373] sm:$0x3]
      %v1376 = vsel %vm464, %v1369, 0
      %v1379 = vsel %vm464, %v1370, 0
      %v1382 = vsel %vm464, %v1371, 0
      %v1385 = vsel %vm464, %v1372, 0
      %v1388 = vsel %vm560, %v1374, 0
      %1390 = vmatprep.subr.bf16.mxu0 0
      %1391 = vmatpush1.bf16.msra.mxu0 %v1388
      %1392 = vmatprep.subr.bf16.mxu0 0
      %1393 = vmatpush1.bf16.msra.mxu0 0
      %1394 = vmatprep.subr.bf16.mxu0 0
      %1395 = vmatpush1.bf16.msra.mxu0 0
      %1396 = vmatprep.subr.bf16.mxu0 0
      %1397 = vmatpush1.bf16.msra.mxu0 0
      %1398 = vmatprep.subr.bf16.mxu0 0
      %1399 = vmatpush1.bf16.msra.mxu0 0
      %1400 = vmatprep.subr.bf16.mxu0 0
      %1401 = vmatpush1.bf16.msra.mxu0 0
      %1402 = vmatprep.subr.bf16.mxu0 0
      %1403 = vmatpush1.bf16.msra.mxu0 0
      %1404 = vmatprep.subr.bf16.mxu0 0
      %1405 = vmatpush1.bf16.msra.mxu0 0
      %1406 = vmatprep.subr.bf16.mxu0 0
      %1407 = vmatpush1.bf16.msra.mxu0 0
      %1408 = vmatprep.subr.bf16.mxu0 0
      %1409 = vmatpush1.bf16.msra.mxu0 0
      %1410 = vmatprep.subr.bf16.mxu0 0
      %1411 = vmatpush1.bf16.msra.mxu0 0
      %1412 = vmatprep.subr.bf16.mxu0 0
      %1413 = vmatpush1.bf16.msra.mxu0 0
      %1414 = vmatprep.subr.bf16.mxu0 0
      %1415 = vmatpush1.bf16.msra.mxu0 0
      %1416 = vmatprep.subr.bf16.mxu0 0
      %1417 = vmatpush1.bf16.msra.mxu0 0
      %1418 = vmatprep.subr.bf16.mxu0 0
      %1419 = vmatpush1.bf16.msra.mxu0 0
      %1420 = vmatprep.subr.bf16.mxu0 0
      %1421 = vmatpush1.bf16.msra.mxu0 0
      %1422 = vmatprep.mubr.bf16.mxu0 0
      %1423 = vmatmul.mubr.bf16.gmra.mrb[0].mxu0 %v1376
      %v1424 = vpop.f32.mrb[0].mxu0
      %v1425 = vadd.f32 0.0, %v1424
      %v1426 = vpop.f32.mrb[0].mxu0
      %v1427 = vpop.f32.mrb[0].mxu0
      %v1428 = vadd.f32 0.0, %v1427
      %v1429 = vpop.f32.mrb[0].mxu0
      %1430 = vmatprep.mubr.bf16.mxu0 0
      %1431 = vmatmul.mubr.bf16.gmra.mrb[0].mxu0 %v1379
      %v1432 = vpop.f32.mrb[0].mxu0
      %v1433 = vadd.f32 0.0, %v1432
      %v1434 = vpop.f32.mrb[0].mxu0
      %v1435 = vpop.f32.mrb[0].mxu0
      %v1436 = vadd.f32 0.0, %v1435
      %v1437 = vpop.f32.mrb[0].mxu0
      %1438 = vmatprep.mubr.bf16.mxu0 0
      %1439 = vmatmul.mubr.bf16.gmra.mrb[0].mxu0 %v1382
      %v1440 = vpop.f32.mrb[0].mxu0
      %v1441 = vadd.f32 0.0, %v1440
      %v1442 = vpop.f32.mrb[0].mxu0
      %v1443 = vpop.f32.mrb[0].mxu0
      %v1444 = vadd.f32 0.0, %v1443
      %v1445 = vpop.f32.mrb[0].mxu0
      %1446 = vmatprep.mubr.bf16.mxu0 0
      %1447 = vmatmul.mubr.bf16.gmra.mrb[0].mxu0 %v1385
      %v1448 = vpop.f32.mrb[0].mxu0
      %v1449 = vadd.f32 0.0, %v1448
      %v1450 = vpop.f32.mrb[0].mxu0
      %v1451 = vpop.f32.mrb[0].mxu0
      %v1452 = vadd.f32 0.0, %v1451
      %v1453 = vpop.f32.mrb[0].mxu0
      %1454 = vdwg.mxu0
      %v1455 = vadd.f32 %v1323, %v1425
      %v1456 = vadd.f32 %v1326, %v1428
      %v1457 = vadd.f32 %v1331, %v1433
      %v1458 = vadd.f32 %v1334, %v1436
      %v1459 = vadd.f32 %v1339, %v1441
      %v1460 = vadd.f32 %v1342, %v1444
      %v1461 = vadd.f32 %v1347, %v1449
      %v1462 = vadd.f32 %v1350, %v1452
      %v1463 = vadd.f32 %v843, %v1149
      %v1464 = vadd.f32 %v844, %v1150
      %v1465 = vadd.f32 %v845, %v1151
      %v1466 = vadd.f32 %v846, %v1152
      %v1467 = vadd.f32 %v847, %v1153
      %v1468 = vadd.f32 %v848, %v1154
      %v1469 = vadd.f32 %v849, %v1155
      %v1470 = vadd.f32 %v850, %v1156
      %v1471 = vadd.f32 %v1463, %v1455
      %v1472 = vadd.f32 %v1464, %v1456
      %v1473 = vadd.f32 %v1465, %v1457
      %v1474 = vadd.f32 %v1466, %v1458
      %v1475 = vadd.f32 %v1467, %v1459
      %v1476 = vadd.f32 %v1468, %v1460
      %v1477 = vadd.f32 %v1469, %v1461
      %v1478 = vadd.f32 %v1470, %v1462
      %v1479 = vld [vmem:[%s4] sm:$0x1]
      %v1481 = vlaneseq
      %v1482 = vshrl.u32 %v1481, 7
      %v1483 = vsub.s32 0, %v1482
      %v1484 = vrot.slane %v1479, %v1483
      %v1486 = vadd.f32 %v1471, %v1484
      %v1487 = vadd.f32 %v1472, %v1484
      %v1488 = vadd.f32 %v1473, %v1484
      %v1489 = vadd.f32 %v1474, %v1484
      %v1490 = vadd.f32 %v1475, %v1484
      %v1491 = vadd.f32 %v1476, %v1484
      %v1492 = vadd.f32 %v1477, %v1484
      %v1493 = vadd.f32 %v1478, %v1484
      %vm1494 = vcmp.gt.f32.partialorder %v1486, 0.0
      %vm1495 = vcmp.gt.f32.partialorder %v1487, 0.0
      %vm1496 = vcmp.gt.f32.partialorder %v1488, 0.0
      %vm1497 = vcmp.gt.f32.partialorder %v1489, 0.0
      %vm1498 = vcmp.gt.f32.partialorder %v1490, 0.0
      %vm1499 = vcmp.gt.f32.partialorder %v1491, 0.0
      %vm1500 = vcmp.gt.f32.partialorder %v1492, 0.0
      %vm1501 = vcmp.gt.f32.partialorder %v1493, 0.0
      %v1502 = vmin.f32 %v1486, 0.0
      %v1503 = vmin.f32 %v1487, 0.0
      %v1504 = vmin.f32 %v1488, 0.0
      %v1505 = vmin.f32 %v1489, 0.0
      %v1506 = vmin.f32 %v1490, 0.0
      %v1507 = vmin.f32 %v1491, 0.0
      %v1508 = vmin.f32 %v1492, 0.0
      %v1509 = vmin.f32 %v1493, 0.0
      %v1510 = vmul.f32 %v1502, 1.442695
      %v1511 = vpow.pop %v1510
      %v1512 = vmul.f32 %v1503, 1.442695
      %v1513 = vpow.pop %v1512
      %v1514 = vmul.f32 %v1504, 1.442695
      %v1515 = vpow.pop %v1514
      %v1516 = vmul.f32 %v1505, 1.442695
      %v1517 = vpow.pop %v1516
      %v1518 = vmul.f32 %v1506, 1.442695
      %v1519 = vpow.pop %v1518
      %v1520 = vmul.f32 %v1507, 1.442695
      %v1521 = vpow.pop %v1520
      %v1522 = vmul.f32 %v1508, 1.442695
      %v1523 = vpow.pop %v1522
      %v1524 = vmul.f32 %v1509, 1.442695
      %v1525 = vpow.pop %v1524
      %v1526 = vsub.f32 %v1511, 1.0
      %v1527 = vsub.f32 %v1513, 1.0
      %v1528 = vsub.f32 %v1515, 1.0
      %v1529 = vsub.f32 %v1517, 1.0
      %v1530 = vsub.f32 %v1519, 1.0
      %v1531 = vsub.f32 %v1521, 1.0
      %v1532 = vsub.f32 %v1523, 1.0
      %v1533 = vsub.f32 %v1525, 1.0
      %v1534 = vsel %vm1494, %v1486, %v1526
      %v1535 = vsel %vm1495, %v1487, %v1527
      %v1536 = vsel %vm1496, %v1488, %v1528
      %v1537 = vsel %vm1497, %v1489, %v1529
      %v1538 = vsel %vm1498, %v1490, %v1530
      %v1539 = vsel %vm1499, %v1491, %v1531
      %v1540 = vsel %vm1500, %v1492, %v1532
      %v1541 = vsel %vm1501, %v1493, %v1533
      %vm1542 = vcmask 130048
      %v1543 = vsel %vm1542, %v1534, 0.0
      %v1544 = vsel %vm1542, %v1535, 0.0
      %v1545 = vadd.f32 %v1543, %v1544
      %v1546 = vsel %vm1542, %v1536, 0.0
      %v1547 = vadd.f32 %v1545, %v1546
      %v1548 = vsel %vm1542, %v1537, 0.0
      %v1549 = vadd.f32 %v1547, %v1548
      %v1550 = vsel %vm1542, %v1538, 0.0
      %v1551 = vadd.f32 %v1549, %v1550
      %v1552 = vsel %vm1542, %v1539, 0.0
      %v1553 = vadd.f32 %v1551, %v1552
      %v1554 = vsel %vm1542, %v1540, 0.0
      %v1555 = vadd.f32 %v1553, %v1554
      %v1556 = vsel %vm1542, %v1541, 0.0
      %v1557 = vadd.f32 %v1555, %v1556
      %v1558 = vrot.slane %v1557, 4
      %v1559 = vadd.f32 %v1557, %v1558
      %v1560 = vrot.slane %v1559, 2
      %v1561 = vadd.f32 %v1559, %v1560
      %v1562 = vrot.slane %v1561, 1
      %v1563 = vadd.f32 %v1561, %v1562
      %v1564 = vmul.f32 %v1534, %v1534
      %v1565 = vmul.f32 %v1535, %v1535
      %v1566 = vmul.f32 %v1536, %v1536
      %v1567 = vmul.f32 %v1537, %v1537
      %v1568 = vmul.f32 %v1538, %v1538
      %v1569 = vmul.f32 %v1539, %v1539
      %v1570 = vmul.f32 %v1540, %v1540
      %v1571 = vmul.f32 %v1541, %v1541
      %v1572 = vsel %vm1542, %v1564, 0.0
      %v1573 = vsel %vm1542, %v1565, 0.0
      %v1574 = vadd.f32 %v1572, %v1573
      %v1575 = vsel %vm1542, %v1566, 0.0
      %v1576 = vadd.f32 %v1574, %v1575
      %v1577 = vsel %vm1542, %v1567, 0.0
      %v1578 = vadd.f32 %v1576, %v1577
      %v1579 = vsel %vm1542, %v1568, 0.0
      %v1580 = vadd.f32 %v1578, %v1579
      %v1581 = vsel %vm1542, %v1569, 0.0
      %v1582 = vadd.f32 %v1580, %v1581
      %v1583 = vsel %vm1542, %v1570, 0.0
      %v1584 = vadd.f32 %v1582, %v1583
      %v1585 = vsel %vm1542, %v1571, 0.0
      %v1586 = vadd.f32 %v1584, %v1585
      %v1587 = vrot.slane %v1586, 4
      %v1588 = vadd.f32 %v1586, %v1587
      %v1589 = vrot.slane %v1588, 2
      %v1590 = vadd.f32 %v1588, %v1589
      %v1591 = vrot.slane %v1590, 1
      %v1592 = vadd.f32 %v1590, %v1591
      %vm1593 = vcmask 1040384
      %v1594 = vsel %vm1593, %v1563, %v1592
      %v1596 = vsel %vm1542, %v1594, 0
      %1598 = vmatprep.subr.mxu0 0.0
      %1599 = vmatpush1.msra.mxu0 %v448
      %1600 = vmatprep.subr.mxu0 0.0
      %1601 = vmatpush1.msra.mxu0 %v449
      %1602 = vmatprep.subr.mxu0 0.0
      %1603 = vmatpush1.msra.mxu0 0.0
      %1604 = vmatprep.subr.mxu0 0.0
      %1605 = vmatpush1.msra.mxu0 0.0
      %1606 = vmatprep.subr.mxu0 0.0
      %1607 = vmatpush1.msra.mxu0 0.0
      %1608 = vmatprep.subr.mxu0 0.0
      %1609 = vmatpush1.msra.mxu0 0.0
      %1610 = vmatprep.subr.mxu0 0.0
      %1611 = vmatpush1.msra.mxu0 0.0
      %1612 = vmatprep.subr.mxu0 0.0
      %1613 = vmatpush1.msra.mxu0 0.0
      %1614 = vmatprep.subr.mxu0 0.0
      %1615 = vmatpush1.msra.mxu0 0.0
      %1616 = vmatprep.subr.mxu0 0.0
      %1617 = vmatpush1.msra.mxu0 0.0
      %1618 = vmatprep.subr.mxu0 0.0
      %1619 = vmatpush1.msra.mxu0 0.0
      %1620 = vmatprep.subr.mxu0 0.0
      %1621 = vmatpush1.msra.mxu0 0.0
      %1622 = vmatprep.subr.mxu0 0.0
      %1623 = vmatpush1.msra.mxu0 0.0
      %1624 = vmatprep.subr.mxu0 0.0
      %1625 = vmatpush1.msra.mxu0 0.0
      %1626 = vmatprep.subr.mxu0 0.0
      %1627 = vmatpush1.msra.mxu0 0.0
      %1628 = vmatprep.subr.mxu0 0.0
      %1629 = vmatpush1.msra.mxu0 0.0
      %1630 = vmatprep.subr.mxu0 0.0
      %1631 = vmatpush1.msra.mxu0 0.0
      %1632 = vmatprep.subr.mxu0 0.0
      %1633 = vmatpush1.msra.mxu0 0.0
      %1634 = vmatprep.subr.mxu0 0.0
      %1635 = vmatpush1.msra.mxu0 0.0
      %1636 = vmatprep.subr.mxu0 0.0
      %1637 = vmatpush1.msra.mxu0 0.0
      %1638 = vmatprep.subr.mxu0 0.0
      %1639 = vmatpush1.msra.mxu0 0.0
      %1640 = vmatprep.subr.mxu0 0.0
      %1641 = vmatpush1.msra.mxu0 0.0
      %1642 = vmatprep.subr.mxu0 0.0
      %1643 = vmatpush1.msra.mxu0 0.0
      %1644 = vmatprep.subr.mxu0 0.0
      %1645 = vmatpush1.msra.mxu0 0.0
      %1646 = vmatprep.subr.mxu0 0.0
      %1647 = vmatpush1.msra.mxu0 0.0
      %1648 = vmatprep.subr.mxu0 0.0
      %1649 = vmatpush1.msra.mxu0 0.0
      %1650 = vmatprep.subr.mxu0 0.0
      %1651 = vmatpush1.msra.mxu0 0.0
      %1652 = vmatprep.subr.mxu0 0.0
      %1653 = vmatpush1.msra.mxu0 0.0
      %1654 = vmatprep.subr.mxu0 0.0
      %1655 = vmatpush1.msra.mxu0 0.0
      %1656 = vmatprep.subr.mxu0 0.0
      %1657 = vmatpush1.msra.mxu0 0.0
      %1658 = vmatprep.subr.mxu0 0.0
      %1659 = vmatpush1.msra.mxu0 0.0
      %1660 = vmatprep.subr.mxu0 0.0
      %1661 = vmatpush1.msra.mxu0 0.0
      %1662 = vmatprep.mubr.f32.mxu0 0.0
      %1663 = vmatmul.mubr.f32.gmra.mrb[0].mxu0 %v1596
      %v1664 = vpop.f32.mrb[0].mxu0
      %v1665 = vadd.f32 0.0, %v1664
      %v1666 = vpop.f32.mrb[0].mxu0
      %1667 = vdwg.mxu0
      %v1668 = vld [vmem:[%s5] sm:$0x1]
      %v1669 = vld [vmem:[%s6] sm:$0x1]
      %v1670 = vmul.f32 %v1665, %v1665
      %v1672 = vrot.slane %v1670, 7
      %v1674 = vsub.f32 %v1665, %v1672
      %v1675 = vmax.f32 %v1674, 0.0
      %v1676 = vlaneseq
      %v1677 = vshrl.u32 %v1676, 7
      %v1678 = vsub.s32 0, %v1677
      %v1679 = vrot.slane %v1665, %v1678
      %v1680 = vsub.f32 %v1534, %v1679
      %v1681 = vsub.f32 %v1535, %v1679
      %v1682 = vsub.f32 %v1536, %v1679
      %v1683 = vsub.f32 %v1537, %v1679
      %v1684 = vsub.f32 %v1538, %v1679
      %v1685 = vsub.f32 %v1539, %v1679
      %v1686 = vsub.f32 %v1540, %v1679
      %v1687 = vsub.f32 %v1541, %v1679
      %v1688 = vadd.f32 %v1675, 1e-05
      %v1689 = vrsqrt.pop %v1688
      %v1690 = vlaneseq
      %v1691 = vshrl.u32 %v1690, 7
      %v1692 = vsub.s32 1, %v1691
      %v1693 = vrot.slane %v1689, %v1692
      %v1694 = vmul.f32 %v1680, %v1693
      %v1695 = vmul.f32 %v1681, %v1693
      %v1696 = vmul.f32 %v1682, %v1693
      %v1697 = vmul.f32 %v1683, %v1693
      %v1698 = vmul.f32 %v1684, %v1693
      %v1699 = vmul.f32 %v1685, %v1693
      %v1700 = vmul.f32 %v1686, %v1693
      %v1701 = vmul.f32 %v1687, %v1693
      %v1703 = vlaneseq
      %v1704 = vshrl.u32 %v1703, 7
      %v1705 = vsub.s32 0, %v1704
      %v1706 = vrot.slane %v1668, %v1705
      %v1708 = vmul.f32 %v1694, %v1706
      %v1709 = vmul.f32 %v1695, %v1706
      %v1710 = vmul.f32 %v1696, %v1706
      %v1711 = vmul.f32 %v1697, %v1706
      %v1712 = vmul.f32 %v1698, %v1706
      %v1713 = vmul.f32 %v1699, %v1706
      %v1714 = vmul.f32 %v1700, %v1706
      %v1715 = vmul.f32 %v1701, %v1706
      %v1717 = vlaneseq
      %v1718 = vshrl.u32 %v1717, 7
      %v1719 = vsub.s32 0, %v1718
      %v1720 = vrot.slane %v1669, %v1719
      %v1722 = vadd.f32 %v1708, %v1720
      %v1723 = vadd.f32 %v1709, %v1720
      %v1724 = vadd.f32 %v1710, %v1720
      %v1725 = vadd.f32 %v1711, %v1720
      %v1726 = vadd.f32 %v1712, %v1720
      %v1727 = vadd.f32 %v1713, %v1720
      %v1728 = vadd.f32 %v1714, %v1720
      %v1729 = vadd.f32 %v1715, %v1720
      %1738 = vrot.lane.b32.xlu0 %v1722, 4
      %v1739 = vpop.permute.xlu0 %1738
      %1740 = vrot.lane.b32.xlu0 %v1723, 4
      %v1741 = vpop.permute.xlu0 %1740
      %1742 = vrot.lane.b32.xlu0 %v1724, 4
      %v1743 = vpop.permute.xlu0 %1742
      %1744 = vrot.lane.b32.xlu0 %v1725, 4
      %v1745 = vpop.permute.xlu0 %1744
      %1746 = vrot.lane.b32.xlu0 %v1726, 4
      %v1747 = vpop.permute.xlu0 %1746
      %1748 = vrot.lane.b32.xlu0 %v1727, 4
      %v1749 = vpop.permute.xlu0 %1748
      %1750 = vrot.lane.b32.xlu0 %v1728, 4
      %v1751 = vpop.permute.xlu0 %1750
      %1752 = vrot.lane.b32.xlu0 %v1729, 4
      %v1753 = vpop.permute.xlu0 %1752
      %vm1762 = vcmask 162848
      %1763 = vst.msk [vmem:[#allocation2 + $0x9] sm:$0xff] %vm1762, %v1739
      %1764 = vst.msk [vmem:[#allocation2 + $0x11] sm:$0xff] %vm1762, %v1741
      %1765 = vst.msk [vmem:[#allocation2 + $0x19] sm:$0xff] %vm1762, %v1743
      %1766 = vst.msk [vmem:[#allocation2 + $0x21] sm:$0xff] %vm1762, %v1745
      %1767 = vst.msk [vmem:[#allocation2 + $0x29] sm:$0xff] %vm1762, %v1747
      %1768 = vst.msk [vmem:[#allocation2 + $0x31] sm:$0xff] %vm1762, %v1749
      %1769 = vst.msk [vmem:[#allocation2 + $0x39] sm:$0xff] %vm1762, %v1751
      %1770 = vst.msk [vmem:[#allocation2 + $0x41] sm:$0xff] %vm1762, %v1753
      %v1771 = vld [vmem:[#allocation2] sm:$0xff]
      %v1772 = vld [vmem:[#allocation2 + $0x8] sm:$0xff]
      %v1773 = vld [vmem:[#allocation2 + $0x10] sm:$0xff]
      %v1774 = vld [vmem:[#allocation2 + $0x18] sm:$0xff]
      %v1775 = vld [vmem:[#allocation2 + $0x20] sm:$0xff]
      %v1776 = vld [vmem:[#allocation2 + $0x28] sm:$0xff]
      %v1777 = vld [vmem:[#allocation2 + $0x30] sm:$0xff]
      %v1778 = vld [vmem:[#allocation2 + $0x38] sm:$0xff]
      %v1779 = vmul.f32 %v1771, %v484
      %v1780 = vmul.f32 %v1772, %v489
      %v1781 = vmul.f32 %v1773, %v494
      %v1782 = vmul.f32 %v1774, %v499
      %v1783 = vmul.f32 %v1775, %v504
      %v1784 = vmul.f32 %v1776, %v509
      %v1785 = vmul.f32 %v1777, %v514
      %v1786 = vmul.f32 %v1778, %v519
      %v1787 = vpack.c.bf16 %v1780, %v1779
      %v1788 = vpack.c.bf16 %v1782, %v1781
      %v1789 = vpack.c.bf16 %v1784, %v1783
      %v1790 = vpack.c.bf16 %v1786, %v1785
      %v1791 = vld [vmem:[%s7] sm:$0xf]
      %v1792 = vld [vmem:[%s7 + $0x4] sm:$0xf]
      %v1793 = vld [vmem:[%s7 + $0x8] sm:$0x3]
      %v1794 = vld [vmem:[#allocation2 + $0x1] sm:$0xff]
      %v1795 = vld [vmem:[#allocation2 + $0x9] sm:$0xff]
      %v1796 = vld [vmem:[#allocation2 + $0x11] sm:$0xff]
      %v1797 = vld [vmem:[#allocation2 + $0x19] sm:$0xff]
      %v1798 = vld [vmem:[#allocation2 + $0x21] sm:$0xff]
      %v1799 = vld [vmem:[#allocation2 + $0x29] sm:$0xff]
      %v1800 = vld [vmem:[#allocation2 + $0x31] sm:$0xff]
      %v1801 = vld [vmem:[#allocation2 + $0x39] sm:$0xff]
      %v1802 = vpack.c.bf16 %v1795, %v1794
      %v1803 = vpack.c.bf16 %v1797, %v1796
      %v1804 = vpack.c.bf16 %v1799, %v1798
      %v1805 = vpack.c.bf16 %v1801, %v1800
      %s1806 = scalar_lea.vmem %s7, 12
      %v1807 = vld [vmem:[%s1806] sm:$0xf]
      %v1808 = vld [vmem:[%s1806 + $0x4] sm:$0xf]
      %v1809 = vld [vmem:[%s1806 + $0x8] sm:$0x3]
      %v1813 = vunpack.c.l.b16 %v1807
      %v1814 = vunpack.c.l.b16 %v1808
      %v1815 = vunpack.c.l.b16 %v1809
      %v1816 = vpack.c.b16 %v1814, %v1813
      %v1817 = vpack.c.b16 %v1815, %v1815
      %vm1819 = vcmask 162816
      %v1821 = vsel %vm1819, %v1802, 0
      %v1824 = vsel %vm1819, %v1803, 0
      %v1827 = vsel %vm1819, %v1804, 0
      %v1830 = vsel %vm1819, %v1805, 0
      %v1833 = vsel %vm560, %v1817, 0
      %1835 = vmatprep.subr.bf16.mxu0 0
      %1836 = vmatpush1.bf16.msra.mxu0 %v1816
      %1837 = vmatprep.subr.bf16.mxu0 0
      %1838 = vmatpush1.bf16.msra.mxu0 %v1833
      %1839 = vmatprep.subr.bf16.mxu0 0
      %1840 = vmatpush1.bf16.msra.mxu0 0
      %1841 = vmatprep.subr.bf16.mxu0 0
      %1842 = vmatpush1.bf16.msra.mxu0 0
      %1843 = vmatprep.subr.bf16.mxu0 0
      %1844 = vmatpush1.bf16.msra.mxu0 0
      %1845 = vmatprep.subr.bf16.mxu0 0
      %1846 = vmatpush1.bf16.msra.mxu0 0
      %1847 = vmatprep.subr.bf16.mxu0 0
      %1848 = vmatpush1.bf16.msra.mxu0 0
      %1849 = vmatprep.subr.bf16.mxu0 0
      %1850 = vmatpush1.bf16.msra.mxu0 0
      %1851 = vmatprep.subr.bf16.mxu0 0
      %1852 = vmatpush1.bf16.msra.mxu0 0
      %1853 = vmatprep.subr.bf16.mxu0 0
      %1854 = vmatpush1.bf16.msra.mxu0 0
      %1855 = vmatprep.subr.bf16.mxu0 0
      %1856 = vmatpush1.bf16.msra.mxu0 0
      %1857 = vmatprep.subr.bf16.mxu0 0
      %1858 = vmatpush1.bf16.msra.mxu0 0
      %1859 = vmatprep.subr.bf16.mxu0 0
      %1860 = vmatpush1.bf16.msra.mxu0 0
      %1861 = vmatprep.subr.bf16.mxu0 0
      %1862 = vmatpush1.bf16.msra.mxu0 0
      %1863 = vmatprep.subr.bf16.mxu0 0
      %1864 = vmatpush1.bf16.msra.mxu0 0
      %1865 = vmatprep.subr.bf16.mxu0 0
      %1866 = vmatpush1.bf16.msra.mxu0 0
      %1867 = vmatprep.mubr.bf16.mxu0 0
      %1868 = vmatmul.mubr.bf16.gmra.mrb[0].mxu0 %v1821
      %v1869 = vpop.f32.mrb[0].mxu0
      %v1870 = vadd.f32 0.0, %v1869
      %v1871 = vpop.f32.mrb[0].mxu0
      %v1872 = vpop.f32.mrb[0].mxu0
      %v1873 = vadd.f32 0.0, %v1872
      %v1874 = vpop.f32.mrb[0].mxu0
      %1875 = vmatprep.mubr.bf16.mxu0 0
      %1876 = vmatmul.mubr.bf16.gmra.mrb[0].mxu0 %v1824
      %v1877 = vpop.f32.mrb[0].mxu0
      %v1878 = vadd.f32 0.0, %v1877
      %v1879 = vpop.f32.mrb[0].mxu0
      %v1880 = vpop.f32.mrb[0].mxu0
      %v1881 = vadd.f32 0.0, %v1880
      %v1882 = vpop.f32.mrb[0].mxu0
      %1883 = vmatprep.mubr.bf16.mxu0 0
      %1884 = vmatmul.mubr.bf16.gmra.mrb[0].mxu0 %v1827
      %v1885 = vpop.f32.mrb[0].mxu0
      %v1886 = vadd.f32 0.0, %v1885
      %v1887 = vpop.f32.mrb[0].mxu0
      %v1888 = vpop.f32.mrb[0].mxu0
      %v1889 = vadd.f32 0.0, %v1888
      %v1890 = vpop.f32.mrb[0].mxu0
      %1891 = vmatprep.mubr.bf16.mxu0 0
      %1892 = vmatmul.mubr.bf16.gmra.mrb[0].mxu0 %v1830
      %v1893 = vpop.f32.mrb[0].mxu0
      %v1894 = vadd.f32 0.0, %v1893
      %v1895 = vpop.f32.mrb[0].mxu0
      %v1896 = vpop.f32.mrb[0].mxu0
      %v1897 = vadd.f32 0.0, %v1896
      %v1898 = vpop.f32.mrb[0].mxu0
      %1899 = vdwg.mxu0
      %v1903 = vunpack.c.l.b16 %v1791
      %v1904 = vunpack.c.l.b16 %v1792
      %v1905 = vunpack.c.l.b16 %v1793
      %v1906 = vpack.c.b16 %v1904, %v1903
      %v1907 = vpack.c.b16 %v1905, %v1905
      %v1910 = vsel %vm1819, %v1787, 0
      %v1913 = vsel %vm1819, %v1788, 0
      %v1916 = vsel %vm1819, %v1789, 0
      %v1919 = vsel %vm1819, %v1790, 0
      %v1922 = vsel %vm560, %v1907, 0
      %1924 = vmatprep.subr.bf16.mxu0 0
      %1925 = vmatpush1.bf16.msra.mxu0 %v1906
      %1926 = vmatprep.subr.bf16.mxu0 0
      %1927 = vmatpush1.bf16.msra.mxu0 %v1922
      %1928 = vmatprep.subr.bf16.mxu0 0
      %1929 = vmatpush1.bf16.msra.mxu0 0
      %1930 = vmatprep.subr.bf16.mxu0 0
      %1931 = vmatpush1.bf16.msra.mxu0 0
      %1932 = vmatprep.subr.bf16.mxu0 0
      %1933 = vmatpush1.bf16.msra.mxu0 0
      %1934 = vmatprep.subr.bf16.mxu0 0
      %1935 = vmatpush1.bf16.msra.mxu0 0
      %1936 = vmatprep.subr.bf16.mxu0 0
      %1937 = vmatpush1.bf16.msra.mxu0 0
      %1938 = vmatprep.subr.bf16.mxu0 0
      %1939 = vmatpush1.bf16.msra.mxu0 0
      %1940 = vmatprep.subr.bf16.mxu0 0
      %1941 = vmatpush1.bf16.msra.mxu0 0
      %1942 = vmatprep.subr.bf16.mxu0 0
      %1943 = vmatpush1.bf16.msra.mxu0 0
      %1944 = vmatprep.subr.bf16.mxu0 0
      %1945 = vmatpush1.bf16.msra.mxu0 0
      %1946 = vmatprep.subr.bf16.mxu0 0
      %1947 = vmatpush1.bf16.msra.mxu0 0
      %1948 = vmatprep.subr.bf16.mxu0 0
      %1949 = vmatpush1.bf16.msra.mxu0 0
      %1950 = vmatprep.subr.bf16.mxu0 0
      %1951 = vmatpush1.bf16.msra.mxu0 0
      %1952 = vmatprep.subr.bf16.mxu0 0
      %1953 = vmatpush1.bf16.msra.mxu0 0
      %1954 = vmatprep.subr.bf16.mxu0 0
      %1955 = vmatpush1.bf16.msra.mxu0 0
      %1956 = vmatprep.mubr.bf16.mxu0 0
      %1957 = vmatmul.mubr.bf16.gmra.mrb[0].mxu0 %v1910
      %v1958 = vpop.f32.mrb[0].mxu0
      %v1959 = vadd.f32 %v1870, %v1958
      %v1960 = vpop.f32.mrb[0].mxu0
      %v1961 = vpop.f32.mrb[0].mxu0
      %v1962 = vadd.f32 %v1873, %v1961
      %v1963 = vpop.f32.mrb[0].mxu0
      %1964 = vmatprep.mubr.bf16.mxu0 0
      %1965 = vmatmul.mubr.bf16.gmra.mrb[0].mxu0 %v1913
      %v1966 = vpop.f32.mrb[0].mxu0
      %v1967 = vadd.f32 %v1878, %v1966
      %v1968 = vpop.f32.mrb[0].mxu0
      %v1969 = vpop.f32.mrb[0].mxu0
      %v1970 = vadd.f32 %v1881, %v1969
      %v1971 = vpop.f32.mrb[0].mxu0
      %1972 = vmatprep.mubr.bf16.mxu0 0
      %1973 = vmatmul.mubr.bf16.gmra.mrb[0].mxu0 %v1916
      %v1974 = vpop.f32.mrb[0].mxu0
      %v1975 = vadd.f32 %v1886, %v1974
      %v1976 = vpop.f32.mrb[0].mxu0
      %v1977 = vpop.f32.mrb[0].mxu0
      %v1978 = vadd.f32 %v1889, %v1977
      %v1979 = vpop.f32.mrb[0].mxu0
      %1980 = vmatprep.mubr.bf16.mxu0 0
      %1981 = vmatmul.mubr.bf16.gmra.mrb[0].mxu0 %v1919
      %v1982 = vpop.f32.mrb[0].mxu0
      %v1983 = vadd.f32 %v1894, %v1982
      %v1984 = vpop.f32.mrb[0].mxu0
      %v1985 = vpop.f32.mrb[0].mxu0
      %v1986 = vadd.f32 %v1897, %v1985
      %v1987 = vpop.f32.mrb[0].mxu0
      %1988 = vdwg.mxu0
      %v1989 = vld [vmem:[#allocation2 + $0x2] sm:$0xff]
      %v1990 = vld [vmem:[#allocation2 + $0xa] sm:$0xff]
      %v1991 = vld [vmem:[#allocation2 + $0x12] sm:$0xff]
      %v1992 = vld [vmem:[#allocation2 + $0x1a] sm:$0xff]
      %v1993 = vld [vmem:[#allocation2 + $0x22] sm:$0xff]
      %v1994 = vld [vmem:[#allocation2 + $0x2a] sm:$0xff]
      %v1995 = vld [vmem:[#allocation2 + $0x32] sm:$0xff]
      %v1996 = vld [vmem:[#allocation2 + $0x3a] sm:$0xff]
      %v1997 = vmul.f32 %v1989, %v719
      %v1998 = vmul.f32 %v1990, %v723
      %v1999 = vmul.f32 %v1991, %v727
      %v2000 = vmul.f32 %v1992, %v731
      %v2001 = vmul.f32 %v1993, %v735
      %v2002 = vmul.f32 %v1994, %v739
      %v2003 = vmul.f32 %v1995, %v743
      %v2004 = vmul.f32 %v1996, %v747
      %v2005 = vpack.c.bf16 %v1998, %v1997
      %v2006 = vpack.c.bf16 %v2000, %v1999
      %v2007 = vpack.c.bf16 %v2002, %v2001
      %v2008 = vpack.c.bf16 %v2004, %v2003
      %s2009 = scalar_lea.vmem %s7, 24
      %v2010 = vld [vmem:[%s2009] sm:$0xf]
      %v2011 = vld [vmem:[%s2009 + $0x4] sm:$0xf]
      %v2012 = vld [vmem:[%s2009 + $0x8] sm:$0x3]
      %v2016 = vunpack.c.l.b16 %v2010
      %v2017 = vunpack.c.l.b16 %v2011
      %v2018 = vunpack.c.l.b16 %v2012
      %v2019 = vpack.c.b16 %v2017, %v2016
      %v2020 = vpack.c.b16 %v2018, %v2018
      %v2023 = vsel %vm1819, %v2005, 0
      %v2026 = vsel %vm1819, %v2006, 0
      %v2029 = vsel %vm1819, %v2007, 0
      %v2032 = vsel %vm1819, %v2008, 0
      %v2035 = vsel %vm560, %v2020, 0
      %2037 = vmatprep.subr.bf16.mxu0 0
      %2038 = vmatpush1.bf16.msra.mxu0 %v2019
      %2039 = vmatprep.subr.bf16.mxu0 0
      %2040 = vmatpush1.bf16.msra.mxu0 %v2035
      %2041 = vmatprep.subr.bf16.mxu0 0
      %2042 = vmatpush1.bf16.msra.mxu0 0
      %2043 = vmatprep.subr.bf16.mxu0 0
      %2044 = vmatpush1.bf16.msra.mxu0 0
      %2045 = vmatprep.subr.bf16.mxu0 0
      %2046 = vmatpush1.bf16.msra.mxu0 0
      %2047 = vmatprep.subr.bf16.mxu0 0
      %2048 = vmatpush1.bf16.msra.mxu0 0
      %2049 = vmatprep.subr.bf16.mxu0 0
      %2050 = vmatpush1.bf16.msra.mxu0 0
      %2051 = vmatprep.subr.bf16.mxu0 0
      %2052 = vmatpush1.bf16.msra.mxu0 0
      %2053 = vmatprep.subr.bf16.mxu0 0
      %2054 = vmatpush1.bf16.msra.mxu0 0
      %2055 = vmatprep.subr.bf16.mxu0 0
      %2056 = vmatpush1.bf16.msra.mxu0 0
      %2057 = vmatprep.subr.bf16.mxu0 0
      %2058 = vmatpush1.bf16.msra.mxu0 0
      %2059 = vmatprep.subr.bf16.mxu0 0
      %2060 = vmatpush1.bf16.msra.mxu0 0
      %2061 = vmatprep.subr.bf16.mxu0 0
      %2062 = vmatpush1.bf16.msra.mxu0 0
      %2063 = vmatprep.subr.bf16.mxu0 0
      %2064 = vmatpush1.bf16.msra.mxu0 0
      %2065 = vmatprep.subr.bf16.mxu0 0
      %2066 = vmatpush1.bf16.msra.mxu0 0
      %2067 = vmatprep.subr.bf16.mxu0 0
      %2068 = vmatpush1.bf16.msra.mxu0 0
      %2069 = vmatprep.mubr.bf16.mxu0 0
      %2070 = vmatmul.mubr.bf16.gmra.mrb[0].mxu0 %v2023
      %v2071 = vpop.f32.mrb[0].mxu0
      %v2072 = vadd.f32 0.0, %v2071
      %v2073 = vpop.f32.mrb[0].mxu0
      %v2074 = vpop.f32.mrb[0].mxu0
      %v2075 = vadd.f32 0.0, %v2074
      %v2076 = vpop.f32.mrb[0].mxu0
      %2077 = vmatprep.mubr.bf16.mxu0 0
      %2078 = vmatmul.mubr.bf16.gmra.mrb[0].mxu0 %v2026
      %v2079 = vpop.f32.mrb[0].mxu0
      %v2080 = vadd.f32 0.0, %v2079
      %v2081 = vpop.f32.mrb[0].mxu0
      %v2082 = vpop.f32.mrb[0].mxu0
      %v2083 = vadd.f32 0.0, %v2082
      %v2084 = vpop.f32.mrb[0].mxu0
      %2085 = vmatprep.mubr.bf16.mxu0 0
      %2086 = vmatmul.mubr.bf16.gmra.mrb[0].mxu0 %v2029
      %v2087 = vpop.f32.mrb[0].mxu0
      %v2088 = vadd.f32 0.0, %v2087
      %v2089 = vpop.f32.mrb[0].mxu0
      %v2090 = vpop.f32.mrb[0].mxu0
      %v2091 = vadd.f32 0.0, %v2090
      %v2092 = vpop.f32.mrb[0].mxu0
      %2093 = vmatprep.mubr.bf16.mxu0 0
      %2094 = vmatmul.mubr.bf16.gmra.mrb[0].mxu0 %v2032
      %v2095 = vpop.f32.mrb[0].mxu0
      %v2096 = vadd.f32 0.0, %v2095
      %v2097 = vpop.f32.mrb[0].mxu0
      %v2098 = vpop.f32.mrb[0].mxu0
      %v2099 = vadd.f32 0.0, %v2098
      %v2100 = vpop.f32.mrb[0].mxu0
      %2101 = vdwg.mxu0
      %v2102 = vadd.f32 %v1959, %v2072
      %v2103 = vadd.f32 %v1962, %v2075
      %v2104 = vadd.f32 %v1967, %v2080
      %v2105 = vadd.f32 %v1970, %v2083
      %v2106 = vadd.f32 %v1975, %v2088
      %v2107 = vadd.f32 %v1978, %v2091
      %v2108 = vadd.f32 %v1983, %v2096
      %v2109 = vadd.f32 %v1986, %v2099
      %v2110 = vld [vmem:[#allocation2 + $0x8] sm:$0xff]
      %v2111 = vld [vmem:[#allocation2 + $0x10] sm:$0xff]
      %v2112 = vld [vmem:[#allocation2 + $0x18] sm:$0xff]
      %v2113 = vld [vmem:[#allocation2 + $0x20] sm:$0xff]
      %v2114 = vld [vmem:[#allocation2 + $0x28] sm:$0xff]
      %v2115 = vld [vmem:[#allocation2 + $0x30] sm:$0xff]
      %v2116 = vld [vmem:[#allocation2 + $0x38] sm:$0xff]
      %v2117 = vld [vmem:[#allocation2 + $0x40] sm:$0xff]
      %v2118 = vmul.f32 %v2110, %v484
      %v2119 = vmul.f32 %v2111, %v489
      %v2120 = vmul.f32 %v2112, %v494
      %v2121 = vmul.f32 %v2113, %v499
      %v2122 = vmul.f32 %v2114, %v504
      %v2123 = vmul.f32 %v2115, %v509
      %v2124 = vmul.f32 %v2116, %v514
      %v2125 = vmul.f32 %v2117, %v519
      %v2126 = vpack.c.bf16 %v2119, %v2118
      %v2127 = vpack.c.bf16 %v2121, %v2120
      %v2128 = vpack.c.bf16 %v2123, %v2122
      %v2129 = vpack.c.bf16 %v2125, %v2124
      %s2130 = scalar_lea.vmem %s7, 36
      %v2131 = vld [vmem:[%s2130] sm:$0xf]
      %v2132 = vld [vmem:[%s2130 + $0x4] sm:$0xf]
      %v2133 = vld [vmem:[%s2130 + $0x8] sm:$0x3]
      %v2134 = vld [vmem:[#allocation2 + $0x9] sm:$0xff]
      %v2135 = vld [vmem:[#allocation2 + $0x11] sm:$0xff]
      %v2136 = vld [vmem:[#allocation2 + $0x19] sm:$0xff]
      %v2137 = vld [vmem:[#allocation2 + $0x21] sm:$0xff]
      %v2138 = vld [vmem:[#allocation2 + $0x29] sm:$0xff]
      %v2139 = vld [vmem:[#allocation2 + $0x31] sm:$0xff]
      %v2140 = vld [vmem:[#allocation2 + $0x39] sm:$0xff]
      %v2141 = vld [vmem:[#allocation2 + $0x41] sm:$0xff]
      %v2142 = vpack.c.bf16 %v2135, %v2134
      %v2143 = vpack.c.bf16 %v2137, %v2136
      %v2144 = vpack.c.bf16 %v2139, %v2138
      %v2145 = vpack.c.bf16 %v2141, %v2140
      %s2146 = scalar_lea.vmem %s7, 48
      %v2147 = vld [vmem:[%s2146] sm:$0xf]
      %v2148 = vld [vmem:[%s2146 + $0x4] sm:$0xf]
      %v2149 = vld [vmem:[%s2146 + $0x8] sm:$0x3]
      %v2153 = vunpack.c.l.b16 %v2147
      %v2154 = vunpack.c.l.b16 %v2148
      %v2155 = vunpack.c.l.b16 %v2149
      %v2156 = vpack.c.b16 %v2154, %v2153
      %v2157 = vpack.c.b16 %v2155, %v2155
      %v2160 = vsel %vm1819, %v2142, 0
      %v2163 = vsel %vm1819, %v2143, 0
      %v2166 = vsel %vm1819, %v2144, 0
      %v2169 = vsel %vm1819, %v2145, 0
      %v2172 = vsel %vm560, %v2157, 0
      %2174 = vmatprep.subr.bf16.mxu0 0
      %2175 = vmatpush1.bf16.msra.mxu0 %v2156
      %2176 = vmatprep.subr.bf16.mxu0 0
      %2177 = vmatpush1.bf16.msra.mxu0 %v2172
      %2178 = vmatprep.subr.bf16.mxu0 0
      %2179 = vmatpush1.bf16.msra.mxu0 0
      %2180 = vmatprep.subr.bf16.mxu0 0
      %2181 = vmatpush1.bf16.msra.mxu0 0
      %2182 = vmatprep.subr.bf16.mxu0 0
      %2183 = vmatpush1.bf16.msra.mxu0 0
      %2184 = vmatprep.subr.bf16.mxu0 0
      %2185 = vmatpush1.bf16.msra.mxu0 0
      %2186 = vmatprep.subr.bf16.mxu0 0
      %2187 = vmatpush1.bf16.msra.mxu0 0
      %2188 = vmatprep.subr.bf16.mxu0 0
      %2189 = vmatpush1.bf16.msra.mxu0 0
      %2190 = vmatprep.subr.bf16.mxu0 0
      %2191 = vmatpush1.bf16.msra.mxu0 0
      %2192 = vmatprep.subr.bf16.mxu0 0
      %2193 = vmatpush1.bf16.msra.mxu0 0
      %2194 = vmatprep.subr.bf16.mxu0 0
      %2195 = vmatpush1.bf16.msra.mxu0 0
      %2196 = vmatprep.subr.bf16.mxu0 0
      %2197 = vmatpush1.bf16.msra.mxu0 0
      %2198 = vmatprep.subr.bf16.mxu0 0
      %2199 = vmatpush1.bf16.msra.mxu0 0
      %2200 = vmatprep.subr.bf16.mxu0 0
      %2201 = vmatpush1.bf16.msra.mxu0 0
      %2202 = vmatprep.subr.bf16.mxu0 0
      %2203 = vmatpush1.bf16.msra.mxu0 0
      %2204 = vmatprep.subr.bf16.mxu0 0
      %2205 = vmatpush1.bf16.msra.mxu0 0
      %2206 = vmatprep.mubr.bf16.mxu0 0
      %2207 = vmatmul.mubr.bf16.gmra.mrb[0].mxu0 %v2160
      %v2208 = vpop.f32.mrb[0].mxu0
      %v2209 = vadd.f32 0.0, %v2208
      %v2210 = vpop.f32.mrb[0].mxu0
      %v2211 = vpop.f32.mrb[0].mxu0
      %v2212 = vadd.f32 0.0, %v2211
      %v2213 = vpop.f32.mrb[0].mxu0
      %2214 = vmatprep.mubr.bf16.mxu0 0
      %2215 = vmatmul.mubr.bf16.gmra.mrb[0].mxu0 %v2163
      %v2216 = vpop.f32.mrb[0].mxu0
      %v2217 = vadd.f32 0.0, %v2216
      %v2218 = vpop.f32.mrb[0].mxu0
      %v2219 = vpop.f32.mrb[0].mxu0
      %v2220 = vadd.f32 0.0, %v2219
      %v2221 = vpop.f32.mrb[0].mxu0
      %2222 = vmatprep.mubr.bf16.mxu0 0
      %2223 = vmatmul.mubr.bf16.gmra.mrb[0].mxu0 %v2166
      %v2224 = vpop.f32.mrb[0].mxu0
      %v2225 = vadd.f32 0.0, %v2224
      %v2226 = vpop.f32.mrb[0].mxu0
      %v2227 = vpop.f32.mrb[0].mxu0
      %v2228 = vadd.f32 0.0, %v2227
      %v2229 = vpop.f32.mrb[0].mxu0
      %2230 = vmatprep.mubr.bf16.mxu0 0
      %2231 = vmatmul.mubr.bf16.gmra.mrb[0].mxu0 %v2169
      %v2232 = vpop.f32.mrb[0].mxu0
      %v2233 = vadd.f32 0.0, %v2232
      %v2234 = vpop.f32.mrb[0].mxu0
      %v2235 = vpop.f32.mrb[0].mxu0
      %v2236 = vadd.f32 0.0, %v2235
      %v2237 = vpop.f32.mrb[0].mxu0
      %2238 = vdwg.mxu0
      %v2242 = vunpack.c.l.b16 %v2131
      %v2243 = vunpack.c.l.b16 %v2132
      %v2244 = vunpack.c.l.b16 %v2133
      %v2245 = vpack.c.b16 %v2243, %v2242
      %v2246 = vpack.c.b16 %v2244, %v2244
      %v2249 = vsel %vm1819, %v2126, 0
      %v2252 = vsel %vm1819, %v2127, 0
      %v2255 = vsel %vm1819, %v2128, 0
      %v2258 = vsel %vm1819, %v2129, 0
      %v2261 = vsel %vm560, %v2246, 0
      %2263 = vmatprep.subr.bf16.mxu0 0
      %2264 = vmatpush1.bf16.msra.mxu0 %v2245
      %2265 = vmatprep.subr.bf16.mxu0 0
      %2266 = vmatpush1.bf16.msra.mxu0 %v2261
      %2267 = vmatprep.subr.bf16.mxu0 0
      %2268 = vmatpush1.bf16.msra.mxu0 0
      %2269 = vmatprep.subr.bf16.mxu0 0
      %2270 = vmatpush1.bf16.msra.mxu0 0
      %2271 = vmatprep.subr.bf16.mxu0 0
      %2272 = vmatpush1.bf16.msra.mxu0 0
      %2273 = vmatprep.subr.bf16.mxu0 0
      %2274 = vmatpush1.bf16.msra.mxu0 0
      %2275 = vmatprep.subr.bf16.mxu0 0
      %2276 = vmatpush1.bf16.msra.mxu0 0
      %2277 = vmatprep.subr.bf16.mxu0 0
      %2278 = vmatpush1.bf16.msra.mxu0 0
      %2279 = vmatprep.subr.bf16.mxu0 0
      %2280 = vmatpush1.bf16.msra.mxu0 0
      %2281 = vmatprep.subr.bf16.mxu0 0
      %2282 = vmatpush1.bf16.msra.mxu0 0
      %2283 = vmatprep.subr.bf16.mxu0 0
      %2284 = vmatpush1.bf16.msra.mxu0 0
      %2285 = vmatprep.subr.bf16.mxu0 0
      %2286 = vmatpush1.bf16.msra.mxu0 0
      %2287 = vmatprep.subr.bf16.mxu0 0
      %2288 = vmatpush1.bf16.msra.mxu0 0
      %2289 = vmatprep.subr.bf16.mxu0 0
      %2290 = vmatpush1.bf16.msra.mxu0 0
      %2291 = vmatprep.subr.bf16.mxu0 0
      %2292 = vmatpush1.bf16.msra.mxu0 0
      %2293 = vmatprep.subr.bf16.mxu0 0
      %2294 = vmatpush1.bf16.msra.mxu0 0
      %2295 = vmatprep.mubr.bf16.mxu0 0
      %2296 = vmatmul.mubr.bf16.gmra.mrb[0].mxu0 %v2249
      %v2297 = vpop.f32.mrb[0].mxu0
      %v2298 = vadd.f32 %v2209, %v2297
      %v2299 = vpop.f32.mrb[0].mxu0
      %v2300 = vpop.f32.mrb[0].mxu0
      %v2301 = vadd.f32 %v2212, %v2300
      %v2302 = vpop.f32.mrb[0].mxu0
      %2303 = vmatprep.mubr.bf16.mxu0 0
      %2304 = vmatmul.mubr.bf16.gmra.mrb[0].mxu0 %v2252
      %v2305 = vpop.f32.mrb[0].mxu0
      %v2306 = vadd.f32 %v2217, %v2305
      %v2307 = vpop.f32.mrb[0].mxu0
      %v2308 = vpop.f32.mrb[0].mxu0
      %v2309 = vadd.f32 %v2220, %v2308
      %v2310 = vpop.f32.mrb[0].mxu0
      %2311 = vmatprep.mubr.bf16.mxu0 0
      %2312 = vmatmul.mubr.bf16.gmra.mrb[0].mxu0 %v2255
      %v2313 = vpop.f32.mrb[0].mxu0
      %v2314 = vadd.f32 %v2225, %v2313
      %v2315 = vpop.f32.mrb[0].mxu0
      %v2316 = vpop.f32.mrb[0].mxu0
      %v2317 = vadd.f32 %v2228, %v2316
      %v2318 = vpop.f32.mrb[0].mxu0
      %2319 = vmatprep.mubr.bf16.mxu0 0
      %2320 = vmatmul.mubr.bf16.gmra.mrb[0].mxu0 %v2258
      %v2321 = vpop.f32.mrb[0].mxu0
      %v2322 = vadd.f32 %v2233, %v2321
      %v2323 = vpop.f32.mrb[0].mxu0
      %v2324 = vpop.f32.mrb[0].mxu0
      %v2325 = vadd.f32 %v2236, %v2324
      %v2326 = vpop.f32.mrb[0].mxu0
      %2327 = vdwg.mxu0
      %v2328 = vld [vmem:[#allocation2 + $0xa] sm:$0xff]
      %v2329 = vld [vmem:[#allocation2 + $0x12] sm:$0xff]
      %v2330 = vld [vmem:[#allocation2 + $0x1a] sm:$0xff]
      %v2331 = vld [vmem:[#allocation2 + $0x22] sm:$0xff]
      %v2332 = vld [vmem:[#allocation2 + $0x2a] sm:$0xff]
      %v2333 = vld [vmem:[#allocation2 + $0x32] sm:$0xff]
      %v2334 = vld [vmem:[#allocation2 + $0x3a] sm:$0xff]
      %v2335 = vld [vmem:[#allocation2 + $0x42] sm:$0xff]
      %v2336 = vmul.f32 %v2328, %v719
      %v2337 = vmul.f32 %v2329, %v723
      %v2338 = vmul.f32 %v2330, %v727
      %v2339 = vmul.f32 %v2331, %v731
      %v2340 = vmul.f32 %v2332, %v735
      %v2341 = vmul.f32 %v2333, %v739
      %v2342 = vmul.f32 %v2334, %v743
      %v2343 = vmul.f32 %v2335, %v747
      %v2344 = vpack.c.bf16 %v2337, %v2336
      %v2345 = vpack.c.bf16 %v2339, %v2338
      %v2346 = vpack.c.bf16 %v2341, %v2340
      %v2347 = vpack.c.bf16 %v2343, %v2342
      %s2348 = scalar_lea.vmem %s7, 60
      %v2349 = vld [vmem:[%s2348] sm:$0xf]
      %v2350 = vld [vmem:[%s2348 + $0x4] sm:$0xf]
      %v2351 = vld [vmem:[%s2348 + $0x8] sm:$0x3]
      %v2355 = vunpack.c.l.b16 %v2349
      %v2356 = vunpack.c.l.b16 %v2350
      %v2357 = vunpack.c.l.b16 %v2351
      %v2358 = vpack.c.b16 %v2356, %v2355
      %v2359 = vpack.c.b16 %v2357, %v2357
      %v2362 = vsel %vm1819, %v2344, 0
      %v2365 = vsel %vm1819, %v2345, 0
      %v2368 = vsel %vm1819, %v2346, 0
      %v2371 = vsel %vm1819, %v2347, 0
      %v2374 = vsel %vm560, %v2359, 0
      %2376 = vmatprep.subr.bf16.mxu0 0
      %2377 = vmatpush1.bf16.msra.mxu0 %v2358
      %2378 = vmatprep.subr.bf16.mxu0 0
      %2379 = vmatpush1.bf16.msra.mxu0 %v2374
      %2380 = vmatprep.subr.bf16.mxu0 0
      %2381 = vmatpush1.bf16.msra.mxu0 0
      %2382 = vmatprep.subr.bf16.mxu0 0
      %2383 = vmatpush1.bf16.msra.mxu0 0
      %2384 = vmatprep.subr.bf16.mxu0 0
      %2385 = vmatpush1.bf16.msra.mxu0 0
      %2386 = vmatprep.subr.bf16.mxu0 0
      %2387 = vmatpush1.bf16.msra.mxu0 0
      %2388 = vmatprep.subr.bf16.mxu0 0
      %2389 = vmatpush1.bf16.msra.mxu0 0
      %2390 = vmatprep.subr.bf16.mxu0 0
      %2391 = vmatpush1.bf16.msra.mxu0 0
      %2392 = vmatprep.subr.bf16.mxu0 0
      %2393 = vmatpush1.bf16.msra.mxu0 0
      %2394 = vmatprep.subr.bf16.mxu0 0
      %2395 = vmatpush1.bf16.msra.mxu0 0
      %2396 = vmatprep.subr.bf16.mxu0 0
      %2397 = vmatpush1.bf16.msra.mxu0 0
      %2398 = vmatprep.subr.bf16.mxu0 0
      %2399 = vmatpush1.bf16.msra.mxu0 0
      %2400 = vmatprep.subr.bf16.mxu0 0
      %2401 = vmatpush1.bf16.msra.mxu0 0
      %2402 = vmatprep.subr.bf16.mxu0 0
      %2403 = vmatpush1.bf16.msra.mxu0 0
      %2404 = vmatprep.subr.bf16.mxu0 0
      %2405 = vmatpush1.bf16.msra.mxu0 0
      %2406 = vmatprep.subr.bf16.mxu0 0
      %2407 = vmatpush1.bf16.msra.mxu0 0
      %2408 = vmatprep.mubr.bf16.mxu0 0
      %2409 = vmatmul.mubr.bf16.gmra.mrb[0].mxu0 %v2362
      %v2410 = vpop.f32.mrb[0].mxu0
      %v2411 = vadd.f32 0.0, %v2410
      %v2412 = vpop.f32.mrb[0].mxu0
      %v2413 = vpop.f32.mrb[0].mxu0
      %v2414 = vadd.f32 0.0, %v2413
      %v2415 = vpop.f32.mrb[0].mxu0
      %2416 = vmatprep.mubr.bf16.mxu0 0
      %2417 = vmatmul.mubr.bf16.gmra.mrb[0].mxu0 %v2365
      %v2418 = vpop.f32.mrb[0].mxu0
      %v2419 = vadd.f32 0.0, %v2418
      %v2420 = vpop.f32.mrb[0].mxu0
      %v2421 = vpop.f32.mrb[0].mxu0
      %v2422 = vadd.f32 0.0, %v2421
      %v2423 = vpop.f32.mrb[0].mxu0
      %2424 = vmatprep.mubr.bf16.mxu0 0
      %2425 = vmatmul.mubr.bf16.gmra.mrb[0].mxu0 %v2368
      %v2426 = vpop.f32.mrb[0].mxu0
      %v2427 = vadd.f32 0.0, %v2426
      %v2428 = vpop.f32.mrb[0].mxu0
      %v2429 = vpop.f32.mrb[0].mxu0
      %v2430 = vadd.f32 0.0, %v2429
      %v2431 = vpop.f32.mrb[0].mxu0
      %2432 = vmatprep.mubr.bf16.mxu0 0
      %2433 = vmatmul.mubr.bf16.gmra.mrb[0].mxu0 %v2371
      %v2434 = vpop.f32.mrb[0].mxu0
      %v2435 = vadd.f32 0.0, %v2434
      %v2436 = vpop.f32.mrb[0].mxu0
      %v2437 = vpop.f32.mrb[0].mxu0
      %v2438 = vadd.f32 0.0, %v2437
      %v2439 = vpop.f32.mrb[0].mxu0
      %2440 = vdwg.mxu0
      %v2441 = vadd.f32 %v2298, %v2411
      %v2442 = vadd.f32 %v2301, %v2414
      %v2443 = vadd.f32 %v2306, %v2419
      %v2444 = vadd.f32 %v2309, %v2422
      %v2445 = vadd.f32 %v2314, %v2427
      %v2446 = vadd.f32 %v2317, %v2430
      %v2447 = vadd.f32 %v2322, %v2435
      %v2448 = vadd.f32 %v2325, %v2438
      %v2449 = vld [vmem:[#allocation2 + $0x10] sm:$0xff]
      %v2450 = vld [vmem:[#allocation2 + $0x18] sm:$0xff]
      %v2451 = vld [vmem:[#allocation2 + $0x20] sm:$0xff]
      %v2452 = vld [vmem:[#allocation2 + $0x28] sm:$0xff]
      %v2453 = vld [vmem:[#allocation2 + $0x30] sm:$0xff]
      %v2454 = vld [vmem:[#allocation2 + $0x38] sm:$0xff]
      %v2455 = vld [vmem:[#allocation2 + $0x40] sm:$0xff]
      %v2456 = vld [vmem:[#allocation2 + $0x48] sm:$0xff]
      %v2457 = vmul.f32 %v2449, %v484
      %v2458 = vmul.f32 %v2450, %v489
      %v2459 = vmul.f32 %v2451, %v494
      %v2460 = vmul.f32 %v2452, %v499
      %v2461 = vmul.f32 %v2453, %v504
      %v2462 = vmul.f32 %v2454, %v509
      %v2463 = vmul.f32 %v2455, %v514
      %v2464 = vmul.f32 %v2456, %v519
      %v2465 = vpack.c.bf16 %v2458, %v2457
      %v2466 = vpack.c.bf16 %v2460, %v2459
      %v2467 = vpack.c.bf16 %v2462, %v2461
      %v2468 = vpack.c.bf16 %v2464, %v2463
      %s2469 = scalar_lea.vmem %s7, 72
      %v2470 = vld [vmem:[%s2469] sm:$0xf]
      %v2471 = vld [vmem:[%s2469 + $0x4] sm:$0xf]
      %v2472 = vld [vmem:[%s2469 + $0x8] sm:$0x3]
      %v2473 = vld [vmem:[#allocation2 + $0x11] sm:$0xff]
      %v2474 = vld [vmem:[#allocation2 + $0x19] sm:$0xff]
      %v2475 = vld [vmem:[#allocation2 + $0x21] sm:$0xff]
      %v2476 = vld [vmem:[#allocation2 + $0x29] sm:$0xff]
      %v2477 = vld [vmem:[#allocation2 + $0x31] sm:$0xff]
      %v2478 = vld [vmem:[#allocation2 + $0x39] sm:$0xff]
      %v2479 = vld [vmem:[#allocation2 + $0x41] sm:$0xff]
      %v2480 = vld [vmem:[#allocation2 + $0x49] sm:$0xff]
      %v2481 = vpack.c.bf16 %v2474, %v2473
      %v2482 = vpack.c.bf16 %v2476, %v2475
      %v2483 = vpack.c.bf16 %v2478, %v2477
      %v2484 = vpack.c.bf16 %v2480, %v2479
      %s2485 = scalar_lea.vmem %s7, 84
      %v2486 = vld [vmem:[%s2485] sm:$0xf]
      %v2487 = vld [vmem:[%s2485 + $0x4] sm:$0xf]
      %v2488 = vld [vmem:[%s2485 + $0x8] sm:$0x3]
      %v2492 = vunpack.c.l.b16 %v2486
      %v2493 = vunpack.c.l.b16 %v2487
      %v2494 = vunpack.c.l.b16 %v2488
      %v2495 = vpack.c.b16 %v2493, %v2492
      %v2496 = vpack.c.b16 %v2494, %v2494
      %v2499 = vsel %vm1819, %v2481, 0
      %v2502 = vsel %vm1819, %v2482, 0
      %v2505 = vsel %vm1819, %v2483, 0
      %v2508 = vsel %vm1819, %v2484, 0
      %v2511 = vsel %vm560, %v2496, 0
      %2513 = vmatprep.subr.bf16.mxu0 0
      %2514 = vmatpush1.bf16.msra.mxu0 %v2495
      %2515 = vmatprep.subr.bf16.mxu0 0
      %2516 = vmatpush1.bf16.msra.mxu0 %v2511
      %2517 = vmatprep.subr.bf16.mxu0 0
      %2518 = vmatpush1.bf16.msra.mxu0 0
      %2519 = vmatprep.subr.bf16.mxu0 0
      %2520 = vmatpush1.bf16.msra.mxu0 0
      %2521 = vmatprep.subr.bf16.mxu0 0
      %2522 = vmatpush1.bf16.msra.mxu0 0
      %2523 = vmatprep.subr.bf16.mxu0 0
      %2524 = vmatpush1.bf16.msra.mxu0 0
      %2525 = vmatprep.subr.bf16.mxu0 0
      %2526 = vmatpush1.bf16.msra.mxu0 0
      %2527 = vmatprep.subr.bf16.mxu0 0
      %2528 = vmatpush1.bf16.msra.mxu0 0
      %2529 = vmatprep.subr.bf16.mxu0 0
      %2530 = vmatpush1.bf16.msra.mxu0 0
      %2531 = vmatprep.subr.bf16.mxu0 0
      %2532 = vmatpush1.bf16.msra.mxu0 0
      %2533 = vmatprep.subr.bf16.mxu0 0
      %2534 = vmatpush1.bf16.msra.mxu0 0
      %2535 = vmatprep.subr.bf16.mxu0 0
      %2536 = vmatpush1.bf16.msra.mxu0 0
      %2537 = vmatprep.subr.bf16.mxu0 0
      %2538 = vmatpush1.bf16.msra.mxu0 0
      %2539 = vmatprep.subr.bf16.mxu0 0
      %2540 = vmatpush1.bf16.msra.mxu0 0
      %2541 = vmatprep.subr.bf16.mxu0 0
      %2542 = vmatpush1.bf16.msra.mxu0 0
      %2543 = vmatprep.subr.bf16.mxu0 0
      %2544 = vmatpush1.bf16.msra.mxu0 0
      %2545 = vmatprep.mubr.bf16.mxu0 0
      %2546 = vmatmul.mubr.bf16.gmra.mrb[0].mxu0 %v2499
      %v2547 = vpop.f32.mrb[0].mxu0
      %v2548 = vadd.f32 0.0, %v2547
      %v2549 = vpop.f32.mrb[0].mxu0
      %v2550 = vpop.f32.mrb[0].mxu0
      %v2551 = vadd.f32 0.0, %v2550
      %v2552 = vpop.f32.mrb[0].mxu0
      %2553 = vmatprep.mubr.bf16.mxu0 0
      %2554 = vmatmul.mubr.bf16.gmra.mrb[0].mxu0 %v2502
      %v2555 = vpop.f32.mrb[0].mxu0
      %v2556 = vadd.f32 0.0, %v2555
      %v2557 = vpop.f32.mrb[0].mxu0
      %v2558 = vpop.f32.mrb[0].mxu0
      %v2559 = vadd.f32 0.0, %v2558
      %v2560 = vpop.f32.mrb[0].mxu0
      %2561 = vmatprep.mubr.bf16.mxu0 0
      %2562 = vmatmul.mubr.bf16.gmra.mrb[0].mxu0 %v2505
      %v2563 = vpop.f32.mrb[0].mxu0
      %v2564 = vadd.f32 0.0, %v2563
      %v2565 = vpop.f32.mrb[0].mxu0
      %v2566 = vpop.f32.mrb[0].mxu0
      %v2567 = vadd.f32 0.0, %v2566
      %v2568 = vpop.f32.mrb[0].mxu0
      %2569 = vmatprep.mubr.bf16.mxu0 0
      %2570 = vmatmul.mubr.bf16.gmra.mrb[0].mxu0 %v2508
      %v2571 = vpop.f32.mrb[0].mxu0
      %v2572 = vadd.f32 0.0, %v2571
      %v2573 = vpop.f32.mrb[0].mxu0
      %v2574 = vpop.f32.mrb[0].mxu0
      %v2575 = vadd.f32 0.0, %v2574
      %v2576 = vpop.f32.mrb[0].mxu0
      %2577 = vdwg.mxu0
      %v2581 = vunpack.c.l.b16 %v2470
      %v2582 = vunpack.c.l.b16 %v2471
      %v2583 = vunpack.c.l.b16 %v2472
      %v2584 = vpack.c.b16 %v2582, %v2581
      %v2585 = vpack.c.b16 %v2583, %v2583
      %v2588 = vsel %vm1819, %v2465, 0
      %v2591 = vsel %vm1819, %v2466, 0
      %v2594 = vsel %vm1819, %v2467, 0
      %v2597 = vsel %vm1819, %v2468, 0
      %v2600 = vsel %vm560, %v2585, 0
      %2602 = vmatprep.subr.bf16.mxu0 0
      %2603 = vmatpush1.bf16.msra.mxu0 %v2584
      %2604 = vmatprep.subr.bf16.mxu0 0
      %2605 = vmatpush1.bf16.msra.mxu0 %v2600
      %2606 = vmatprep.subr.bf16.mxu0 0
      %2607 = vmatpush1.bf16.msra.mxu0 0
      %2608 = vmatprep.subr.bf16.mxu0 0
      %2609 = vmatpush1.bf16.msra.mxu0 0
      %2610 = vmatprep.subr.bf16.mxu0 0
      %2611 = vmatpush1.bf16.msra.mxu0 0
      %2612 = vmatprep.subr.bf16.mxu0 0
      %2613 = vmatpush1.bf16.msra.mxu0 0
      %2614 = vmatprep.subr.bf16.mxu0 0
      %2615 = vmatpush1.bf16.msra.mxu0 0
      %2616 = vmatprep.subr.bf16.mxu0 0
      %2617 = vmatpush1.bf16.msra.mxu0 0
      %2618 = vmatprep.subr.bf16.mxu0 0
      %2619 = vmatpush1.bf16.msra.mxu0 0
      %2620 = vmatprep.subr.bf16.mxu0 0
      %2621 = vmatpush1.bf16.msra.mxu0 0
      %2622 = vmatprep.subr.bf16.mxu0 0
      %2623 = vmatpush1.bf16.msra.mxu0 0
      %2624 = vmatprep.subr.bf16.mxu0 0
      %2625 = vmatpush1.bf16.msra.mxu0 0
      %2626 = vmatprep.subr.bf16.mxu0 0
      %2627 = vmatpush1.bf16.msra.mxu0 0
      %2628 = vmatprep.subr.bf16.mxu0 0
      %2629 = vmatpush1.bf16.msra.mxu0 0
      %2630 = vmatprep.subr.bf16.mxu0 0
      %2631 = vmatpush1.bf16.msra.mxu0 0
      %2632 = vmatprep.subr.bf16.mxu0 0
      %2633 = vmatpush1.bf16.msra.mxu0 0
      %2634 = vmatprep.mubr.bf16.mxu0 0
      %2635 = vmatmul.mubr.bf16.gmra.mrb[0].mxu0 %v2588
      %v2636 = vpop.f32.mrb[0].mxu0
      %v2637 = vadd.f32 %v2548, %v2636
      %v2638 = vpop.f32.mrb[0].mxu0
      %v2639 = vpop.f32.mrb[0].mxu0
      %v2640 = vadd.f32 %v2551, %v2639
      %v2641 = vpop.f32.mrb[0].mxu0
      %2642 = vmatprep.mubr.bf16.mxu0 0
      %2643 = vmatmul.mubr.bf16.gmra.mrb[0].mxu0 %v2591
      %v2644 = vpop.f32.mrb[0].mxu0
      %v2645 = vadd.f32 %v2556, %v2644
      %v2646 = vpop.f32.mrb[0].mxu0
      %v2647 = vpop.f32.mrb[0].mxu0
      %v2648 = vadd.f32 %v2559, %v2647
      %v2649 = vpop.f32.mrb[0].mxu0
      %2650 = vmatprep.mubr.bf16.mxu0 0
      %2651 = vmatmul.mubr.bf16.gmra.mrb[0].mxu0 %v2594
      %v2652 = vpop.f32.mrb[0].mxu0
      %v2653 = vadd.f32 %v2564, %v2652
      %v2654 = vpop.f32.mrb[0].mxu0
      %v2655 = vpop.f32.mrb[0].mxu0
      %v2656 = vadd.f32 %v2567, %v2655
      %v2657 = vpop.f32.mrb[0].mxu0
      %2658 = vmatprep.mubr.bf16.mxu0 0
      %2659 = vmatmul.mubr.bf16.gmra.mrb[0].mxu0 %v2597
      %v2660 = vpop.f32.mrb[0].mxu0
      %v2661 = vadd.f32 %v2572, %v2660
      %v2662 = vpop.f32.mrb[0].mxu0
      %v2663 = vpop.f32.mrb[0].mxu0
      %v2664 = vadd.f32 %v2575, %v2663
      %v2665 = vpop.f32.mrb[0].mxu0
      %2666 = vdwg.mxu0
      %v2667 = vld [vmem:[#allocation2 + $0x12] sm:$0xff]
      %v2668 = vld [vmem:[#allocation2 + $0x1a] sm:$0xff]
      %v2669 = vld [vmem:[#allocation2 + $0x22] sm:$0xff]
      %v2670 = vld [vmem:[#allocation2 + $0x2a] sm:$0xff]
      %v2671 = vld [vmem:[#allocation2 + $0x32] sm:$0xff]
      %v2672 = vld [vmem:[#allocation2 + $0x3a] sm:$0xff]
      %v2673 = vld [vmem:[#allocation2 + $0x42] sm:$0xff]
      %v2674 = vld [vmem:[#allocation2 + $0x4a] sm:$0xff]
      %v2675 = vmul.f32 %v2667, %v719
      %v2676 = vmul.f32 %v2668, %v723
      %v2677 = vmul.f32 %v2669, %v727
      %v2678 = vmul.f32 %v2670, %v731
      %v2679 = vmul.f32 %v2671, %v735
      %v2680 = vmul.f32 %v2672, %v739
      %v2681 = vmul.f32 %v2673, %v743
      %v2682 = vmul.f32 %v2674, %v747
      %v2683 = vpack.c.bf16 %v2676, %v2675
      %v2684 = vpack.c.bf16 %v2678, %v2677
      %v2685 = vpack.c.bf16 %v2680, %v2679
      %v2686 = vpack.c.bf16 %v2682, %v2681
      %s2687 = scalar_lea.vmem %s7, 96
      %v2688 = vld [vmem:[%s2687] sm:$0xf]
      %v2689 = vld [vmem:[%s2687 + $0x4] sm:$0xf]
      %v2690 = vld [vmem:[%s2687 + $0x8] sm:$0x3]
      %v2694 = vunpack.c.l.b16 %v2688
      %v2695 = vunpack.c.l.b16 %v2689
      %v2696 = vunpack.c.l.b16 %v2690
      %v2697 = vpack.c.b16 %v2695, %v2694
      %v2698 = vpack.c.b16 %v2696, %v2696
      %v2701 = vsel %vm1819, %v2683, 0
      %v2704 = vsel %vm1819, %v2684, 0
      %v2707 = vsel %vm1819, %v2685, 0
      %v2710 = vsel %vm1819, %v2686, 0
      %v2713 = vsel %vm560, %v2698, 0
      %2715 = vmatprep.subr.bf16.mxu0 0
      %2716 = vmatpush1.bf16.msra.mxu0 %v2697
      %2717 = vmatprep.subr.bf16.mxu0 0
      %2718 = vmatpush1.bf16.msra.mxu0 %v2713
      %2719 = vmatprep.subr.bf16.mxu0 0
      %2720 = vmatpush1.bf16.msra.mxu0 0
      %2721 = vmatprep.subr.bf16.mxu0 0
      %2722 = vmatpush1.bf16.msra.mxu0 0
      %2723 = vmatprep.subr.bf16.mxu0 0
      %2724 = vmatpush1.bf16.msra.mxu0 0
      %2725 = vmatprep.subr.bf16.mxu0 0
      %2726 = vmatpush1.bf16.msra.mxu0 0
      %2727 = vmatprep.subr.bf16.mxu0 0
      %2728 = vmatpush1.bf16.msra.mxu0 0
      %2729 = vmatprep.subr.bf16.mxu0 0
      %2730 = vmatpush1.bf16.msra.mxu0 0
      %2731 = vmatprep.subr.bf16.mxu0 0
      %2732 = vmatpush1.bf16.msra.mxu0 0
      %2733 = vmatprep.subr.bf16.mxu0 0
      %2734 = vmatpush1.bf16.msra.mxu0 0
      %2735 = vmatprep.subr.bf16.mxu0 0
      %2736 = vmatpush1.bf16.msra.mxu0 0
      %2737 = vmatprep.subr.bf16.mxu0 0
      %2738 = vmatpush1.bf16.msra.mxu0 0
      %2739 = vmatprep.subr.bf16.mxu0 0
      %2740 = vmatpush1.bf16.msra.mxu0 0
      %2741 = vmatprep.subr.bf16.mxu0 0
      %2742 = vmatpush1.bf16.msra.mxu0 0
      %2743 = vmatprep.subr.bf16.mxu0 0
      %2744 = vmatpush1.bf16.msra.mxu0 0
      %2745 = vmatprep.subr.bf16.mxu0 0
      %2746 = vmatpush1.bf16.msra.mxu0 0
      %2747 = vmatprep.mubr.bf16.mxu0 0
      %2748 = vmatmul.mubr.bf16.gmra.mrb[0].mxu0 %v2701
      %v2749 = vpop.f32.mrb[0].mxu0
      %v2750 = vadd.f32 0.0, %v2749
      %v2751 = vpop.f32.mrb[0].mxu0
      %v2752 = vpop.f32.mrb[0].mxu0
      %v2753 = vadd.f32 0.0, %v2752
      %v2754 = vpop.f32.mrb[0].mxu0
      %2755 = vmatprep.mubr.bf16.mxu0 0
      %2756 = vmatmul.mubr.bf16.gmra.mrb[0].mxu0 %v2704
      %v2757 = vpop.f32.mrb[0].mxu0
      %v2758 = vadd.f32 0.0, %v2757
      %v2759 = vpop.f32.mrb[0].mxu0
      %v2760 = vpop.f32.mrb[0].mxu0
      %v2761 = vadd.f32 0.0, %v2760
      %v2762 = vpop.f32.mrb[0].mxu0
      %2763 = vmatprep.mubr.bf16.mxu0 0
      %2764 = vmatmul.mubr.bf16.gmra.mrb[0].mxu0 %v2707
      %v2765 = vpop.f32.mrb[0].mxu0
      %v2766 = vadd.f32 0.0, %v2765
      %v2767 = vpop.f32.mrb[0].mxu0
      %v2768 = vpop.f32.mrb[0].mxu0
      %v2769 = vadd.f32 0.0, %v2768
      %v2770 = vpop.f32.mrb[0].mxu0
      %2771 = vmatprep.mubr.bf16.mxu0 0
      %2772 = vmatmul.mubr.bf16.gmra.mrb[0].mxu0 %v2710
      %v2773 = vpop.f32.mrb[0].mxu0
      %v2774 = vadd.f32 0.0, %v2773
      %v2775 = vpop.f32.mrb[0].mxu0
      %v2776 = vpop.f32.mrb[0].mxu0
      %v2777 = vadd.f32 0.0, %v2776
      %v2778 = vpop.f32.mrb[0].mxu0
      %2779 = vdwg.mxu0
      %v2780 = vadd.f32 %v2637, %v2750
      %v2781 = vadd.f32 %v2640, %v2753
      %v2782 = vadd.f32 %v2645, %v2758
      %v2783 = vadd.f32 %v2648, %v2761
      %v2784 = vadd.f32 %v2653, %v2766
      %v2785 = vadd.f32 %v2656, %v2769
      %v2786 = vadd.f32 %v2661, %v2774
      %v2787 = vadd.f32 %v2664, %v2777
      %v2788 = vadd.f32 %v2102, %v2441
      %v2789 = vadd.f32 %v2103, %v2442
      %v2790 = vadd.f32 %v2104, %v2443
      %v2791 = vadd.f32 %v2105, %v2444
      %v2792 = vadd.f32 %v2106, %v2445
      %v2793 = vadd.f32 %v2107, %v2446
      %v2794 = vadd.f32 %v2108, %v2447
      %v2795 = vadd.f32 %v2109, %v2448
      %v2796 = vadd.f32 %v2788, %v2780
      %v2797 = vadd.f32 %v2789, %v2781
      %v2798 = vadd.f32 %v2790, %v2782
      %v2799 = vadd.f32 %v2791, %v2783
      %v2800 = vadd.f32 %v2792, %v2784
      %v2801 = vadd.f32 %v2793, %v2785
      %v2802 = vadd.f32 %v2794, %v2786
      %v2803 = vadd.f32 %v2795, %v2787
      %v2804 = vld [vmem:[%s8] sm:$0x1]
      %v2806 = vlaneseq
      %v2807 = vshrl.u32 %v2806, 7
      %v2808 = vsub.s32 0, %v2807
      %v2809 = vrot.slane %v2804, %v2808
      %v2811 = vadd.f32 %v2796, %v2809
      %v2812 = vadd.f32 %v2797, %v2809
      %v2813 = vadd.f32 %v2798, %v2809
      %v2814 = vadd.f32 %v2799, %v2809
      %v2815 = vadd.f32 %v2800, %v2809
      %v2816 = vadd.f32 %v2801, %v2809
      %v2817 = vadd.f32 %v2802, %v2809
      %v2818 = vadd.f32 %v2803, %v2809
      %vm2819 = vcmp.gt.f32.partialorder %v2811, 0.0
      %vm2820 = vcmp.gt.f32.partialorder %v2812, 0.0
      %vm2821 = vcmp.gt.f32.partialorder %v2813, 0.0
      %vm2822 = vcmp.gt.f32.partialorder %v2814, 0.0
      %vm2823 = vcmp.gt.f32.partialorder %v2815, 0.0
      %vm2824 = vcmp.gt.f32.partialorder %v2816, 0.0
      %vm2825 = vcmp.gt.f32.partialorder %v2817, 0.0
      %vm2826 = vcmp.gt.f32.partialorder %v2818, 0.0
      %v2827 = vmin.f32 %v2811, 0.0
      %v2828 = vmin.f32 %v2812, 0.0
      %v2829 = vmin.f32 %v2813, 0.0
      %v2830 = vmin.f32 %v2814, 0.0
      %v2831 = vmin.f32 %v2815, 0.0
      %v2832 = vmin.f32 %v2816, 0.0
      %v2833 = vmin.f32 %v2817, 0.0
      %v2834 = vmin.f32 %v2818, 0.0
      %v2835 = vmul.f32 %v2827, 1.442695
      %v2836 = vpow.pop %v2835
      %v2837 = vmul.f32 %v2828, 1.442695
      %v2838 = vpow.pop %v2837
      %v2839 = vmul.f32 %v2829, 1.442695
      %v2840 = vpow.pop %v2839
      %v2841 = vmul.f32 %v2830, 1.442695
      %v2842 = vpow.pop %v2841
      %v2843 = vmul.f32 %v2831, 1.442695
      %v2844 = vpow.pop %v2843
      %v2845 = vmul.f32 %v2832, 1.442695
      %v2846 = vpow.pop %v2845
      %v2847 = vmul.f32 %v2833, 1.442695
      %v2848 = vpow.pop %v2847
      %v2849 = vmul.f32 %v2834, 1.442695
      %v2850 = vpow.pop %v2849
      %v2851 = vsub.f32 %v2836, 1.0
      %v2852 = vsub.f32 %v2838, 1.0
      %v2853 = vsub.f32 %v2840, 1.0
      %v2854 = vsub.f32 %v2842, 1.0
      %v2855 = vsub.f32 %v2844, 1.0
      %v2856 = vsub.f32 %v2846, 1.0
      %v2857 = vsub.f32 %v2848, 1.0
      %v2858 = vsub.f32 %v2850, 1.0
      %v2859 = vsel %vm2819, %v2811, %v2851
      %v2860 = vsel %vm2820, %v2812, %v2852
      %v2861 = vsel %vm2821, %v2813, %v2853
      %v2862 = vsel %vm2822, %v2814, %v2854
      %v2863 = vsel %vm2823, %v2815, %v2855
      %v2864 = vsel %vm2824, %v2816, %v2856
      %v2865 = vsel %vm2825, %v2817, %v2857
      %v2866 = vsel %vm2826, %v2818, %v2858
      %v2867 = vsel %vm1542, %v2859, 0.0
      %v2868 = vsel %vm1542, %v2860, 0.0
      %v2869 = vadd.f32 %v2867, %v2868
      %v2870 = vsel %vm1542, %v2861, 0.0
      %v2871 = vadd.f32 %v2869, %v2870
      %v2872 = vsel %vm1542, %v2862, 0.0
      %v2873 = vadd.f32 %v2871, %v2872
      %v2874 = vsel %vm1542, %v2863, 0.0
      %v2875 = vadd.f32 %v2873, %v2874
      %v2876 = vsel %vm1542, %v2864, 0.0
      %v2877 = vadd.f32 %v2875, %v2876
      %v2878 = vsel %vm1542, %v2865, 0.0
      %v2879 = vadd.f32 %v2877, %v2878
      %v2880 = vsel %vm1542, %v2866, 0.0
      %v2881 = vadd.f32 %v2879, %v2880
      %v2882 = vrot.slane %v2881, 4
      %v2883 = vadd.f32 %v2881, %v2882
      %v2884 = vrot.slane %v2883, 2
      %v2885 = vadd.f32 %v2883, %v2884
      %v2886 = vrot.slane %v2885, 1
      %v2887 = vadd.f32 %v2885, %v2886
      %v2888 = vmul.f32 %v2859, %v2859
      %v2889 = vmul.f32 %v2860, %v2860
      %v2890 = vmul.f32 %v2861, %v2861
      %v2891 = vmul.f32 %v2862, %v2862
      %v2892 = vmul.f32 %v2863, %v2863
      %v2893 = vmul.f32 %v2864, %v2864
      %v2894 = vmul.f32 %v2865, %v2865
      %v2895 = vmul.f32 %v2866, %v2866
      %v2896 = vsel %vm1542, %v2888, 0.0
      %v2897 = vsel %vm1542, %v2889, 0.0
      %v2898 = vadd.f32 %v2896, %v2897
      %v2899 = vsel %vm1542, %v2890, 0.0
      %v2900 = vadd.f32 %v2898, %v2899
      %v2901 = vsel %vm1542, %v2891, 0.0
      %v2902 = vadd.f32 %v2900, %v2901
      %v2903 = vsel %vm1542, %v2892, 0.0
      %v2904 = vadd.f32 %v2902, %v2903
      %v2905 = vsel %vm1542, %v2893, 0.0
      %v2906 = vadd.f32 %v2904, %v2905
      %v2907 = vsel %vm1542, %v2894, 0.0
      %v2908 = vadd.f32 %v2906, %v2907
      %v2909 = vsel %vm1542, %v2895, 0.0
      %v2910 = vadd.f32 %v2908, %v2909
      %v2911 = vrot.slane %v2910, 4
      %v2912 = vadd.f32 %v2910, %v2911
      %v2913 = vrot.slane %v2912, 2
      %v2914 = vadd.f32 %v2912, %v2913
      %v2915 = vrot.slane %v2914, 1
      %v2916 = vadd.f32 %v2914, %v2915
      %v2917 = vsel %vm1593, %v2887, %v2916
      %v2919 = vsel %vm1542, %v2917, 0
      %2921 = vmatprep.subr.mxu0 0.0
      %2922 = vmatpush1.msra.mxu0 %v448
      %2923 = vmatprep.subr.mxu0 0.0
      %2924 = vmatpush1.msra.mxu0 %v449
      %2925 = vmatprep.subr.mxu0 0.0
      %2926 = vmatpush1.msra.mxu0 0.0
      %2927 = vmatprep.subr.mxu0 0.0
      %2928 = vmatpush1.msra.mxu0 0.0
      %2929 = vmatprep.subr.mxu0 0.0
      %2930 = vmatpush1.msra.mxu0 0.0
      %2931 = vmatprep.subr.mxu0 0.0
      %2932 = vmatpush1.msra.mxu0 0.0
      %2933 = vmatprep.subr.mxu0 0.0
      %2934 = vmatpush1.msra.mxu0 0.0
      %2935 = vmatprep.subr.mxu0 0.0
      %2936 = vmatpush1.msra.mxu0 0.0
      %2937 = vmatprep.subr.mxu0 0.0
      %2938 = vmatpush1.msra.mxu0 0.0
      %2939 = vmatprep.subr.mxu0 0.0
      %2940 = vmatpush1.msra.mxu0 0.0
      %2941 = vmatprep.subr.mxu0 0.0
      %2942 = vmatpush1.msra.mxu0 0.0
      %2943 = vmatprep.subr.mxu0 0.0
      %2944 = vmatpush1.msra.mxu0 0.0
      %2945 = vmatprep.subr.mxu0 0.0
      %2946 = vmatpush1.msra.mxu0 0.0
      %2947 = vmatprep.subr.mxu0 0.0
      %2948 = vmatpush1.msra.mxu0 0.0
      %2949 = vmatprep.subr.mxu0 0.0
      %2950 = vmatpush1.msra.mxu0 0.0
      %2951 = vmatprep.subr.mxu0 0.0
      %2952 = vmatpush1.msra.mxu0 0.0
      %2953 = vmatprep.subr.mxu0 0.0
      %2954 = vmatpush1.msra.mxu0 0.0
      %2955 = vmatprep.subr.mxu0 0.0
      %2956 = vmatpush1.msra.mxu0 0.0
      %2957 = vmatprep.subr.mxu0 0.0
      %2958 = vmatpush1.msra.mxu0 0.0
      %2959 = vmatprep.subr.mxu0 0.0
      %2960 = vmatpush1.msra.mxu0 0.0
      %2961 = vmatprep.subr.mxu0 0.0
      %2962 = vmatpush1.msra.mxu0 0.0
      %2963 = vmatprep.subr.mxu0 0.0
      %2964 = vmatpush1.msra.mxu0 0.0
      %2965 = vmatprep.subr.mxu0 0.0
      %2966 = vmatpush1.msra.mxu0 0.0
      %2967 = vmatprep.subr.mxu0 0.0
      %2968 = vmatpush1.msra.mxu0 0.0
      %2969 = vmatprep.subr.mxu0 0.0
      %2970 = vmatpush1.msra.mxu0 0.0
      %2971 = vmatprep.subr.mxu0 0.0
      %2972 = vmatpush1.msra.mxu0 0.0
      %2973 = vmatprep.subr.mxu0 0.0
      %2974 = vmatpush1.msra.mxu0 0.0
      %2975 = vmatprep.subr.mxu0 0.0
      %2976 = vmatpush1.msra.mxu0 0.0
      %2977 = vmatprep.subr.mxu0 0.0
      %2978 = vmatpush1.msra.mxu0 0.0
      %2979 = vmatprep.subr.mxu0 0.0
      %2980 = vmatpush1.msra.mxu0 0.0
      %2981 = vmatprep.subr.mxu0 0.0
      %2982 = vmatpush1.msra.mxu0 0.0
      %2983 = vmatprep.subr.mxu0 0.0
      %2984 = vmatpush1.msra.mxu0 0.0
      %2985 = vmatprep.mubr.f32.mxu0 0.0
      %2986 = vmatmul.mubr.f32.gmra.mrb[0].mxu0 %v2919
      %v2987 = vpop.f32.mrb[0].mxu0
      %v2988 = vadd.f32 0.0, %v2987
      %v2989 = vpop.f32.mrb[0].mxu0
      %2990 = vdwg.mxu0
      %v2991 = vld [vmem:[%s9] sm:$0x1]
      %v2992 = vld [vmem:[%s10] sm:$0x1]
      %v2993 = vmul.f32 %v2988, %v2988
      %v2995 = vrot.slane %v2993, 7
      %v2997 = vsub.f32 %v2988, %v2995
      %v2998 = vmax.f32 %v2997, 0.0
      %v2999 = vlaneseq
      %v3000 = vshrl.u32 %v2999, 7
      %v3001 = vsub.s32 0, %v3000
      %v3002 = vrot.slane %v2988, %v3001
      %v3003 = vsub.f32 %v2859, %v3002
      %v3004 = vsub.f32 %v2860, %v3002
      %v3005 = vsub.f32 %v2861, %v3002
      %v3006 = vsub.f32 %v2862, %v3002
      %v3007 = vsub.f32 %v2863, %v3002
      %v3008 = vsub.f32 %v2864, %v3002
      %v3009 = vsub.f32 %v2865, %v3002
      %v3010 = vsub.f32 %v2866, %v3002
      %v3011 = vadd.f32 %v2998, 1e-05
      %v3012 = vrsqrt.pop %v3011
      %v3013 = vlaneseq
      %v3014 = vshrl.u32 %v3013, 7
      %v3015 = vsub.s32 1, %v3014
      %v3016 = vrot.slane %v3012, %v3015
      %v3017 = vmul.f32 %v3003, %v3016
      %v3018 = vmul.f32 %v3004, %v3016
      %v3019 = vmul.f32 %v3005, %v3016
      %v3020 = vmul.f32 %v3006, %v3016
      %v3021 = vmul.f32 %v3007, %v3016
      %v3022 = vmul.f32 %v3008, %v3016
      %v3023 = vmul.f32 %v3009, %v3016
      %v3024 = vmul.f32 %v3010, %v3016
      %v3026 = vlaneseq
      %v3027 = vshrl.u32 %v3026, 7
      %v3028 = vsub.s32 0, %v3027
      %v3029 = vrot.slane %v2991, %v3028
      %v3031 = vmul.f32 %v3017, %v3029
      %v3032 = vmul.f32 %v3018, %v3029
      %v3033 = vmul.f32 %v3019, %v3029
      %v3034 = vmul.f32 %v3020, %v3029
      %v3035 = vmul.f32 %v3021, %v3029
      %v3036 = vmul.f32 %v3022, %v3029
      %v3037 = vmul.f32 %v3023, %v3029
      %v3038 = vmul.f32 %v3024, %v3029
      %v3040 = vlaneseq
      %v3041 = vshrl.u32 %v3040, 7
      %v3042 = vsub.s32 0, %v3041
      %v3043 = vrot.slane %v2992, %v3042
      %v3045 = vadd.f32 %v3031, %v3043
      %v3046 = vadd.f32 %v3032, %v3043
      %v3047 = vadd.f32 %v3033, %v3043
      %v3048 = vadd.f32 %v3034, %v3043
      %v3049 = vadd.f32 %v3035, %v3043
      %v3050 = vadd.f32 %v3036, %v3043
      %v3051 = vadd.f32 %v3037, %v3043
      %v3052 = vadd.f32 %v3038, %v3043
      %3061 = vrot.lane.b32.xlu0 %v3045, 20
      %v3062 = vpop.permute.xlu0 %3061
      %3063 = vrot.lane.b32.xlu0 %v3046, 20
      %v3064 = vpop.permute.xlu0 %3063
      %3065 = vrot.lane.b32.xlu0 %v3047, 20
      %v3066 = vpop.permute.xlu0 %3065
      %3067 = vrot.lane.b32.xlu0 %v3048, 20
      %v3068 = vpop.permute.xlu0 %3067
      %3069 = vrot.lane.b32.xlu0 %v3049, 20
      %v3070 = vpop.permute.xlu0 %3069
      %3071 = vrot.lane.b32.xlu0 %v3050, 20
      %v3072 = vpop.permute.xlu0 %3071
      %3073 = vrot.lane.b32.xlu0 %v3051, 20
      %v3074 = vpop.permute.xlu0 %3073
      %3075 = vrot.lane.b32.xlu0 %v3052, 20
      %v3076 = vpop.permute.xlu0 %3075
      %vm3085 = vcmask 294048
      %3086 = vst.msk [vmem:[#allocation2 + $0x9] sm:$0xff] %vm3085, %v3062
      %3087 = vst.msk [vmem:[#allocation2 + $0x11] sm:$0xff] %vm3085, %v3064
      %3088 = vst.msk [vmem:[#allocation2 + $0x19] sm:$0xff] %vm3085, %v3066
      %3089 = vst.msk [vmem:[#allocation2 + $0x21] sm:$0xff] %vm3085, %v3068
      %3090 = vst.msk [vmem:[#allocation2 + $0x29] sm:$0xff] %vm3085, %v3070
      %3091 = vst.msk [vmem:[#allocation2 + $0x31] sm:$0xff] %vm3085, %v3072
      %3092 = vst.msk [vmem:[#allocation2 + $0x39] sm:$0xff] %vm3085, %v3074
      %3093 = vst.msk [vmem:[#allocation2 + $0x41] sm:$0xff] %vm3085, %v3076
      %v3094 = vld [vmem:[%s11] sm:$0xf]
      %v3095 = vld [vmem:[%s12] sm:$0xff]
      %v3096 = vld [vmem:[#allocation2 + $0x9] sm:$0xff]
      %v3097 = vld [vmem:[#allocation2 + $0x11] sm:$0xff]
      %v3098 = vld [vmem:[#allocation2 + $0x19] sm:$0xff]
      %v3099 = vld [vmem:[#allocation2 + $0x21] sm:$0xff]
      %v3100 = vld [vmem:[#allocation2 + $0x29] sm:$0xff]
      %v3101 = vld [vmem:[#allocation2 + $0x31] sm:$0xff]
      %v3102 = vld [vmem:[#allocation2 + $0x39] sm:$0xff]
      %v3103 = vld [vmem:[#allocation2 + $0x41] sm:$0xff]
      %v3104 = vpack.c.bf16 %v3097, %v3096
      %v3105 = vpack.c.bf16 %v3099, %v3098
      %v3106 = vpack.c.bf16 %v3101, %v3100
      %v3107 = vpack.c.bf16 %v3103, %v3102
      %3109 = vset.pattern.permute.xlu0 0
      %3110 = vperm.xlu0 %3109, %v3095
      %v3111 = vpop.permute.xlu0 %3110
      %v3114 = vsel %vm450, %v3094, 0
      %v3117 = vsel %vm450, %v3104, 0
      %v3120 = vsel %vm450, %v3105, 0
      %v3123 = vsel %vm450, %v3106, 0
      %v3126 = vsel %vm450, %v3107, 0
      %3128 = vmatprep.subr.bf16.mxu0 0
      %3129 = vmatpush1.bf16.xpose.msra.mxu0 %v3117
      %3130 = vmatprep.subr.bf16.mxu0 0
      %3131 = vmatpush1.bf16.xpose.msra.mxu0 %v3120
      %3132 = vmatprep.subr.bf16.mxu0 0
      %3133 = vmatpush1.bf16.xpose.msra.mxu0 %v3123
      %3134 = vmatprep.subr.bf16.mxu0 0
      %3135 = vmatpush1.bf16.xpose.msra.mxu0 %v3126
      %3136 = vmatprep.subr.bf16.mxu0 0
      %3137 = vmatpush1.bf16.xpose.msra.mxu0 0
      %3138 = vmatprep.subr.bf16.mxu0 0
      %3139 = vmatpush1.bf16.xpose.msra.mxu0 0
      %3140 = vmatprep.subr.bf16.mxu0 0
      %3141 = vmatpush1.bf16.xpose.msra.mxu0 0
      %3142 = vmatprep.subr.bf16.mxu0 0
      %3143 = vmatpush1.bf16.xpose.msra.mxu0 0
      %3144 = vmatprep.subr.bf16.mxu0 0
      %3145 = vmatpush1.bf16.xpose.msra.mxu0 0
      %3146 = vmatprep.subr.bf16.mxu0 0
      %3147 = vmatpush1.bf16.xpose.msra.mxu0 0
      %3148 = vmatprep.subr.bf16.mxu0 0
      %3149 = vmatpush1.bf16.xpose.msra.mxu0 0
      %3150 = vmatprep.subr.bf16.mxu0 0
      %3151 = vmatpush1.bf16.xpose.msra.mxu0 0
      %3152 = vmatprep.subr.bf16.mxu0 0
      %3153 = vmatpush1.bf16.xpose.msra.mxu0 0
      %3154 = vmatprep.subr.bf16.mxu0 0
      %3155 = vmatpush1.bf16.xpose.msra.mxu0 0
      %3156 = vmatprep.subr.bf16.mxu0 0
      %3157 = vmatpush1.bf16.xpose.msra.mxu0 0
      %3158 = vmatprep.subr.bf16.mxu0 0
      %3159 = vmatpush1.bf16.xpose.msra.mxu0 0
      %3160 = vmatprep.mubr.bf16.mxu0 0
      %3161 = vmatmul.mubr.bf16.gmra.mrb[0].mxu0 %v3114
      %v3162 = vpop.f32.mrb[0].mxu0
      %v3163 = vadd.f32 %v3111, %v3162
      %v3164 = vpop.f32.mrb[0].mxu0
      %v3165 = vpop.f32.mrb[0].mxu0
      %v3166 = vpop.f32.mrb[0].mxu0
      %3167 = vdwg.mxu0
      %vm3168 = vcmask 523264
      %3169 = vst.msk [vmem:[%s438] sm:$0xff] %vm3168, %v3163
      %p3170 = scmp.lt.s32.totalorder %s24, 1
      %s3171 = scalar_select %p3170, %s24, 1
      %s3172 = smul.addr %s3171, 8
      %s3173 = scalar_lea.vmem %s13, %s3172
      // Predicated region
      $region73: #{_lambda_.1} parent=71 // pred_check
        %p3174 = pneg %p320
      $region74: #{_lambda_.1} parent=71 // pred_check_branch
        %3176 = sbr.rel (%p3174) target = $region76
      $region75: #{_lambda_.1} parent=71 // pred_region
        _
      $region76: #{_lambda_.1} parent=71 // pred_fallthru
        _
    $region72: #{_lambda_.1} parent=5 // pred_fallthru
      _
    %p3177 = scmp.le.s32.totalorder 2, %s19
    // Predicated region
    $region77: #{_lambda_.1} parent=5 // pred_check
      %p3178 = pneg %p3177
    $region78: #{_lambda_.1} parent=5 // pred_check_branch
      %3180 = sbr.rel (%p3178) target = $region80
    $region79: #{_lambda_.1} parent=5 // pred_region
      %s3181 = ssub.s32 %s19, 2
      // Predicated region
      $region81: #{_lambda_.1} parent=79 // pred_check
        %p3182 = pneg %p326
      $region82: #{_lambda_.1} parent=79 // pred_check_branch
        %3184 = sbr.rel (%p3182) target = $region84
      $region83: #{_lambda_.1} parent=79 // pred_region
        %p3185 = scmp.lt.s32.totalorder %s25, 1
        %s3186 = scalar_select %p3185, %s25, 1
        %s3187 = smul.addr %s3186, 8
        %s3188 = scalar_lea.vmem %s13, %s3187
      $region84: #{_lambda_.1} parent=79 // pred_fallthru
        _
    $region80: #{_lambda_.1} parent=5 // pred_fallthru
      _
  $region6: #{_lambda_.1} parent=0 // loop_footer
    %s23 = sadd.s32 1, %s19
  $region7: #{_lambda_.1} parent=0 // loop_footer_branch
    %18 = sbr.rel target = $region3
  $region8: #{_lambda_.1} parent=0 // loop_exit
    _

</llo_original>
